<compile_context>
chip_gen: v7x
topology: tpu7x:2x2x1
jax: 0.10.0
libtpu: 0.0.40
codegen_flags: <defaults>
</compile_context>

<pallas_src>
import functools

import jax
import jax.numpy as jnp
from jax.experimental import pallas as pl
from jax.experimental.pallas import tpu as pltpu

HIDDEN1 = 128
HIDDEN2 = HIDDEN1 // 4  # 32


def _sigmoid(x):
    # EUP-friendly logistic: one tanh (EUP slot) + two cheap VPU ops instead
    # of exp + add + divide on the recurrent critical path.
    return 0.5 * jnp.tanh(0.5 * x) + 0.5


def _cell_update(gates, c, H):
    """PyTorch LSTM cell nonlinearity. Gates ordered (i, f, g, o)."""
    i = _sigmoid(gates[:, 0 * H:1 * H])
    f = _sigmoid(gates[:, 1 * H:2 * H])
    g = jnp.tanh(gates[:, 2 * H:3 * H])
    o = _sigmoid(gates[:, 3 * H:4 * H])
    c_new = f * c + i * g
    h_new = o * jnp.tanh(c_new)
    return h_new, c_new


def predictor_kernel(
    # inputs (all VMEM)
    x_ref,            # (T*B, D)
    wih1_ref,         # (D, 4*128)
    b1_ref,           # (1, 4*128)
    whh1_ref,         # (128, 4*128)
    w2_ref,           # (160, 4*32)   stacked [wih2; whh2]
    b2_ref,           # (1, 4*32)
    wlin_ref,         # (32, out)
    blin_ref,         # (1, out)
    h01_ref, c01_ref,  # (B, 128)
    h02_ref, c02_ref,  # (B, 32)
    mask_ref,         # (T*B, 128)   dropout mask, values in {0, 2}
    # outputs
    out_ref,          # (B, out)
    # scratch
    xproj_scr,        # (T*B, 4*128) VMEM
):
    TB = x_ref.shape[0]
    B = h01_ref.shape[0]
    T = TB // B

    # ---- Hoisted layer-1 input projection: one large MXU GEMM, off the
    #      serial recurrence. Bias b1 is folded in here (no per-step vadd).
    xproj_scr[...] = (
        jnp.dot(x_ref[...], wih1_ref[...], preferred_element_type=jnp.float32)
        + b1_ref[...]
    )

    whh1 = whh1_ref[...]
    w2 = w2_ref[...]
    b2 = b2_ref[...]

    # ---- Recurrence: state carried in registers, statically unrolled
    #      (T is small & static) so the scheduler can overlap layer-2 of
    #      step t with layer-1 of step t+1 where dependencies allow.
    h1 = h01_ref[...]
    c1 = c01_ref[...]
    h2 = h02_ref[...]
    c2 = c02_ref[...]

    for t in range(T):
        row = t * B  # static, sublane-aligned (B is a multiple of 8)

        # LSTM layer 1: only the recurrent matmul remains on the critical path.
        g1 = (jnp.dot(h1, whh1, preferred_element_type=jnp.float32)
              + xproj_scr[row:row + B, :])
        h1, c1 = _cell_update(g1, c1, HIDDEN1)

        # Dropout(p=0.5, training=True): pre-generated mask with the
        # 1/(1-p) = 2 scale already folded in (values are 0.0 or 2.0).
        h1d = h1 * mask_ref[row:row + B, :]

        # LSTM layer 2: single fused matmul over [h1_drop, h2] @ [wih2; whh2].
        g2 = (jnp.dot(jnp.concatenate([h1d, h2], axis=1), w2,
                      preferred_element_type=jnp.float32)
              + b2)
        h2, c2 = _cell_update(g2, c2, HIDDEN2)

    # ---- Linear on the final hidden state of lstm2 (state[0].squeeze(0)).
    out_ref[...] = (
        jnp.dot(h2, wlin_ref[...], preferred_element_type=jnp.float32)
        + blin_ref[...]
    ).astype(out_ref.dtype)


@functools.partial(jax.jit, static_argnames=("output_size",))
def predictor_forward(x, params, init_state, dropout_key, *, output_size=1):
    """x: (B, T, D) batch-first, float32. Returns (B, output_size)."""
    B, T, D = x.shape
    B_pad = ((B + 7) // 8) * 8  # fill all 8 f32 sublanes of every vreg

    (wih1, whh1, b1, wih2, whh2, b2, wlin, blin) = params
    (h01, c01, h02, c02) = init_state

    # batch-first -> time-major, pad batch, flatten to (T*B_pad, D) so every
    # per-step row slice inside the kernel is a static, aligned sublane slice.
    x_tm = jnp.transpose(x.astype(jnp.float32), (1, 0, 2))
    x_tm = jnp.pad(x_tm, ((0, 0), (0, B_pad - B), (0, 0)))
    x2d = x_tm.reshape(T * B_pad, D)

    def pad_b(a):
        return jnp.pad(a.astype(jnp.float32), ((0, B_pad - B), (0, 0)))

    h01, c01, h02, c02 = pad_b(h01), pad_b(c01), pad_b(h02), pad_b(c02)

    # Pre-generated dropout mask; 1/(1-p)=2 scale folded into the mask values.
    mask = (jax.random.bernoulli(dropout_key, 0.5, (T * B_pad, HIDDEN1))
            .astype(jnp.float32) * 2.0)

    # Fuse lstm2's input & recurrent weight matrices into one stacked matrix.
    w2 = jnp.concatenate([wih2, whh2], axis=0)  # (128+32, 4*32)

    vmem = pl.BlockSpec(memory_space=pltpu.MemorySpace.VMEM)

    out_pad = pl.pallas_call(
        predictor_kernel,
        out_shape=jax.ShapeDtypeStruct((B_pad, output_size), jnp.float32),
        in_specs=[vmem] * 13,
        out_specs=vmem,
        scratch_shapes=[
            pltpu.VMEM((T * B_pad, 4 * HIDDEN1), jnp.float32),  # hoisted x-proj
        ],
        # Shapes here are tiny (well under the scoped-VMEM default); for long
        # sequences, tile x/mask over T with a grid instead (esp. on v7x).
    )(x2d, wih1, b1, whh1, w2, b2, wlin, blin, h01, c01, h02, c02, mask)

    return out_pad[:B]


def init_params(key, input_size, output_size=1):
    """Deterministic parameter init (PyTorch-style uniform(-1/sqrt(H), 1/sqrt(H)))."""
    ks = jax.random.split(key, 10)

    def u(k, shape, fan):
        bound = 1.0 / jnp.sqrt(fan)
        return jax.random.uniform(k, shape, jnp.float32, -bound, bound)

    # LSTM1: input_size -> 128   (weights stored transposed: (in, 4H))
    wih1 = u(ks[0], (input_size, 4 * HIDDEN1), HIDDEN1)
    whh1 = u(ks[1], (HIDDEN1, 4 * HIDDEN1), HIDDEN1)
    b1 = (u(ks[2], (1, 4 * HIDDEN1), HIDDEN1)
          + u(ks[3], (1, 4 * HIDDEN1), HIDDEN1))          # b_ih + b_hh
    # LSTM2: 128 -> 32
    wih2 = u(ks[4], (HIDDEN1, 4 * HIDDEN2), HIDDEN2)
    whh2 = u(ks[5], (HIDDEN2, 4 * HIDDEN2), HIDDEN2)
    b2 = (u(ks[6], (1, 4 * HIDDEN2), HIDDEN2)
          + u(ks[7], (1, 4 * HIDDEN2), HIDDEN2))
    # Linear: 32 -> output_size
    wlin = u(ks[8], (HIDDEN2, output_size), HIDDEN2)
    blin = u(ks[9], (1, output_size), HIDDEN2)
    return (wih1, whh1, b1, wih2, whh2, b2, wlin, blin)


def init_hidden(key, batch_size):
    """Mirrors init_hidden(): (h, c) share the same random tensor z."""
    k1, k2 = jax.random.split(key)
    z1 = jax.random.normal(k1, (batch_size, HIDDEN1), jnp.float32)
    z2 = jax.random.normal(k2, (batch_size, HIDDEN2), jnp.float32)
    # (h0_lstm1, c0_lstm1, h0_lstm2, c0_lstm2); (z, z) pattern as in the module.
    return (z1, z1, z2, z2)


if __name__ == "__main__":
    # Small shapes consistent with the module: batch=2, seq=8, input_size=16.
    B, T, D, OUT = 2, 8, 16, 1

    key = jax.random.PRNGKey(0)
    k_x, k_p, k_h, k_d = jax.random.split(key, 4)

    x = jax.random.normal(k_x, (B, T, D), jnp.float32)
    params = init_params(k_p, input_size=D, output_size=OUT)
    state = init_hidden(k_h, batch_size=B)

    out = predictor_forward(x, params, state, k_d, output_size=OUT)
    out = jax.block_until_ready(out)

    assert out.shape == (B, OUT), out.shape
    assert bool(jnp.all(jnp.isfinite(out)))
    print("KERNEL_OK")
</pallas_src>

<mosaic_0001>
module attributes {stable_mosaic.version = 11 : i64} {
  func.func @predictor_kernel(%arg0: memref<64x16xf32, #tpu.memory_space<vmem>>, %arg1: memref<16x512xf32, #tpu.memory_space<vmem>>, %arg2: memref<1x512xf32, #tpu.memory_space<vmem>>, %arg3: memref<128x512xf32, #tpu.memory_space<vmem>>, %arg4: memref<160x128xf32, #tpu.memory_space<vmem>>, %arg5: memref<1x128xf32, #tpu.memory_space<vmem>>, %arg6: memref<32x1xf32, #tpu.memory_space<vmem>>, %arg7: memref<1x1xf32, #tpu.memory_space<vmem>>, %arg8: memref<8x128xf32, #tpu.memory_space<vmem>>, %arg9: memref<8x128xf32, #tpu.memory_space<vmem>>, %arg10: memref<8x32xf32, #tpu.memory_space<vmem>>, %arg11: memref<8x32xf32, #tpu.memory_space<vmem>>, %arg12: memref<64x128xf32, #tpu.memory_space<vmem>>, %arg13: memref<8x1xf32, #tpu.memory_space<vmem>>, %arg14: memref<64x512xf32, #tpu.memory_space<vmem>>) attributes {dimension_semantics = [], scalar_prefetch = 0 : i64, scratch_operands = 1 : i64, tpu.core_type = #tpu.core_type<tc>} {
    %c0 = arith.constant 0 : index
    %c0_0 = arith.constant 0 : index
    %0 = vector.load %arg0[%c0, %c0_0] : memref<64x16xf32, #tpu.memory_space<vmem>>, vector<64x16xf32>
    %c0_1 = arith.constant 0 : index
    %c0_2 = arith.constant 0 : index
    %1 = vector.load %arg1[%c0_1, %c0_2] : memref<16x512xf32, #tpu.memory_space<vmem>>, vector<16x512xf32>
    %cst = arith.constant dense<0.000000e+00> : vector<64x512xf32>
    %2 = tpu.matmul %0, %1, %cst {dimension_numbers = #tpu.dot_dimension_numbers<[1], [0], [0], [1], [0, 0, 1, 1], [], []>} : vector<64x16xf32>, vector<16x512xf32>, vector<64x512xf32> -> vector<64x512xf32>
    %c0_3 = arith.constant 0 : index
    %c0_4 = arith.constant 0 : index
    %3 = vector.load %arg2[%c0_3, %c0_4] : memref<1x512xf32, #tpu.memory_space<vmem>>, vector<1x512xf32>
    %4 = vector.broadcast %3 : vector<1x512xf32> to vector<64x512xf32>
    %5 = arith.addf %2, %4 : vector<64x512xf32>
    %c0_5 = arith.constant 0 : index
    %c0_6 = arith.constant 0 : index
    %6 = vector.load %arg14[%c0_5, %c0_6] : memref<64x512xf32, #tpu.memory_space<vmem>>, vector<64x512xf32>
    tpu.vector_store %arg14[%c0_5, %c0_6], %5 {strides = array<i32>} : memref<64x512xf32, #tpu.memory_space<vmem>>, vector<64x512xf32>,
    %c0_7 = arith.constant 0 : index
    %c0_8 = arith.constant 0 : index
    %7 = vector.load %arg3[%c0_7, %c0_8] : memref<128x512xf32, #tpu.memory_space<vmem>>, vector<128x512xf32>
    %c0_9 = arith.constant 0 : index
    %c0_10 = arith.constant 0 : index
    %8 = vector.load %arg4[%c0_9, %c0_10] : memref<160x128xf32, #tpu.memory_space<vmem>>, vector<160x128xf32>
    %c0_11 = arith.constant 0 : index
    %c0_12 = arith.constant 0 : index
    %9 = vector.load %arg5[%c0_11, %c0_12] : memref<1x128xf32, #tpu.memory_space<vmem>>, vector<1x128xf32>
    %c0_13 = arith.constant 0 : index
    %c0_14 = arith.constant 0 : index
    %10 = vector.load %arg8[%c0_13, %c0_14] : memref<8x128xf32, #tpu.memory_space<vmem>>, vector<8x128xf32>
    %c0_15 = arith.constant 0 : index
    %c0_16 = arith.constant 0 : index
    %11 = vector.load %arg9[%c0_15, %c0_16] : memref<8x128xf32, #tpu.memory_space<vmem>>, vector<8x128xf32>
    %c0_17 = arith.constant 0 : index
    %c0_18 = arith.constant 0 : index
    %12 = vector.load %arg10[%c0_17, %c0_18] : memref<8x32xf32, #tpu.memory_space<vmem>>, vector<8x32xf32>
    %c0_19 = arith.constant 0 : index
    %c0_20 = arith.constant 0 : index
    %13 = vector.load %arg11[%c0_19, %c0_20] : memref<8x32xf32, #tpu.memory_space<vmem>>, vector<8x32xf32>
    %cst_21 = arith.constant dense<0.000000e+00> : vector<8x512xf32>
    %14 = tpu.matmul %10, %7, %cst_21 {dimension_numbers = #tpu.dot_dimension_numbers<[1], [0], [0], [1], [0, 0, 1, 1], [], []>} : vector<8x128xf32>, vector<128x512xf32>, vector<8x512xf32> -> vector<8x512xf32>
    %c0_22 = arith.constant 0 : index
    %c0_23 = arith.constant 0 : index
    %15 = vector.load %arg14[%c0_22, %c0_23] : memref<64x512xf32, #tpu.memory_space<vmem>>, vector<8x512xf32>
    %16 = arith.addf %14, %15 : vector<8x512xf32>
    %17 = vector.extract_strided_slice %16 {offsets = [0, 0], sizes = [8, 128], strides = [1, 1]} : vector<8x512xf32> to vector<8x128xf32>
    %cst_24 = arith.constant 5.000000e-01 : f32
    %18 = vector.broadcast %cst_24 : f32 to vector<8x128xf32>
    %19 = arith.mulf %18, %17 : vector<8x128xf32>
    %20 = math.tanh %19 : vector<8x128xf32>
    %cst_25 = arith.constant 5.000000e-01 : f32
    %21 = vector.broadcast %cst_25 : f32 to vector<8x128xf32>
    %22 = arith.mulf %21, %20 : vector<8x128xf32>
    %cst_26 = arith.constant 5.000000e-01 : f32
    %23 = vector.broadcast %cst_26 : f32 to vector<8x128xf32>
    %24 = arith.addf %22, %23 : vector<8x128xf32>
    %25 = vector.extract_strided_slice %16 {offsets = [0, 128], sizes = [8, 128], strides = [1, 1]} : vector<8x512xf32> to vector<8x128xf32>
    %cst_27 = arith.constant 5.000000e-01 : f32
    %26 = vector.broadcast %cst_27 : f32 to vector<8x128xf32>
    %27 = arith.mulf %26, %25 : vector<8x128xf32>
    %28 = math.tanh %27 : vector<8x128xf32>
    %cst_28 = arith.constant 5.000000e-01 : f32
    %29 = vector.broadcast %cst_28 : f32 to vector<8x128xf32>
    %30 = arith.mulf %29, %28 : vector<8x128xf32>
    %cst_29 = arith.constant 5.000000e-01 : f32
    %31 = vector.broadcast %cst_29 : f32 to vector<8x128xf32>
    %32 = arith.addf %30, %31 : vector<8x128xf32>
    %33 = vector.extract_strided_slice %16 {offsets = [0, 256], sizes = [8, 128], strides = [1, 1]} : vector<8x512xf32> to vector<8x128xf32>
    %34 = math.tanh %33 : vector<8x128xf32>
    %35 = vector.extract_strided_slice %16 {offsets = [0, 384], sizes = [8, 128], strides = [1, 1]} : vector<8x512xf32> to vector<8x128xf32>
    %cst_30 = arith.constant 5.000000e-01 : f32
    %36 = vector.broadcast %cst_30 : f32 to vector<8x128xf32>
    %37 = arith.mulf %36, %35 : vector<8x128xf32>
    %38 = math.tanh %37 : vector<8x128xf32>
    %cst_31 = arith.constant 5.000000e-01 : f32
    %39 = vector.broadcast %cst_31 : f32 to vector<8x128xf32>
    %40 = arith.mulf %39, %38 : vector<8x128xf32>
    %cst_32 = arith.constant 5.000000e-01 : f32
    %41 = vector.broadcast %cst_32 : f32 to vector<8x128xf32>
    %42 = arith.addf %40, %41 : vector<8x128xf32>
    %43 = arith.mulf %32, %11 : vector<8x128xf32>
    %44 = arith.mulf %24, %34 : vector<8x128xf32>
    %45 = arith.addf %43, %44 : vector<8x128xf32>
    %46 = math.tanh %45 : vector<8x128xf32>
    %47 = arith.mulf %42, %46 : vector<8x128xf32>
    %c0_33 = arith.constant 0 : index
    %c0_34 = arith.constant 0 : index
    %48 = vector.load %arg12[%c0_33, %c0_34] : memref<64x128xf32, #tpu.memory_space<vmem>>, vector<8x128xf32>
    %49 = arith.mulf %47, %48 : vector<8x128xf32>
    %50 = tpu.concatenate %49, %12 in 1 : vector<8x128xf32>, vector<8x32xf32> -> vector<8x160xf32>
    %cst_35 = arith.constant dense<0.000000e+00> : vector<8x128xf32>
    %51 = tpu.matmul %50, %8, %cst_35 {dimension_numbers = #tpu.dot_dimension_numbers<[1], [0], [0], [1], [0, 0, 1, 1], [], []>} : vector<8x160xf32>, vector<160x128xf32>, vector<8x128xf32> -> vector<8x128xf32>
    %52 = vector.broadcast %9 : vector<1x128xf32> to vector<8x128xf32>
    %53 = arith.addf %51, %52 : vector<8x128xf32>
    %54 = vector.extract_strided_slice %53 {offsets = [0, 0], sizes = [8, 32], strides = [1, 1]} : vector<8x128xf32> to vector<8x32xf32>
    %cst_36 = arith.constant 5.000000e-01 : f32
    %55 = vector.broadcast %cst_36 : f32 to vector<8x32xf32>
    %56 = arith.mulf %55, %54 : vector<8x32xf32>
    %57 = math.tanh %56 : vector<8x32xf32>
    %cst_37 = arith.constant 5.000000e-01 : f32
    %58 = vector.broadcast %cst_37 : f32 to vector<8x32xf32>
    %59 = arith.mulf %58, %57 : vector<8x32xf32>
    %cst_38 = arith.constant 5.000000e-01 : f32
    %60 = vector.broadcast %cst_38 : f32 to vector<8x32xf32>
    %61 = arith.addf %59, %60 : vector<8x32xf32>
    %62 = vector.extract_strided_slice %53 {offsets = [0, 32], sizes = [8, 32], strides = [1, 1]} : vector<8x128xf32> to vector<8x32xf32>
    %cst_39 = arith.constant 5.000000e-01 : f32
    %63 = vector.broadcast %cst_39 : f32 to vector<8x32xf32>
    %64 = arith.mulf %63, %62 : vector<8x32xf32>
    %65 = math.tanh %64 : vector<8x32xf32>
    %cst_40 = arith.constant 5.000000e-01 : f32
    %66 = vector.broadcast %cst_40 : f32 to vector<8x32xf32>
    %67 = arith.mulf %66, %65 : vector<8x32xf32>
    %cst_41 = arith.constant 5.000000e-01 : f32
    %68 = vector.broadcast %cst_41 : f32 to vector<8x32xf32>
    %69 = arith.addf %67, %68 : vector<8x32xf32>
    %70 = vector.extract_strided_slice %53 {offsets = [0, 64], sizes = [8, 32], strides = [1, 1]} : vector<8x128xf32> to vector<8x32xf32>
    %71 = math.tanh %70 : vector<8x32xf32>
    %72 = vector.extract_strided_slice %53 {offsets = [0, 96], sizes = [8, 32], strides = [1, 1]} : vector<8x128xf32> to vector<8x32xf32>
    %cst_42 = arith.constant 5.000000e-01 : f32
    %73 = vector.broadcast %cst_42 : f32 to vector<8x32xf32>
    %74 = arith.mulf %73, %72 : vector<8x32xf32>
    %75 = math.tanh %74 : vector<8x32xf32>
    %cst_43 = arith.constant 5.000000e-01 : f32
    %76 = vector.broadcast %cst_43 : f32 to vector<8x32xf32>
    %77 = arith.mulf %76, %75 : vector<8x32xf32>
    %cst_44 = arith.constant 5.000000e-01 : f32
    %78 = vector.broadcast %cst_44 : f32 to vector<8x32xf32>
    %79 = arith.addf %77, %78 : vector<8x32xf32>
    %80 = arith.mulf %69, %13 : vector<8x32xf32>
    %81 = arith.mulf %61, %71 : vector<8x32xf32>
    %82 = arith.addf %80, %81 : vector<8x32xf32>
    %83 = math.tanh %82 : vector<8x32xf32>
    %84 = arith.mulf %79, %83 : vector<8x32xf32>
    %cst_45 = arith.constant dense<0.000000e+00> : vector<8x512xf32>
    %85 = tpu.matmul %47, %7, %cst_45 {dimension_numbers = #tpu.dot_dimension_numbers<[1], [0], [0], [1], [0, 0, 1, 1], [], []>} : vector<8x128xf32>, vector<128x512xf32>, vector<8x512xf32> -> vector<8x512xf32>
    %c8 = arith.constant 8 : index
    %c0_46 = arith.constant 0 : index
    %86 = vector.load %arg14[%c8, %c0_46] : memref<64x512xf32, #tpu.memory_space<vmem>>, vector<8x512xf32>
    %87 = arith.addf %85, %86 : vector<8x512xf32>
    %88 = vector.extract_strided_slice %87 {offsets = [0, 0], sizes = [8, 128], strides = [1, 1]} : vector<8x512xf32> to vector<8x128xf32>
    %cst_47 = arith.constant 5.000000e-01 : f32
    %89 = vector.broadcast %cst_47 : f32 to vector<8x128xf32>
    %90 = arith.mulf %89, %88 : vector<8x128xf32>
    %91 = math.tanh %90 : vector<8x128xf32>
    %cst_48 = arith.constant 5.000000e-01 : f32
    %92 = vector.broadcast %cst_48 : f32 to vector<8x128xf32>
    %93 = arith.mulf %92, %91 : vector<8x128xf32>
    %cst_49 = arith.constant 5.000000e-01 : f32
    %94 = vector.broadcast %cst_49 : f32 to vector<8x128xf32>
    %95 = arith.addf %93, %94 : vector<8x128xf32>
    %96 = vector.extract_strided_slice %87 {offsets = [0, 128], sizes = [8, 128], strides = [1, 1]} : vector<8x512xf32> to vector<8x128xf32>
    %cst_50 = arith.constant 5.000000e-01 : f32
    %97 = vector.broadcast %cst_50 : f32 to vector<8x128xf32>
    %98 = arith.mulf %97, %96 : vector<8x128xf32>
    %99 = math.tanh %98 : vector<8x128xf32>
    %cst_51 = arith.constant 5.000000e-01 : f32
    %100 = vector.broadcast %cst_51 : f32 to vector<8x128xf32>
    %101 = arith.mulf %100, %99 : vector<8x128xf32>
    %cst_52 = arith.constant 5.000000e-01 : f32
    %102 = vector.broadcast %cst_52 : f32 to vector<8x128xf32>
    %103 = arith.addf %101, %102 : vector<8x128xf32>
    %104 = vector.extract_strided_slice %87 {offsets = [0, 256], sizes = [8, 128], strides = [1, 1]} : vector<8x512xf32> to vector<8x128xf32>
    %105 = math.tanh %104 : vector<8x128xf32>
    %106 = vector.extract_strided_slice %87 {offsets = [0, 384], sizes = [8, 128], strides = [1, 1]} : vector<8x512xf32> to vector<8x128xf32>
    %cst_53 = arith.constant 5.000000e-01 : f32
    %107 = vector.broadcast %cst_53 : f32 to vector<8x128xf32>
    %108 = arith.mulf %107, %106 : vector<8x128xf32>
    %109 = math.tanh %108 : vector<8x128xf32>
    %cst_54 = arith.constant 5.000000e-01 : f32
    %110 = vector.broadcast %cst_54 : f32 to vector<8x128xf32>
    %111 = arith.mulf %110, %109 : vector<8x128xf32>
    %cst_55 = arith.constant 5.000000e-01 : f32
    %112 = vector.broadcast %cst_55 : f32 to vector<8x128xf32>
    %113 = arith.addf %111, %112 : vector<8x128xf32>
    %114 = arith.mulf %103, %45 : vector<8x128xf32>
    %115 = arith.mulf %95, %105 : vector<8x128xf32>
    %116 = arith.addf %114, %115 : vector<8x128xf32>
    %117 = math.tanh %116 : vector<8x128xf32>
    %118 = arith.mulf %113, %117 : vector<8x128xf32>
    %c8_56 = arith.constant 8 : index
    %c0_57 = arith.constant 0 : index
    %119 = vector.load %arg12[%c8_56, %c0_57] : memref<64x128xf32, #tpu.memory_space<vmem>>, vector<8x128xf32>
    %120 = arith.mulf %118, %119 : vector<8x128xf32>
    %121 = tpu.concatenate %120, %84 in 1 : vector<8x128xf32>, vector<8x32xf32> -> vector<8x160xf32>
    %cst_58 = arith.constant dense<0.000000e+00> : vector<8x128xf32>
    %122 = tpu.matmul %121, %8, %cst_58 {dimension_numbers = #tpu.dot_dimension_numbers<[1], [0], [0], [1], [0, 0, 1, 1], [], []>} : vector<8x160xf32>, vector<160x128xf32>, vector<8x128xf32> -> vector<8x128xf32>
    %123 = vector.broadcast %9 : vector<1x128xf32> to vector<8x128xf32>
    %124 = arith.addf %122, %123 : vector<8x128xf32>
    %125 = vector.extract_strided_slice %124 {offsets = [0, 0], sizes = [8, 32], strides = [1, 1]} : vector<8x128xf32> to vector<8x32xf32>
    %cst_59 = arith.constant 5.000000e-01 : f32
    %126 = vector.broadcast %cst_59 : f32 to vector<8x32xf32>
    %127 = arith.mulf %126, %125 : vector<8x32xf32>
    %128 = math.tanh %127 : vector<8x32xf32>
    %cst_60 = arith.constant 5.000000e-01 : f32
    %129 = vector.broadcast %cst_60 : f32 to vector<8x32xf32>
    %130 = arith.mulf %129, %128 : vector<8x32xf32>
    %cst_61 = arith.constant 5.000000e-01 : f32
    %131 = vector.broadcast %cst_61 : f32 to vector<8x32xf32>
    %132 = arith.addf %130, %131 : vector<8x32xf32>
    %133 = vector.extract_strided_slice %124 {offsets = [0, 32], sizes = [8, 32], strides = [1, 1]} : vector<8x128xf32> to vector<8x32xf32>
    %cst_62 = arith.constant 5.000000e-01 : f32
    %134 = vector.broadcast %cst_62 : f32 to vector<8x32xf32>
    %135 = arith.mulf %134, %133 : vector<8x32xf32>
    %136 = math.tanh %135 : vector<8x32xf32>
    %cst_63 = arith.constant 5.000000e-01 : f32
    %137 = vector.broadcast %cst_63 : f32 to vector<8x32xf32>
    %138 = arith.mulf %137, %136 : vector<8x32xf32>
    %cst_64 = arith.constant 5.000000e-01 : f32
    %139 = vector.broadcast %cst_64 : f32 to vector<8x32xf32>
    %140 = arith.addf %138, %139 : vector<8x32xf32>
    %141 = vector.extract_strided_slice %124 {offsets = [0, 64], sizes = [8, 32], strides = [1, 1]} : vector<8x128xf32> to vector<8x32xf32>
    %142 = math.tanh %141 : vector<8x32xf32>
    %143 = vector.extract_strided_slice %124 {offsets = [0, 96], sizes = [8, 32], strides = [1, 1]} : vector<8x128xf32> to vector<8x32xf32>
    %cst_65 = arith.constant 5.000000e-01 : f32
    %144 = vector.broadcast %cst_65 : f32 to vector<8x32xf32>
    %145 = arith.mulf %144, %143 : vector<8x32xf32>
    %146 = math.tanh %145 : vector<8x32xf32>
    %cst_66 = arith.constant 5.000000e-01 : f32
    %147 = vector.broadcast %cst_66 : f32 to vector<8x32xf32>
    %148 = arith.mulf %147, %146 : vector<8x32xf32>
    %cst_67 = arith.constant 5.000000e-01 : f32
    %149 = vector.broadcast %cst_67 : f32 to vector<8x32xf32>
    %150 = arith.addf %148, %149 : vector<8x32xf32>
    %151 = arith.mulf %140, %82 : vector<8x32xf32>
    %152 = arith.mulf %132, %142 : vector<8x32xf32>
    %153 = arith.addf %151, %152 : vector<8x32xf32>
    %154 = math.tanh %153 : vector<8x32xf32>
    %155 = arith.mulf %150, %154 : vector<8x32xf32>
    %cst_68 = arith.constant dense<0.000000e+00> : vector<8x512xf32>
    %156 = tpu.matmul %118, %7, %cst_68 {dimension_numbers = #tpu.dot_dimension_numbers<[1], [0], [0], [1], [0, 0, 1, 1], [], []>} : vector<8x128xf32>, vector<128x512xf32>, vector<8x512xf32> -> vector<8x512xf32>
    %c16 = arith.constant 16 : index
    %c0_69 = arith.constant 0 : index
    %157 = vector.load %arg14[%c16, %c0_69] : memref<64x512xf32, #tpu.memory_space<vmem>>, vector<8x512xf32>
    %158 = arith.addf %156, %157 : vector<8x512xf32>
    %159 = vector.extract_strided_slice %158 {offsets = [0, 0], sizes = [8, 128], strides = [1, 1]} : vector<8x512xf32> to vector<8x128xf32>
    %cst_70 = arith.constant 5.000000e-01 : f32
    %160 = vector.broadcast %cst_70 : f32 to vector<8x128xf32>
    %161 = arith.mulf %160, %159 : vector<8x128xf32>
    %162 = math.tanh %161 : vector<8x128xf32>
    %cst_71 = arith.constant 5.000000e-01 : f32
    %163 = vector.broadcast %cst_71 : f32 to vector<8x128xf32>
    %164 = arith.mulf %163, %162 : vector<8x128xf32>
    %cst_72 = arith.constant 5.000000e-01 : f32
    %165 = vector.broadcast %cst_72 : f32 to vector<8x128xf32>
    %166 = arith.addf %164, %165 : vector<8x128xf32>
    %167 = vector.extract_strided_slice %158 {offsets = [0, 128], sizes = [8, 128], strides = [1, 1]} : vector<8x512xf32> to vector<8x128xf32>
    %cst_73 = arith.constant 5.000000e-01 : f32
    %168 = vector.broadcast %cst_73 : f32 to vector<8x128xf32>
    %169 = arith.mulf %168, %167 : vector<8x128xf32>
    %170 = math.tanh %169 : vector<8x128xf32>
    %cst_74 = arith.constant 5.000000e-01 : f32
    %171 = vector.broadcast %cst_74 : f32 to vector<8x128xf32>
    %172 = arith.mulf %171, %170 : vector<8x128xf32>
    %cst_75 = arith.constant 5.000000e-01 : f32
    %173 = vector.broadcast %cst_75 : f32 to vector<8x128xf32>
    %174 = arith.addf %172, %173 : vector<8x128xf32>
    %175 = vector.extract_strided_slice %158 {offsets = [0, 256], sizes = [8, 128], strides = [1, 1]} : vector<8x512xf32> to vector<8x128xf32>
    %176 = math.tanh %175 : vector<8x128xf32>
    %177 = vector.extract_strided_slice %158 {offsets = [0, 384], sizes = [8, 128], strides = [1, 1]} : vector<8x512xf32> to vector<8x128xf32>
    %cst_76 = arith.constant 5.000000e-01 : f32
    %178 = vector.broadcast %cst_76 : f32 to vector<8x128xf32>
    %179 = arith.mulf %178, %177 : vector<8x128xf32>
    %180 = math.tanh %179 : vector<8x128xf32>
    %cst_77 = arith.constant 5.000000e-01 : f32
    %181 = vector.broadcast %cst_77 : f32 to vector<8x128xf32>
    %182 = arith.mulf %181, %180 : vector<8x128xf32>
    %cst_78 = arith.constant 5.000000e-01 : f32
    %183 = vector.broadcast %cst_78 : f32 to vector<8x128xf32>
    %184 = arith.addf %182, %183 : vector<8x128xf32>
    %185 = arith.mulf %174, %116 : vector<8x128xf32>
    %186 = arith.mulf %166, %176 : vector<8x128xf32>
    %187 = arith.addf %185, %186 : vector<8x128xf32>
    %188 = math.tanh %187 : vector<8x128xf32>
    %189 = arith.mulf %184, %188 : vector<8x128xf32>
    %c16_79 = arith.constant 16 : index
    %c0_80 = arith.constant 0 : index
    %190 = vector.load %arg12[%c16_79, %c0_80] : memref<64x128xf32, #tpu.memory_space<vmem>>, vector<8x128xf32>
    %191 = arith.mulf %189, %190 : vector<8x128xf32>
    %192 = tpu.concatenate %191, %155 in 1 : vector<8x128xf32>, vector<8x32xf32> -> vector<8x160xf32>
    %cst_81 = arith.constant dense<0.000000e+00> : vector<8x128xf32>
    %193 = tpu.matmul %192, %8, %cst_81 {dimension_numbers = #tpu.dot_dimension_numbers<[1], [0], [0], [1], [0, 0, 1, 1], [], []>} : vector<8x160xf32>, vector<160x128xf32>, vector<8x128xf32> -> vector<8x128xf32>
    %194 = vector.broadcast %9 : vector<1x128xf32> to vector<8x128xf32>
    %195 = arith.addf %193, %194 : vector<8x128xf32>
    %196 = vector.extract_strided_slice %195 {offsets = [0, 0], sizes = [8, 32], strides = [1, 1]} : vector<8x128xf32> to vector<8x32xf32>
    %cst_82 = arith.constant 5.000000e-01 : f32
    %197 = vector.broadcast %cst_82 : f32 to vector<8x32xf32>
    %198 = arith.mulf %197, %196 : vector<8x32xf32>
    %199 = math.tanh %198 : vector<8x32xf32>
    %cst_83 = arith.constant 5.000000e-01 : f32
    %200 = vector.broadcast %cst_83 : f32 to vector<8x32xf32>
    %201 = arith.mulf %200, %199 : vector<8x32xf32>
    %cst_84 = arith.constant 5.000000e-01 : f32
    %202 = vector.broadcast %cst_84 : f32 to vector<8x32xf32>
    %203 = arith.addf %201, %202 : vector<8x32xf32>
    %204 = vector.extract_strided_slice %195 {offsets = [0, 32], sizes = [8, 32], strides = [1, 1]} : vector<8x128xf32> to vector<8x32xf32>
    %cst_85 = arith.constant 5.000000e-01 : f32
    %205 = vector.broadcast %cst_85 : f32 to vector<8x32xf32>
    %206 = arith.mulf %205, %204 : vector<8x32xf32>
    %207 = math.tanh %206 : vector<8x32xf32>
    %cst_86 = arith.constant 5.000000e-01 : f32
    %208 = vector.broadcast %cst_86 : f32 to vector<8x32xf32>
    %209 = arith.mulf %208, %207 : vector<8x32xf32>
    %cst_87 = arith.constant 5.000000e-01 : f32
    %210 = vector.broadcast %cst_87 : f32 to vector<8x32xf32>
    %211 = arith.addf %209, %210 : vector<8x32xf32>
    %212 = vector.extract_strided_slice %195 {offsets = [0, 64], sizes = [8, 32], strides = [1, 1]} : vector<8x128xf32> to vector<8x32xf32>
    %213 = math.tanh %212 : vector<8x32xf32>
    %214 = vector.extract_strided_slice %195 {offsets = [0, 96], sizes = [8, 32], strides = [1, 1]} : vector<8x128xf32> to vector<8x32xf32>
    %cst_88 = arith.constant 5.000000e-01 : f32
    %215 = vector.broadcast %cst_88 : f32 to vector<8x32xf32>
    %216 = arith.mulf %215, %214 : vector<8x32xf32>
    %217 = math.tanh %216 : vector<8x32xf32>
    %cst_89 = arith.constant 5.000000e-01 : f32
    %218 = vector.broadcast %cst_89 : f32 to vector<8x32xf32>
    %219 = arith.mulf %218, %217 : vector<8x32xf32>
    %cst_90 = arith.constant 5.000000e-01 : f32
    %220 = vector.broadcast %cst_90 : f32 to vector<8x32xf32>
    %221 = arith.addf %219, %220 : vector<8x32xf32>
    %222 = arith.mulf %211, %153 : vector<8x32xf32>
    %223 = arith.mulf %203, %213 : vector<8x32xf32>
    %224 = arith.addf %222, %223 : vector<8x32xf32>
    %225 = math.tanh %224 : vector<8x32xf32>
    %226 = arith.mulf %221, %225 : vector<8x32xf32>
    %cst_91 = arith.constant dense<0.000000e+00> : vector<8x512xf32>
    %227 = tpu.matmul %189, %7, %cst_91 {dimension_numbers = #tpu.dot_dimension_numbers<[1], [0], [0], [1], [0, 0, 1, 1], [], []>} : vector<8x128xf32>, vector<128x512xf32>, vector<8x512xf32> -> vector<8x512xf32>
    %c24 = arith.constant 24 : index
    %c0_92 = arith.constant 0 : index
    %228 = vector.load %arg14[%c24, %c0_92] : memref<64x512xf32, #tpu.memory_space<vmem>>, vector<8x512xf32>
    %229 = arith.addf %227, %228 : vector<8x512xf32>
    %230 = vector.extract_strided_slice %229 {offsets = [0, 0], sizes = [8, 128], strides = [1, 1]} : vector<8x512xf32> to vector<8x128xf32>
    %cst_93 = arith.constant 5.000000e-01 : f32
    %231 = vector.broadcast %cst_93 : f32 to vector<8x128xf32>
    %232 = arith.mulf %231, %230 : vector<8x128xf32>
    %233 = math.tanh %232 : vector<8x128xf32>
    %cst_94 = arith.constant 5.000000e-01 : f32
    %234 = vector.broadcast %cst_94 : f32 to vector<8x128xf32>
    %235 = arith.mulf %234, %233 : vector<8x128xf32>
    %cst_95 = arith.constant 5.000000e-01 : f32
    %236 = vector.broadcast %cst_95 : f32 to vector<8x128xf32>
    %237 = arith.addf %235, %236 : vector<8x128xf32>
    %238 = vector.extract_strided_slice %229 {offsets = [0, 128], sizes = [8, 128], strides = [1, 1]} : vector<8x512xf32> to vector<8x128xf32>
    %cst_96 = arith.constant 5.000000e-01 : f32
    %239 = vector.broadcast %cst_96 : f32 to vector<8x128xf32>
    %240 = arith.mulf %239, %238 : vector<8x128xf32>
    %241 = math.tanh %240 : vector<8x128xf32>
    %cst_97 = arith.constant 5.000000e-01 : f32
    %242 = vector.broadcast %cst_97 : f32 to vector<8x128xf32>
    %243 = arith.mulf %242, %241 : vector<8x128xf32>
    %cst_98 = arith.constant 5.000000e-01 : f32
    %244 = vector.broadcast %cst_98 : f32 to vector<8x128xf32>
    %245 = arith.addf %243, %244 : vector<8x128xf32>
    %246 = vector.extract_strided_slice %229 {offsets = [0, 256], sizes = [8, 128], strides = [1, 1]} : vector<8x512xf32> to vector<8x128xf32>
    %247 = math.tanh %246 : vector<8x128xf32>
    %248 = vector.extract_strided_slice %229 {offsets = [0, 384], sizes = [8, 128], strides = [1, 1]} : vector<8x512xf32> to vector<8x128xf32>
    %cst_99 = arith.constant 5.000000e-01 : f32
    %249 = vector.broadcast %cst_99 : f32 to vector<8x128xf32>
    %250 = arith.mulf %249, %248 : vector<8x128xf32>
    %251 = math.tanh %250 : vector<8x128xf32>
    %cst_100 = arith.constant 5.000000e-01 : f32
    %252 = vector.broadcast %cst_100 : f32 to vector<8x128xf32>
    %253 = arith.mulf %252, %251 : vector<8x128xf32>
    %cst_101 = arith.constant 5.000000e-01 : f32
    %254 = vector.broadcast %cst_101 : f32 to vector<8x128xf32>
    %255 = arith.addf %253, %254 : vector<8x128xf32>
    %256 = arith.mulf %245, %187 : vector<8x128xf32>
    %257 = arith.mulf %237, %247 : vector<8x128xf32>
    %258 = arith.addf %256, %257 : vector<8x128xf32>
    %259 = math.tanh %258 : vector<8x128xf32>
    %260 = arith.mulf %255, %259 : vector<8x128xf32>
    %c24_102 = arith.constant 24 : index
    %c0_103 = arith.constant 0 : index
    %261 = vector.load %arg12[%c24_102, %c0_103] : memref<64x128xf32, #tpu.memory_space<vmem>>, vector<8x128xf32>
    %262 = arith.mulf %260, %261 : vector<8x128xf32>
    %263 = tpu.concatenate %262, %226 in 1 : vector<8x128xf32>, vector<8x32xf32> -> vector<8x160xf32>
    %cst_104 = arith.constant dense<0.000000e+00> : vector<8x128xf32>
    %264 = tpu.matmul %263, %8, %cst_104 {dimension_numbers = #tpu.dot_dimension_numbers<[1], [0], [0], [1], [0, 0, 1, 1], [], []>} : vector<8x160xf32>, vector<160x128xf32>, vector<8x128xf32> -> vector<8x128xf32>
    %265 = vector.broadcast %9 : vector<1x128xf32> to vector<8x128xf32>
    %266 = arith.addf %264, %265 : vector<8x128xf32>
    %267 = vector.extract_strided_slice %266 {offsets = [0, 0], sizes = [8, 32], strides = [1, 1]} : vector<8x128xf32> to vector<8x32xf32>
    %cst_105 = arith.constant 5.000000e-01 : f32
    %268 = vector.broadcast %cst_105 : f32 to vector<8x32xf32>
    %269 = arith.mulf %268, %267 : vector<8x32xf32>
    %270 = math.tanh %269 : vector<8x32xf32>
    %cst_106 = arith.constant 5.000000e-01 : f32
    %271 = vector.broadcast %cst_106 : f32 to vector<8x32xf32>
    %272 = arith.mulf %271, %270 : vector<8x32xf32>
    %cst_107 = arith.constant 5.000000e-01 : f32
    %273 = vector.broadcast %cst_107 : f32 to vector<8x32xf32>
    %274 = arith.addf %272, %273 : vector<8x32xf32>
    %275 = vector.extract_strided_slice %266 {offsets = [0, 32], sizes = [8, 32], strides = [1, 1]} : vector<8x128xf32> to vector<8x32xf32>
    %cst_108 = arith.constant 5.000000e-01 : f32
    %276 = vector.broadcast %cst_108 : f32 to vector<8x32xf32>
    %277 = arith.mulf %276, %275 : vector<8x32xf32>
    %278 = math.tanh %277 : vector<8x32xf32>
    %cst_109 = arith.constant 5.000000e-01 : f32
    %279 = vector.broadcast %cst_109 : f32 to vector<8x32xf32>
    %280 = arith.mulf %279, %278 : vector<8x32xf32>
    %cst_110 = arith.constant 5.000000e-01 : f32
    %281 = vector.broadcast %cst_110 : f32 to vector<8x32xf32>
    %282 = arith.addf %280, %281 : vector<8x32xf32>
    %283 = vector.extract_strided_slice %266 {offsets = [0, 64], sizes = [8, 32], strides = [1, 1]} : vector<8x128xf32> to vector<8x32xf32>
    %284 = math.tanh %283 : vector<8x32xf32>
    %285 = vector.extract_strided_slice %266 {offsets = [0, 96], sizes = [8, 32], strides = [1, 1]} : vector<8x128xf32> to vector<8x32xf32>
    %cst_111 = arith.constant 5.000000e-01 : f32
    %286 = vector.broadcast %cst_111 : f32 to vector<8x32xf32>
    %287 = arith.mulf %286, %285 : vector<8x32xf32>
    %288 = math.tanh %287 : vector<8x32xf32>
    %cst_112 = arith.constant 5.000000e-01 : f32
    %289 = vector.broadcast %cst_112 : f32 to vector<8x32xf32>
    %290 = arith.mulf %289, %288 : vector<8x32xf32>
    %cst_113 = arith.constant 5.000000e-01 : f32
    %291 = vector.broadcast %cst_113 : f32 to vector<8x32xf32>
    %292 = arith.addf %290, %291 : vector<8x32xf32>
    %293 = arith.mulf %282, %224 : vector<8x32xf32>
    %294 = arith.mulf %274, %284 : vector<8x32xf32>
    %295 = arith.addf %293, %294 : vector<8x32xf32>
    %296 = math.tanh %295 : vector<8x32xf32>
    %297 = arith.mulf %292, %296 : vector<8x32xf32>
    %cst_114 = arith.constant dense<0.000000e+00> : vector<8x512xf32>
    %298 = tpu.matmul %260, %7, %cst_114 {dimension_numbers = #tpu.dot_dimension_numbers<[1], [0], [0], [1], [0, 0, 1, 1], [], []>} : vector<8x128xf32>, vector<128x512xf32>, vector<8x512xf32> -> vector<8x512xf32>
    %c32 = arith.constant 32 : index
    %c0_115 = arith.constant 0 : index
    %299 = vector.load %arg14[%c32, %c0_115] : memref<64x512xf32, #tpu.memory_space<vmem>>, vector<8x512xf32>
    %300 = arith.addf %298, %299 : vector<8x512xf32>
    %301 = vector.extract_strided_slice %300 {offsets = [0, 0], sizes = [8, 128], strides = [1, 1]} : vector<8x512xf32> to vector<8x128xf32>
    %cst_116 = arith.constant 5.000000e-01 : f32
    %302 = vector.broadcast %cst_116 : f32 to vector<8x128xf32>
    %303 = arith.mulf %302, %301 : vector<8x128xf32>
    %304 = math.tanh %303 : vector<8x128xf32>
    %cst_117 = arith.constant 5.000000e-01 : f32
    %305 = vector.broadcast %cst_117 : f32 to vector<8x128xf32>
    %306 = arith.mulf %305, %304 : vector<8x128xf32>
    %cst_118 = arith.constant 5.000000e-01 : f32
    %307 = vector.broadcast %cst_118 : f32 to vector<8x128xf32>
    %308 = arith.addf %306, %307 : vector<8x128xf32>
    %309 = vector.extract_strided_slice %300 {offsets = [0, 128], sizes = [8, 128], strides = [1, 1]} : vector<8x512xf32> to vector<8x128xf32>
    %cst_119 = arith.constant 5.000000e-01 : f32
    %310 = vector.broadcast %cst_119 : f32 to vector<8x128xf32>
    %311 = arith.mulf %310, %309 : vector<8x128xf32>
    %312 = math.tanh %311 : vector<8x128xf32>
    %cst_120 = arith.constant 5.000000e-01 : f32
    %313 = vector.broadcast %cst_120 : f32 to vector<8x128xf32>
    %314 = arith.mulf %313, %312 : vector<8x128xf32>
    %cst_121 = arith.constant 5.000000e-01 : f32
    %315 = vector.broadcast %cst_121 : f32 to vector<8x128xf32>
    %316 = arith.addf %314, %315 : vector<8x128xf32>
    %317 = vector.extract_strided_slice %300 {offsets = [0, 256], sizes = [8, 128], strides = [1, 1]} : vector<8x512xf32> to vector<8x128xf32>
    %318 = math.tanh %317 : vector<8x128xf32>
    %319 = vector.extract_strided_slice %300 {offsets = [0, 384], sizes = [8, 128], strides = [1, 1]} : vector<8x512xf32> to vector<8x128xf32>
    %cst_122 = arith.constant 5.000000e-01 : f32
    %320 = vector.broadcast %cst_122 : f32 to vector<8x128xf32>
    %321 = arith.mulf %320, %319 : vector<8x128xf32>
    %322 = math.tanh %321 : vector<8x128xf32>
    %cst_123 = arith.constant 5.000000e-01 : f32
    %323 = vector.broadcast %cst_123 : f32 to vector<8x128xf32>
    %324 = arith.mulf %323, %322 : vector<8x128xf32>
    %cst_124 = arith.constant 5.000000e-01 : f32
    %325 = vector.broadcast %cst_124 : f32 to vector<8x128xf32>
    %326 = arith.addf %324, %325 : vector<8x128xf32>
    %327 = arith.mulf %316, %258 : vector<8x128xf32>
    %328 = arith.mulf %308, %318 : vector<8x128xf32>
    %329 = arith.addf %327, %328 : vector<8x128xf32>
    %330 = math.tanh %329 : vector<8x128xf32>
    %331 = arith.mulf %326, %330 : vector<8x128xf32>
    %c32_125 = arith.constant 32 : index
    %c0_126 = arith.constant 0 : index
    %332 = vector.load %arg12[%c32_125, %c0_126] : memref<64x128xf32, #tpu.memory_space<vmem>>, vector<8x128xf32>
    %333 = arith.mulf %331, %332 : vector<8x128xf32>
    %334 = tpu.concatenate %333, %297 in 1 : vector<8x128xf32>, vector<8x32xf32> -> vector<8x160xf32>
    %cst_127 = arith.constant dense<0.000000e+00> : vector<8x128xf32>
    %335 = tpu.matmul %334, %8, %cst_127 {dimension_numbers = #tpu.dot_dimension_numbers<[1], [0], [0], [1], [0, 0, 1, 1], [], []>} : vector<8x160xf32>, vector<160x128xf32>, vector<8x128xf32> -> vector<8x128xf32>
    %336 = vector.broadcast %9 : vector<1x128xf32> to vector<8x128xf32>
    %337 = arith.addf %335, %336 : vector<8x128xf32>
    %338 = vector.extract_strided_slice %337 {offsets = [0, 0], sizes = [8, 32], strides = [1, 1]} : vector<8x128xf32> to vector<8x32xf32>
    %cst_128 = arith.constant 5.000000e-01 : f32
    %339 = vector.broadcast %cst_128 : f32 to vector<8x32xf32>
    %340 = arith.mulf %339, %338 : vector<8x32xf32>
    %341 = math.tanh %340 : vector<8x32xf32>
    %cst_129 = arith.constant 5.000000e-01 : f32
    %342 = vector.broadcast %cst_129 : f32 to vector<8x32xf32>
    %343 = arith.mulf %342, %341 : vector<8x32xf32>
    %cst_130 = arith.constant 5.000000e-01 : f32
    %344 = vector.broadcast %cst_130 : f32 to vector<8x32xf32>
    %345 = arith.addf %343, %344 : vector<8x32xf32>
    %346 = vector.extract_strided_slice %337 {offsets = [0, 32], sizes = [8, 32], strides = [1, 1]} : vector<8x128xf32> to vector<8x32xf32>
    %cst_131 = arith.constant 5.000000e-01 : f32
    %347 = vector.broadcast %cst_131 : f32 to vector<8x32xf32>
    %348 = arith.mulf %347, %346 : vector<8x32xf32>
    %349 = math.tanh %348 : vector<8x32xf32>
    %cst_132 = arith.constant 5.000000e-01 : f32
    %350 = vector.broadcast %cst_132 : f32 to vector<8x32xf32>
    %351 = arith.mulf %350, %349 : vector<8x32xf32>
    %cst_133 = arith.constant 5.000000e-01 : f32
    %352 = vector.broadcast %cst_133 : f32 to vector<8x32xf32>
    %353 = arith.addf %351, %352 : vector<8x32xf32>
    %354 = vector.extract_strided_slice %337 {offsets = [0, 64], sizes = [8, 32], strides = [1, 1]} : vector<8x128xf32> to vector<8x32xf32>
    %355 = math.tanh %354 : vector<8x32xf32>
    %356 = vector.extract_strided_slice %337 {offsets = [0, 96], sizes = [8, 32], strides = [1, 1]} : vector<8x128xf32> to vector<8x32xf32>
    %cst_134 = arith.constant 5.000000e-01 : f32
    %357 = vector.broadcast %cst_134 : f32 to vector<8x32xf32>
    %358 = arith.mulf %357, %356 : vector<8x32xf32>
    %359 = math.tanh %358 : vector<8x32xf32>
    %cst_135 = arith.constant 5.000000e-01 : f32
    %360 = vector.broadcast %cst_135 : f32 to vector<8x32xf32>
    %361 = arith.mulf %360, %359 : vector<8x32xf32>
    %cst_136 = arith.constant 5.000000e-01 : f32
    %362 = vector.broadcast %cst_136 : f32 to vector<8x32xf32>
    %363 = arith.addf %361, %362 : vector<8x32xf32>
    %364 = arith.mulf %353, %295 : vector<8x32xf32>
    %365 = arith.mulf %345, %355 : vector<8x32xf32>
    %366 = arith.addf %364, %365 : vector<8x32xf32>
    %367 = math.tanh %366 : vector<8x32xf32>
    %368 = arith.mulf %363, %367 : vector<8x32xf32>
    %cst_137 = arith.constant dense<0.000000e+00> : vector<8x512xf32>
    %369 = tpu.matmul %331, %7, %cst_137 {dimension_numbers = #tpu.dot_dimension_numbers<[1], [0], [0], [1], [0, 0, 1, 1], [], []>} : vector<8x128xf32>, vector<128x512xf32>, vector<8x512xf32> -> vector<8x512xf32>
    %c40 = arith.constant 40 : index
    %c0_138 = arith.constant 0 : index
    %370 = vector.load %arg14[%c40, %c0_138] : memref<64x512xf32, #tpu.memory_space<vmem>>, vector<8x512xf32>
    %371 = arith.addf %369, %370 : vector<8x512xf32>
    %372 = vector.extract_strided_slice %371 {offsets = [0, 0], sizes = [8, 128], strides = [1, 1]} : vector<8x512xf32> to vector<8x128xf32>
    %cst_139 = arith.constant 5.000000e-01 : f32
    %373 = vector.broadcast %cst_139 : f32 to vector<8x128xf32>
    %374 = arith.mulf %373, %372 : vector<8x128xf32>
    %375 = math.tanh %374 : vector<8x128xf32>
    %cst_140 = arith.constant 5.000000e-01 : f32
    %376 = vector.broadcast %cst_140 : f32 to vector<8x128xf32>
    %377 = arith.mulf %376, %375 : vector<8x128xf32>
    %cst_141 = arith.constant 5.000000e-01 : f32
    %378 = vector.broadcast %cst_141 : f32 to vector<8x128xf32>
    %379 = arith.addf %377, %378 : vector<8x128xf32>
    %380 = vector.extract_strided_slice %371 {offsets = [0, 128], sizes = [8, 128], strides = [1, 1]} : vector<8x512xf32> to vector<8x128xf32>
    %cst_142 = arith.constant 5.000000e-01 : f32
    %381 = vector.broadcast %cst_142 : f32 to vector<8x128xf32>
    %382 = arith.mulf %381, %380 : vector<8x128xf32>
    %383 = math.tanh %382 : vector<8x128xf32>
    %cst_143 = arith.constant 5.000000e-01 : f32
    %384 = vector.broadcast %cst_143 : f32 to vector<8x128xf32>
    %385 = arith.mulf %384, %383 : vector<8x128xf32>
    %cst_144 = arith.constant 5.000000e-01 : f32
    %386 = vector.broadcast %cst_144 : f32 to vector<8x128xf32>
    %387 = arith.addf %385, %386 : vector<8x128xf32>
    %388 = vector.extract_strided_slice %371 {offsets = [0, 256], sizes = [8, 128], strides = [1, 1]} : vector<8x512xf32> to vector<8x128xf32>
    %389 = math.tanh %388 : vector<8x128xf32>
    %390 = vector.extract_strided_slice %371 {offsets = [0, 384], sizes = [8, 128], strides = [1, 1]} : vector<8x512xf32> to vector<8x128xf32>
    %cst_145 = arith.constant 5.000000e-01 : f32
    %391 = vector.broadcast %cst_145 : f32 to vector<8x128xf32>
    %392 = arith.mulf %391, %390 : vector<8x128xf32>
    %393 = math.tanh %392 : vector<8x128xf32>
    %cst_146 = arith.constant 5.000000e-01 : f32
    %394 = vector.broadcast %cst_146 : f32 to vector<8x128xf32>
    %395 = arith.mulf %394, %393 : vector<8x128xf32>
    %cst_147 = arith.constant 5.000000e-01 : f32
    %396 = vector.broadcast %cst_147 : f32 to vector<8x128xf32>
    %397 = arith.addf %395, %396 : vector<8x128xf32>
    %398 = arith.mulf %387, %329 : vector<8x128xf32>
    %399 = arith.mulf %379, %389 : vector<8x128xf32>
    %400 = arith.addf %398, %399 : vector<8x128xf32>
    %401 = math.tanh %400 : vector<8x128xf32>
    %402 = arith.mulf %397, %401 : vector<8x128xf32>
    %c40_148 = arith.constant 40 : index
    %c0_149 = arith.constant 0 : index
    %403 = vector.load %arg12[%c40_148, %c0_149] : memref<64x128xf32, #tpu.memory_space<vmem>>, vector<8x128xf32>
    %404 = arith.mulf %402, %403 : vector<8x128xf32>
    %405 = tpu.concatenate %404, %368 in 1 : vector<8x128xf32>, vector<8x32xf32> -> vector<8x160xf32>
    %cst_150 = arith.constant dense<0.000000e+00> : vector<8x128xf32>
    %406 = tpu.matmul %405, %8, %cst_150 {dimension_numbers = #tpu.dot_dimension_numbers<[1], [0], [0], [1], [0, 0, 1, 1], [], []>} : vector<8x160xf32>, vector<160x128xf32>, vector<8x128xf32> -> vector<8x128xf32>
    %407 = vector.broadcast %9 : vector<1x128xf32> to vector<8x128xf32>
    %408 = arith.addf %406, %407 : vector<8x128xf32>
    %409 = vector.extract_strided_slice %408 {offsets = [0, 0], sizes = [8, 32], strides = [1, 1]} : vector<8x128xf32> to vector<8x32xf32>
    %cst_151 = arith.constant 5.000000e-01 : f32
    %410 = vector.broadcast %cst_151 : f32 to vector<8x32xf32>
    %411 = arith.mulf %410, %409 : vector<8x32xf32>
    %412 = math.tanh %411 : vector<8x32xf32>
    %cst_152 = arith.constant 5.000000e-01 : f32
    %413 = vector.broadcast %cst_152 : f32 to vector<8x32xf32>
    %414 = arith.mulf %413, %412 : vector<8x32xf32>
    %cst_153 = arith.constant 5.000000e-01 : f32
    %415 = vector.broadcast %cst_153 : f32 to vector<8x32xf32>
    %416 = arith.addf %414, %415 : vector<8x32xf32>
    %417 = vector.extract_strided_slice %408 {offsets = [0, 32], sizes = [8, 32], strides = [1, 1]} : vector<8x128xf32> to vector<8x32xf32>
    %cst_154 = arith.constant 5.000000e-01 : f32
    %418 = vector.broadcast %cst_154 : f32 to vector<8x32xf32>
    %419 = arith.mulf %418, %417 : vector<8x32xf32>
    %420 = math.tanh %419 : vector<8x32xf32>
    %cst_155 = arith.constant 5.000000e-01 : f32
    %421 = vector.broadcast %cst_155 : f32 to vector<8x32xf32>
    %422 = arith.mulf %421, %420 : vector<8x32xf32>
    %cst_156 = arith.constant 5.000000e-01 : f32
    %423 = vector.broadcast %cst_156 : f32 to vector<8x32xf32>
    %424 = arith.addf %422, %423 : vector<8x32xf32>
    %425 = vector.extract_strided_slice %408 {offsets = [0, 64], sizes = [8, 32], strides = [1, 1]} : vector<8x128xf32> to vector<8x32xf32>
    %426 = math.tanh %425 : vector<8x32xf32>
    %427 = vector.extract_strided_slice %408 {offsets = [0, 96], sizes = [8, 32], strides = [1, 1]} : vector<8x128xf32> to vector<8x32xf32>
    %cst_157 = arith.constant 5.000000e-01 : f32
    %428 = vector.broadcast %cst_157 : f32 to vector<8x32xf32>
    %429 = arith.mulf %428, %427 : vector<8x32xf32>
    %430 = math.tanh %429 : vector<8x32xf32>
    %cst_158 = arith.constant 5.000000e-01 : f32
    %431 = vector.broadcast %cst_158 : f32 to vector<8x32xf32>
    %432 = arith.mulf %431, %430 : vector<8x32xf32>
    %cst_159 = arith.constant 5.000000e-01 : f32
    %433 = vector.broadcast %cst_159 : f32 to vector<8x32xf32>
    %434 = arith.addf %432, %433 : vector<8x32xf32>
    %435 = arith.mulf %424, %366 : vector<8x32xf32>
    %436 = arith.mulf %416, %426 : vector<8x32xf32>
    %437 = arith.addf %435, %436 : vector<8x32xf32>
    %438 = math.tanh %437 : vector<8x32xf32>
    %439 = arith.mulf %434, %438 : vector<8x32xf32>
    %cst_160 = arith.constant dense<0.000000e+00> : vector<8x512xf32>
    %440 = tpu.matmul %402, %7, %cst_160 {dimension_numbers = #tpu.dot_dimension_numbers<[1], [0], [0], [1], [0, 0, 1, 1], [], []>} : vector<8x128xf32>, vector<128x512xf32>, vector<8x512xf32> -> vector<8x512xf32>
    %c48 = arith.constant 48 : index
    %c0_161 = arith.constant 0 : index
    %441 = vector.load %arg14[%c48, %c0_161] : memref<64x512xf32, #tpu.memory_space<vmem>>, vector<8x512xf32>
    %442 = arith.addf %440, %441 : vector<8x512xf32>
    %443 = vector.extract_strided_slice %442 {offsets = [0, 0], sizes = [8, 128], strides = [1, 1]} : vector<8x512xf32> to vector<8x128xf32>
    %cst_162 = arith.constant 5.000000e-01 : f32
    %444 = vector.broadcast %cst_162 : f32 to vector<8x128xf32>
    %445 = arith.mulf %444, %443 : vector<8x128xf32>
    %446 = math.tanh %445 : vector<8x128xf32>
    %cst_163 = arith.constant 5.000000e-01 : f32
    %447 = vector.broadcast %cst_163 : f32 to vector<8x128xf32>
    %448 = arith.mulf %447, %446 : vector<8x128xf32>
    %cst_164 = arith.constant 5.000000e-01 : f32
    %449 = vector.broadcast %cst_164 : f32 to vector<8x128xf32>
    %450 = arith.addf %448, %449 : vector<8x128xf32>
    %451 = vector.extract_strided_slice %442 {offsets = [0, 128], sizes = [8, 128], strides = [1, 1]} : vector<8x512xf32> to vector<8x128xf32>
    %cst_165 = arith.constant 5.000000e-01 : f32
    %452 = vector.broadcast %cst_165 : f32 to vector<8x128xf32>
    %453 = arith.mulf %452, %451 : vector<8x128xf32>
    %454 = math.tanh %453 : vector<8x128xf32>
    %cst_166 = arith.constant 5.000000e-01 : f32
    %455 = vector.broadcast %cst_166 : f32 to vector<8x128xf32>
    %456 = arith.mulf %455, %454 : vector<8x128xf32>
    %cst_167 = arith.constant 5.000000e-01 : f32
    %457 = vector.broadcast %cst_167 : f32 to vector<8x128xf32>
    %458 = arith.addf %456, %457 : vector<8x128xf32>
    %459 = vector.extract_strided_slice %442 {offsets = [0, 256], sizes = [8, 128], strides = [1, 1]} : vector<8x512xf32> to vector<8x128xf32>
    %460 = math.tanh %459 : vector<8x128xf32>
    %461 = vector.extract_strided_slice %442 {offsets = [0, 384], sizes = [8, 128], strides = [1, 1]} : vector<8x512xf32> to vector<8x128xf32>
    %cst_168 = arith.constant 5.000000e-01 : f32
    %462 = vector.broadcast %cst_168 : f32 to vector<8x128xf32>
    %463 = arith.mulf %462, %461 : vector<8x128xf32>
    %464 = math.tanh %463 : vector<8x128xf32>
    %cst_169 = arith.constant 5.000000e-01 : f32
    %465 = vector.broadcast %cst_169 : f32 to vector<8x128xf32>
    %466 = arith.mulf %465, %464 : vector<8x128xf32>
    %cst_170 = arith.constant 5.000000e-01 : f32
    %467 = vector.broadcast %cst_170 : f32 to vector<8x128xf32>
    %468 = arith.addf %466, %467 : vector<8x128xf32>
    %469 = arith.mulf %458, %400 : vector<8x128xf32>
    %470 = arith.mulf %450, %460 : vector<8x128xf32>
    %471 = arith.addf %469, %470 : vector<8x128xf32>
    %472 = math.tanh %471 : vector<8x128xf32>
    %473 = arith.mulf %468, %472 : vector<8x128xf32>
    %c48_171 = arith.constant 48 : index
    %c0_172 = arith.constant 0 : index
    %474 = vector.load %arg12[%c48_171, %c0_172] : memref<64x128xf32, #tpu.memory_space<vmem>>, vector<8x128xf32>
    %475 = arith.mulf %473, %474 : vector<8x128xf32>
    %476 = tpu.concatenate %475, %439 in 1 : vector<8x128xf32>, vector<8x32xf32> -> vector<8x160xf32>
    %cst_173 = arith.constant dense<0.000000e+00> : vector<8x128xf32>
    %477 = tpu.matmul %476, %8, %cst_173 {dimension_numbers = #tpu.dot_dimension_numbers<[1], [0], [0], [1], [0, 0, 1, 1], [], []>} : vector<8x160xf32>, vector<160x128xf32>, vector<8x128xf32> -> vector<8x128xf32>
    %478 = vector.broadcast %9 : vector<1x128xf32> to vector<8x128xf32>
    %479 = arith.addf %477, %478 : vector<8x128xf32>
    %480 = vector.extract_strided_slice %479 {offsets = [0, 0], sizes = [8, 32], strides = [1, 1]} : vector<8x128xf32> to vector<8x32xf32>
    %cst_174 = arith.constant 5.000000e-01 : f32
    %481 = vector.broadcast %cst_174 : f32 to vector<8x32xf32>
    %482 = arith.mulf %481, %480 : vector<8x32xf32>
    %483 = math.tanh %482 : vector<8x32xf32>
    %cst_175 = arith.constant 5.000000e-01 : f32
    %484 = vector.broadcast %cst_175 : f32 to vector<8x32xf32>
    %485 = arith.mulf %484, %483 : vector<8x32xf32>
    %cst_176 = arith.constant 5.000000e-01 : f32
    %486 = vector.broadcast %cst_176 : f32 to vector<8x32xf32>
    %487 = arith.addf %485, %486 : vector<8x32xf32>
    %488 = vector.extract_strided_slice %479 {offsets = [0, 32], sizes = [8, 32], strides = [1, 1]} : vector<8x128xf32> to vector<8x32xf32>
    %cst_177 = arith.constant 5.000000e-01 : f32
    %489 = vector.broadcast %cst_177 : f32 to vector<8x32xf32>
    %490 = arith.mulf %489, %488 : vector<8x32xf32>
    %491 = math.tanh %490 : vector<8x32xf32>
    %cst_178 = arith.constant 5.000000e-01 : f32
    %492 = vector.broadcast %cst_178 : f32 to vector<8x32xf32>
    %493 = arith.mulf %492, %491 : vector<8x32xf32>
    %cst_179 = arith.constant 5.000000e-01 : f32
    %494 = vector.broadcast %cst_179 : f32 to vector<8x32xf32>
    %495 = arith.addf %493, %494 : vector<8x32xf32>
    %496 = vector.extract_strided_slice %479 {offsets = [0, 64], sizes = [8, 32], strides = [1, 1]} : vector<8x128xf32> to vector<8x32xf32>
    %497 = math.tanh %496 : vector<8x32xf32>
    %498 = vector.extract_strided_slice %479 {offsets = [0, 96], sizes = [8, 32], strides = [1, 1]} : vector<8x128xf32> to vector<8x32xf32>
    %cst_180 = arith.constant 5.000000e-01 : f32
    %499 = vector.broadcast %cst_180 : f32 to vector<8x32xf32>
    %500 = arith.mulf %499, %498 : vector<8x32xf32>
    %501 = math.tanh %500 : vector<8x32xf32>
    %cst_181 = arith.constant 5.000000e-01 : f32
    %502 = vector.broadcast %cst_181 : f32 to vector<8x32xf32>
    %503 = arith.mulf %502, %501 : vector<8x32xf32>
    %cst_182 = arith.constant 5.000000e-01 : f32
    %504 = vector.broadcast %cst_182 : f32 to vector<8x32xf32>
    %505 = arith.addf %503, %504 : vector<8x32xf32>
    %506 = arith.mulf %495, %437 : vector<8x32xf32>
    %507 = arith.mulf %487, %497 : vector<8x32xf32>
    %508 = arith.addf %506, %507 : vector<8x32xf32>
    %509 = math.tanh %508 : vector<8x32xf32>
    %510 = arith.mulf %505, %509 : vector<8x32xf32>
    %cst_183 = arith.constant dense<0.000000e+00> : vector<8x512xf32>
    %511 = tpu.matmul %473, %7, %cst_183 {dimension_numbers = #tpu.dot_dimension_numbers<[1], [0], [0], [1], [0, 0, 1, 1], [], []>} : vector<8x128xf32>, vector<128x512xf32>, vector<8x512xf32> -> vector<8x512xf32>
    %c56 = arith.constant 56 : index
    %c0_184 = arith.constant 0 : index
    %512 = vector.load %arg14[%c56, %c0_184] : memref<64x512xf32, #tpu.memory_space<vmem>>, vector<8x512xf32>
    %513 = arith.addf %511, %512 : vector<8x512xf32>
    %514 = vector.extract_strided_slice %513 {offsets = [0, 0], sizes = [8, 128], strides = [1, 1]} : vector<8x512xf32> to vector<8x128xf32>
    %cst_185 = arith.constant 5.000000e-01 : f32
    %515 = vector.broadcast %cst_185 : f32 to vector<8x128xf32>
    %516 = arith.mulf %515, %514 : vector<8x128xf32>
    %517 = math.tanh %516 : vector<8x128xf32>
    %cst_186 = arith.constant 5.000000e-01 : f32
    %518 = vector.broadcast %cst_186 : f32 to vector<8x128xf32>
    %519 = arith.mulf %518, %517 : vector<8x128xf32>
    %cst_187 = arith.constant 5.000000e-01 : f32
    %520 = vector.broadcast %cst_187 : f32 to vector<8x128xf32>
    %521 = arith.addf %519, %520 : vector<8x128xf32>
    %522 = vector.extract_strided_slice %513 {offsets = [0, 128], sizes = [8, 128], strides = [1, 1]} : vector<8x512xf32> to vector<8x128xf32>
    %cst_188 = arith.constant 5.000000e-01 : f32
    %523 = vector.broadcast %cst_188 : f32 to vector<8x128xf32>
    %524 = arith.mulf %523, %522 : vector<8x128xf32>
    %525 = math.tanh %524 : vector<8x128xf32>
    %cst_189 = arith.constant 5.000000e-01 : f32
    %526 = vector.broadcast %cst_189 : f32 to vector<8x128xf32>
    %527 = arith.mulf %526, %525 : vector<8x128xf32>
    %cst_190 = arith.constant 5.000000e-01 : f32
    %528 = vector.broadcast %cst_190 : f32 to vector<8x128xf32>
    %529 = arith.addf %527, %528 : vector<8x128xf32>
    %530 = vector.extract_strided_slice %513 {offsets = [0, 256], sizes = [8, 128], strides = [1, 1]} : vector<8x512xf32> to vector<8x128xf32>
    %531 = math.tanh %530 : vector<8x128xf32>
    %532 = vector.extract_strided_slice %513 {offsets = [0, 384], sizes = [8, 128], strides = [1, 1]} : vector<8x512xf32> to vector<8x128xf32>
    %cst_191 = arith.constant 5.000000e-01 : f32
    %533 = vector.broadcast %cst_191 : f32 to vector<8x128xf32>
    %534 = arith.mulf %533, %532 : vector<8x128xf32>
    %535 = math.tanh %534 : vector<8x128xf32>
    %cst_192 = arith.constant 5.000000e-01 : f32
    %536 = vector.broadcast %cst_192 : f32 to vector<8x128xf32>
    %537 = arith.mulf %536, %535 : vector<8x128xf32>
    %cst_193 = arith.constant 5.000000e-01 : f32
    %538 = vector.broadcast %cst_193 : f32 to vector<8x128xf32>
    %539 = arith.addf %537, %538 : vector<8x128xf32>
    %540 = arith.mulf %529, %471 : vector<8x128xf32>
    %541 = arith.mulf %521, %531 : vector<8x128xf32>
    %542 = arith.addf %540, %541 : vector<8x128xf32>
    %543 = math.tanh %542 : vector<8x128xf32>
    %544 = arith.mulf %539, %543 : vector<8x128xf32>
    %c56_194 = arith.constant 56 : index
    %c0_195 = arith.constant 0 : index
    %545 = vector.load %arg12[%c56_194, %c0_195] : memref<64x128xf32, #tpu.memory_space<vmem>>, vector<8x128xf32>
    %546 = arith.mulf %544, %545 : vector<8x128xf32>
    %547 = tpu.concatenate %546, %510 in 1 : vector<8x128xf32>, vector<8x32xf32> -> vector<8x160xf32>
    %cst_196 = arith.constant dense<0.000000e+00> : vector<8x128xf32>
    %548 = tpu.matmul %547, %8, %cst_196 {dimension_numbers = #tpu.dot_dimension_numbers<[1], [0], [0], [1], [0, 0, 1, 1], [], []>} : vector<8x160xf32>, vector<160x128xf32>, vector<8x128xf32> -> vector<8x128xf32>
    %549 = vector.broadcast %9 : vector<1x128xf32> to vector<8x128xf32>
    %550 = arith.addf %548, %549 : vector<8x128xf32>
    %551 = vector.extract_strided_slice %550 {offsets = [0, 0], sizes = [8, 32], strides = [1, 1]} : vector<8x128xf32> to vector<8x32xf32>
    %cst_197 = arith.constant 5.000000e-01 : f32
    %552 = vector.broadcast %cst_197 : f32 to vector<8x32xf32>
    %553 = arith.mulf %552, %551 : vector<8x32xf32>
    %554 = math.tanh %553 : vector<8x32xf32>
    %cst_198 = arith.constant 5.000000e-01 : f32
    %555 = vector.broadcast %cst_198 : f32 to vector<8x32xf32>
    %556 = arith.mulf %555, %554 : vector<8x32xf32>
    %cst_199 = arith.constant 5.000000e-01 : f32
    %557 = vector.broadcast %cst_199 : f32 to vector<8x32xf32>
    %558 = arith.addf %556, %557 : vector<8x32xf32>
    %559 = vector.extract_strided_slice %550 {offsets = [0, 32], sizes = [8, 32], strides = [1, 1]} : vector<8x128xf32> to vector<8x32xf32>
    %cst_200 = arith.constant 5.000000e-01 : f32
    %560 = vector.broadcast %cst_200 : f32 to vector<8x32xf32>
    %561 = arith.mulf %560, %559 : vector<8x32xf32>
    %562 = math.tanh %561 : vector<8x32xf32>
    %cst_201 = arith.constant 5.000000e-01 : f32
    %563 = vector.broadcast %cst_201 : f32 to vector<8x32xf32>
    %564 = arith.mulf %563, %562 : vector<8x32xf32>
    %cst_202 = arith.constant 5.000000e-01 : f32
    %565 = vector.broadcast %cst_202 : f32 to vector<8x32xf32>
    %566 = arith.addf %564, %565 : vector<8x32xf32>
    %567 = vector.extract_strided_slice %550 {offsets = [0, 64], sizes = [8, 32], strides = [1, 1]} : vector<8x128xf32> to vector<8x32xf32>
    %568 = math.tanh %567 : vector<8x32xf32>
    %569 = vector.extract_strided_slice %550 {offsets = [0, 96], sizes = [8, 32], strides = [1, 1]} : vector<8x128xf32> to vector<8x32xf32>
    %cst_203 = arith.constant 5.000000e-01 : f32
    %570 = vector.broadcast %cst_203 : f32 to vector<8x32xf32>
    %571 = arith.mulf %570, %569 : vector<8x32xf32>
    %572 = math.tanh %571 : vector<8x32xf32>
    %cst_204 = arith.constant 5.000000e-01 : f32
    %573 = vector.broadcast %cst_204 : f32 to vector<8x32xf32>
    %574 = arith.mulf %573, %572 : vector<8x32xf32>
    %cst_205 = arith.constant 5.000000e-01 : f32
    %575 = vector.broadcast %cst_205 : f32 to vector<8x32xf32>
    %576 = arith.addf %574, %575 : vector<8x32xf32>
    %577 = arith.mulf %566, %508 : vector<8x32xf32>
    %578 = arith.mulf %558, %568 : vector<8x32xf32>
    %579 = arith.addf %577, %578 : vector<8x32xf32>
    %580 = math.tanh %579 : vector<8x32xf32>
    %581 = arith.mulf %576, %580 : vector<8x32xf32>
    %c0_206 = arith.constant 0 : index
    %c0_207 = arith.constant 0 : index
    %582 = vector.load %arg6[%c0_206, %c0_207] : memref<32x1xf32, #tpu.memory_space<vmem>>, vector<32x1xf32>
    %cst_208 = arith.constant dense<0.000000e+00> : vector<8x1xf32>
    %583 = tpu.matmul %581, %582, %cst_208 {dimension_numbers = #tpu.dot_dimension_numbers<[1], [0], [0], [1], [0, 0, 1, 1], [], []>} : vector<8x32xf32>, vector<32x1xf32>, vector<8x1xf32> -> vector<8x1xf32>
    %c0_209 = arith.constant 0 : index
    %c0_210 = arith.constant 0 : index
    %584 = vector.load %arg7[%c0_209, %c0_210] : memref<1x1xf32, #tpu.memory_space<vmem>>, vector<1x1xf32>
    %585 = vector.broadcast %584 : vector<1x1xf32> to vector<8x1xf32>
    %586 = arith.addf %583, %585 : vector<8x1xf32>
    %c0_211 = arith.constant 0 : index
    %c0_212 = arith.constant 0 : index
    %587 = vector.load %arg13[%c0_211, %c0_212] : memref<8x1xf32, #tpu.memory_space<vmem>>, vector<8x1xf32>
    tpu.vector_store %arg13[%c0_211, %c0_212], %586 {strides = array<i32>} : memref<8x1xf32, #tpu.memory_space<vmem>>, vector<8x1xf32>,
    return
  }
}

</mosaic_0001>

<llo_original>
// kernel: predictor_forward.1
$region0: #{predictor_forward.1}
  #allocation0 [shape = 'u32[]', space=smem, size = 0x4, offset = 0x4, fixed_abs, tag = 'smem constant byte address 0x4 - core index']
  #allocation1 [shape = 'u32[144,128]{1,0:T(1,128)}', space=vmem, size = 0x12000, scoped, tag = 'internal scratch']
  #allocation2 [shape = 'f32[64,512]{1,0:T(8,128)}', space=vmem, size = 0x20000, scoped, tag = 'scratch operand']
  #allocation3 [shape = 'f32[1,1]{1,0:T(1,128)S(1)}', space=vmem, size = 0x200, scoped, tag = 'scoped memory for predictor_forward.1']
  %s0 = inlined_call_operand.vmem [shape: f32[64,16], index: 0, kind: input, shape index: {}]
  %s1 = inlined_call_operand.hbm [shape: f32[16,512], index: 1, kind: input, shape index: {}]
  %s2 = inlined_call_operand.hbm [shape: f32[1,512], index: 2, kind: input, shape index: {}]
  %s3 = inlined_call_operand.vmem [shape: f32[128,512], index: 3, kind: input, shape index: {}]
  %s4 = inlined_call_operand.vmem [shape: f32[160,128], index: 4, kind: input, shape index: {}]
  %s5 = inlined_call_operand.hbm [shape: f32[1,128], index: 5, kind: input, shape index: {}]
  %s6 = inlined_call_operand.vmem [shape: f32[32,1], index: 6, kind: input, shape index: {}]
  %s7 = inlined_call_operand.<no memory space> [shape: f32[1,1], index: 7, kind: input, shape index: {}]
  %s8 = inlined_call_operand.vmem [shape: f32[8,128], index: 8, kind: input, shape index: {}]
  %s9 = inlined_call_operand.vmem [shape: f32[8,128], index: 9, kind: input, shape index: {}]
  %s10 = inlined_call_operand.vmem [shape: f32[8,32], index: 10, kind: input, shape index: {}]
  %s11 = inlined_call_operand.vmem [shape: f32[8,32], index: 11, kind: input, shape index: {}]
  %s12 = inlined_call_operand.vmem [shape: f32[64,128], index: 12, kind: input, shape index: {}]
  %s13 = inlined_call_operand.vmem [shape: f32[8,1], index: 13, kind: output, shape index: {}]
  %s14 = sld [smem:[#allocation0]]
  $region74: #{predictor_forward.1} parent=0
    _
  %s16 = ssub.s32 1, %s14
  %s17 = scalar_select 0, %s16, %s14
  %v18 = vstv %s7
  %19 = vst [vmem:[#allocation3] sm:$0x1] %v18
  $region1: #{predictor_forward.1} parent=0
    #allocation4 [shape = 'u8[32768]{0}', space=vmem, size = 0x8000, scoped, tag = 'input window, operand 1, single buffered']
    #allocation5 [shape = 's32[1]{0}', space=sflag, size = 0x4, scoped, tag = 'scoped memory for predictor_forward.1']
    #allocation6 [shape = 'u8[2048]{0}', space=vmem, size = 0x800, scoped, tag = 'input window, operand 2, single buffered']
    #allocation7 [shape = 's32[1]{0}', space=sflag, size = 0x4, scoped, tag = 'scoped memory for predictor_forward.1']
    #allocation8 [shape = 'u8[512]{0}', space=vmem, size = 0x400, scoped, tag = 'input window, operand 5, single buffered']
    %20 = vsyncpa [#allocation5], 0
    %21 = vsyncpa [#allocation7], 0
    // Predicated region
    $region2: #{predictor_forward.1} parent=1 // pred_check
      _
    $region3: #{predictor_forward.1} parent=1 // pred_check_branch
      %23 = sbr.rel (0) target = $region5
    $region4: #{predictor_forward.1} parent=1 // pred_region
      _
    $region5: #{predictor_forward.1} parent=1 // pred_fallthru
      _
    // Predicated region
    $region6: #{predictor_forward.1} parent=1 // pred_check
      _
    $region7: #{predictor_forward.1} parent=1 // pred_check_branch
      %25 = sbr.rel (0) target = $region9
    $region8: #{predictor_forward.1} parent=1 // pred_region
      %s27 = ssub.s32 1024, 1024
      %28 = vsyncadd [#allocation5], %s27
      %s29 = sshll.u32 [#allocation4], 4
      %s30 = int_to_ptr.vmem [resolvable:$true] %s29
      %35 = dma.hbm_to_vmem [thread:$0]  %s1, 1024, %s30, [#allocation5], 512, 512, 32
    $region9: #{predictor_forward.1} parent=1 // pred_fallthru
      _
    // Predicated region
    $region10: #{predictor_forward.1} parent=1 // pred_check
      _
    $region11: #{predictor_forward.1} parent=1 // pred_check_branch
      %37 = sbr.rel (0) target = $region13
    $region12: #{predictor_forward.1} parent=1 // pred_region
      %s39 = ssub.s32 64, 64
      %40 = vsyncadd [#allocation7], %s39
      %s42 = sshll.u32 [#allocation6], 4
      %s43 = int_to_ptr.vmem [resolvable:$true] %s42
      %45 = dma.hbm_to_vmem [thread:$0]  %s2, 64, %s43, [#allocation7]
    $region13: #{predictor_forward.1} parent=1 // pred_fallthru
      _
    // Predicated region
    $region14: #{predictor_forward.1} parent=1 // pred_check
      _
    $region15: #{predictor_forward.1} parent=1 // pred_check_branch
      %47 = sbr.rel (0) target = $region17
    $region16: #{predictor_forward.1} parent=1 // pred_region
      _
    $region17: #{predictor_forward.1} parent=1 // pred_fallthru
      _
    // Predicated region
    $region18: #{predictor_forward.1} parent=1 // pred_check
      _
    $region19: #{predictor_forward.1} parent=1 // pred_check_branch
      %49 = sbr.rel (0) target = $region21
    $region20: #{predictor_forward.1} parent=1 // pred_region
      _
    $region21: #{predictor_forward.1} parent=1 // pred_fallthru
      _
    // Predicated region
    $region22: #{predictor_forward.1} parent=1 // pred_check
      _
    $region23: #{predictor_forward.1} parent=1 // pred_check_branch
      %51 = sbr.rel (0) target = $region25
    $region24: #{predictor_forward.1} parent=1 // pred_region
      %s53 = ssub.s32 16, 16
      %54 = vsyncadd [#allocation7], %s53
      %s56 = sshll.u32 [#allocation8], 4
      %s57 = int_to_ptr.vmem [resolvable:$true] %s56
      %59 = dma.hbm_to_vmem [thread:$0]  %s5, 16, %s57, [#allocation7]
    $region25: #{predictor_forward.1} parent=1 // pred_fallthru
      _
    // Predicated region
    $region26: #{predictor_forward.1} parent=1 // pred_check
      _
    $region27: #{predictor_forward.1} parent=1 // pred_check_branch
      %61 = sbr.rel (0) target = $region29
    $region28: #{predictor_forward.1} parent=1 // pred_region
      _
    $region29: #{predictor_forward.1} parent=1 // pred_fallthru
      _
    // Predicated region
    $region30: #{predictor_forward.1} parent=1 // pred_check
      _
    $region31: #{predictor_forward.1} parent=1 // pred_check_branch
      %63 = sbr.rel (0) target = $region33
    $region32: #{predictor_forward.1} parent=1 // pred_region
      _
    $region33: #{predictor_forward.1} parent=1 // pred_fallthru
      _
    // Predicated region
    $region34: #{predictor_forward.1} parent=1 // pred_check
      _
    $region35: #{predictor_forward.1} parent=1 // pred_check_branch
      %65 = sbr.rel (0) target = $region37
    $region36: #{predictor_forward.1} parent=1 // pred_region
      _
    $region37: #{predictor_forward.1} parent=1 // pred_fallthru
      _
    // Predicated region
    $region38: #{predictor_forward.1} parent=1 // pred_check
      _
    $region39: #{predictor_forward.1} parent=1 // pred_check_branch
      %67 = sbr.rel (0) target = $region41
    $region40: #{predictor_forward.1} parent=1 // pred_region
      _
    $region41: #{predictor_forward.1} parent=1 // pred_fallthru
      _
    // Predicated region
    $region42: #{predictor_forward.1} parent=1 // pred_check
      _
    $region43: #{predictor_forward.1} parent=1 // pred_check_branch
      %69 = sbr.rel (0) target = $region45
    $region44: #{predictor_forward.1} parent=1 // pred_region
      _
    $region45: #{predictor_forward.1} parent=1 // pred_fallthru
      _
    // Predicated region
    $region46: #{predictor_forward.1} parent=1 // pred_check
      _
    $region47: #{predictor_forward.1} parent=1 // pred_check_branch
      %71 = sbr.rel (0) target = $region49
    $region48: #{predictor_forward.1} parent=1 // pred_region
      _
    $region49: #{predictor_forward.1} parent=1 // pred_fallthru
      _
    // Predicated region
    $region50: #{predictor_forward.1} parent=1 // pred_check
      _
    $region51: #{predictor_forward.1} parent=1 // pred_check_branch
      %73 = sbr.rel (0) target = $region53
    $region52: #{predictor_forward.1} parent=1 // pred_region
      _
    $region53: #{predictor_forward.1} parent=1 // pred_fallthru
      _
    // Predicated region
    $region54: #{predictor_forward.1} parent=1 // pred_check
      _
    $region55: #{predictor_forward.1} parent=1 // pred_check_branch
      %75 = sbr.rel (0) target = $region57
    $region56: #{predictor_forward.1} parent=1 // pred_region
      %76 = dma.done [#allocation5], 1024
    $region57: #{predictor_forward.1} parent=1 // pred_fallthru
      _
    // Predicated region
    $region58: #{predictor_forward.1} parent=1 // pred_check
      _
    $region59: #{predictor_forward.1} parent=1 // pred_check_branch
      %78 = sbr.rel (0) target = $region61
    $region60: #{predictor_forward.1} parent=1 // pred_region
      %79 = dma.done [#allocation7], 64
    $region61: #{predictor_forward.1} parent=1 // pred_fallthru
      _
    // Predicated region
    $region62: #{predictor_forward.1} parent=1 // pred_check
      _
    $region63: #{predictor_forward.1} parent=1 // pred_check_branch
      %81 = sbr.rel (0) target = $region65
    $region64: #{predictor_forward.1} parent=1 // pred_region
      %82 = dma.done [#allocation7], 16
    $region65: #{predictor_forward.1} parent=1 // pred_fallthru
      _
    %v83 = vld [vmem:[%s0] sm:$0xff]
    %v84 = vld [vmem:[%s0 + $0x8] sm:$0xff]
    %v85 = vld [vmem:[%s0 + $0x10] sm:$0xff]
    %v86 = vld [vmem:[%s0 + $0x18] sm:$0xff]
    %v87 = vld [vmem:[%s0 + $0x20] sm:$0xff]
    %v88 = vld [vmem:[%s0 + $0x28] sm:$0xff]
    %v89 = vld [vmem:[%s0 + $0x30] sm:$0xff]
    %v90 = vld [vmem:[%s0 + $0x38] sm:$0xff]
    %v91 = vld [vmem:[#allocation4] sm:$0xff]
    %v92 = vld [vmem:[#allocation4 + $0x8] sm:$0xff]
    %v93 = vld [vmem:[#allocation4 + $0x10] sm:$0xff]
    %v94 = vld [vmem:[#allocation4 + $0x18] sm:$0xff]
    %v95 = vld [vmem:[#allocation4 + $0x20] sm:$0xff]
    %v96 = vld [vmem:[#allocation4 + $0x28] sm:$0xff]
    %v97 = vld [vmem:[#allocation4 + $0x30] sm:$0xff]
    %v98 = vld [vmem:[#allocation4 + $0x38] sm:$0xff]
    %v99 = vld [vmem:[#allocation6] sm:$0xf]
    %v101 = vlaneseq
    %v102 = vshrl.u32 %v101, 7
    %v103 = vsub.s32 0, %v102
    %v104 = vrot.slane %v99, %v103
    %v105 = vlaneseq
    %v106 = vshrl.u32 %v105, 7
    %v107 = vsub.s32 1, %v106
    %v108 = vrot.slane %v99, %v107
    %v109 = vlaneseq
    %v110 = vshrl.u32 %v109, 7
    %v111 = vsub.s32 2, %v110
    %v112 = vrot.slane %v99, %v111
    %v113 = vlaneseq
    %v114 = vshrl.u32 %v113, 7
    %v115 = vsub.s32 3, %v114
    %v116 = vrot.slane %v99, %v115
    %vm121 = vcmask 130048
    %v123 = vsel %vm121, %v83, 0
    %v126 = vsel %vm121, %v84, 0
    %v129 = vsel %vm121, %v85, 0
    %v132 = vsel %vm121, %v86, 0
    %v135 = vsel %vm121, %v87, 0
    %v138 = vsel %vm121, %v88, 0
    %v141 = vsel %vm121, %v89, 0
    %v144 = vsel %vm121, %v90, 0
    %146 = vmatprep.subr.mxu0 %v92
    %147 = vmatpush1.msra.mxu0 %v91
    %148 = vmatprep.subr.mxu0 %v96
    %149 = vmatpush1.msra.mxu0 %v95
    %150 = vmatprep.subr.mxu0 0.0
    %151 = vmatpush1.msra.mxu0 0.0
    %152 = vmatprep.subr.mxu0 0.0
    %153 = vmatpush1.msra.mxu0 0.0
    %154 = vmatprep.subr.mxu0 0.0
    %155 = vmatpush1.msra.mxu0 0.0
    %156 = vmatprep.subr.mxu0 0.0
    %157 = vmatpush1.msra.mxu0 0.0
    %158 = vmatprep.subr.mxu0 0.0
    %159 = vmatpush1.msra.mxu0 0.0
    %160 = vmatprep.subr.mxu0 0.0
    %161 = vmatpush1.msra.mxu0 0.0
    %162 = vmatprep.subr.mxu0 0.0
    %163 = vmatpush1.msra.mxu0 0.0
    %164 = vmatprep.subr.mxu0 0.0
    %165 = vmatpush1.msra.mxu0 0.0
    %166 = vmatprep.subr.mxu0 0.0
    %167 = vmatpush1.msra.mxu0 0.0
    %168 = vmatprep.subr.mxu0 0.0
    %169 = vmatpush1.msra.mxu0 0.0
    %170 = vmatprep.subr.mxu0 0.0
    %171 = vmatpush1.msra.mxu0 0.0
    %172 = vmatprep.subr.mxu0 0.0
    %173 = vmatpush1.msra.mxu0 0.0
    %174 = vmatprep.subr.mxu0 0.0
    %175 = vmatpush1.msra.mxu0 0.0
    %176 = vmatprep.subr.mxu0 0.0
    %177 = vmatpush1.msra.mxu0 0.0
    %178 = vmatprep.subr.mxu0 0.0
    %179 = vmatpush1.msra.mxu0 0.0
    %180 = vmatprep.subr.mxu0 0.0
    %181 = vmatpush1.msra.mxu0 0.0
    %182 = vmatprep.subr.mxu0 0.0
    %183 = vmatpush1.msra.mxu0 0.0
    %184 = vmatprep.subr.mxu0 0.0
    %185 = vmatpush1.msra.mxu0 0.0
    %186 = vmatprep.subr.mxu0 0.0
    %187 = vmatpush1.msra.mxu0 0.0
    %188 = vmatprep.subr.mxu0 0.0
    %189 = vmatpush1.msra.mxu0 0.0
    %190 = vmatprep.subr.mxu0 0.0
    %191 = vmatpush1.msra.mxu0 0.0
    %192 = vmatprep.subr.mxu0 0.0
    %193 = vmatpush1.msra.mxu0 0.0
    %194 = vmatprep.subr.mxu0 0.0
    %195 = vmatpush1.msra.mxu0 0.0
    %196 = vmatprep.subr.mxu0 0.0
    %197 = vmatpush1.msra.mxu0 0.0
    %198 = vmatprep.subr.mxu0 0.0
    %199 = vmatpush1.msra.mxu0 0.0
    %200 = vmatprep.subr.mxu0 0.0
    %201 = vmatpush1.msra.mxu0 0.0
    %202 = vmatprep.subr.mxu0 0.0
    %203 = vmatpush1.msra.mxu0 0.0
    %204 = vmatprep.subr.mxu0 0.0
    %205 = vmatpush1.msra.mxu0 0.0
    %206 = vmatprep.subr.mxu0 0.0
    %207 = vmatpush1.msra.mxu0 0.0
    %208 = vmatprep.subr.mxu0 0.0
    %209 = vmatpush1.msra.mxu0 0.0
    %210 = vmatprep.mubr.f32.mxu0 0.0
    %211 = vmatmul.mubr.f32.gmra.mrb[0].mxu0 %v123
    %v212 = vpop.f32.mrb[0].mxu0
    %v213 = vadd.f32 %v104, %v212
    %v214 = vpop.f32.mrb[0].mxu0
    %v215 = vadd.f32 %v108, %v214
    %216 = vmatprep.mubr.f32.mxu0 0.0
    %217 = vmatmul.mubr.f32.gmra.mrb[0].mxu0 %v126
    %v218 = vpop.f32.mrb[0].mxu0
    %v219 = vadd.f32 %v104, %v218
    %v220 = vpop.f32.mrb[0].mxu0
    %v221 = vadd.f32 %v108, %v220
    %222 = vmatprep.mubr.f32.mxu0 0.0
    %223 = vmatmul.mubr.f32.gmra.mrb[0].mxu0 %v129
    %v224 = vpop.f32.mrb[0].mxu0
    %v225 = vadd.f32 %v104, %v224
    %v226 = vpop.f32.mrb[0].mxu0
    %v227 = vadd.f32 %v108, %v226
    %228 = vmatprep.mubr.f32.mxu0 0.0
    %229 = vmatmul.mubr.f32.gmra.mrb[0].mxu0 %v132
    %v230 = vpop.f32.mrb[0].mxu0
    %v231 = vadd.f32 %v104, %v230
    %v232 = vpop.f32.mrb[0].mxu0
    %v233 = vadd.f32 %v108, %v232
    %234 = vmatprep.mubr.f32.mxu0 0.0
    %235 = vmatmul.mubr.f32.gmra.mrb[0].mxu0 %v135
    %v236 = vpop.f32.mrb[0].mxu0
    %v237 = vadd.f32 %v104, %v236
    %v238 = vpop.f32.mrb[0].mxu0
    %v239 = vadd.f32 %v108, %v238
    %240 = vmatprep.mubr.f32.mxu0 0.0
    %241 = vmatmul.mubr.f32.gmra.mrb[0].mxu0 %v138
    %v242 = vpop.f32.mrb[0].mxu0
    %v243 = vadd.f32 %v104, %v242
    %v244 = vpop.f32.mrb[0].mxu0
    %v245 = vadd.f32 %v108, %v244
    %246 = vmatprep.mubr.f32.mxu0 0.0
    %247 = vmatmul.mubr.f32.gmra.mrb[0].mxu0 %v141
    %v248 = vpop.f32.mrb[0].mxu0
    %v249 = vadd.f32 %v104, %v248
    %v250 = vpop.f32.mrb[0].mxu0
    %v251 = vadd.f32 %v108, %v250
    %252 = vmatprep.mubr.f32.mxu0 0.0
    %253 = vmatmul.mubr.f32.gmra.mrb[0].mxu0 %v144
    %v254 = vpop.f32.mrb[0].mxu0
    %v255 = vadd.f32 %v104, %v254
    %v256 = vpop.f32.mrb[0].mxu0
    %v257 = vadd.f32 %v108, %v256
    %258 = vdwg.mxu0
    %259 = vmatprep.subr.mxu0 %v94
    %260 = vmatpush1.msra.mxu0 %v93
    %261 = vmatprep.subr.mxu0 %v98
    %262 = vmatpush1.msra.mxu0 %v97
    %263 = vmatprep.subr.mxu0 0.0
    %264 = vmatpush1.msra.mxu0 0.0
    %265 = vmatprep.subr.mxu0 0.0
    %266 = vmatpush1.msra.mxu0 0.0
    %267 = vmatprep.subr.mxu0 0.0
    %268 = vmatpush1.msra.mxu0 0.0
    %269 = vmatprep.subr.mxu0 0.0
    %270 = vmatpush1.msra.mxu0 0.0
    %271 = vmatprep.subr.mxu0 0.0
    %272 = vmatpush1.msra.mxu0 0.0
    %273 = vmatprep.subr.mxu0 0.0
    %274 = vmatpush1.msra.mxu0 0.0
    %275 = vmatprep.subr.mxu0 0.0
    %276 = vmatpush1.msra.mxu0 0.0
    %277 = vmatprep.subr.mxu0 0.0
    %278 = vmatpush1.msra.mxu0 0.0
    %279 = vmatprep.subr.mxu0 0.0
    %280 = vmatpush1.msra.mxu0 0.0
    %281 = vmatprep.subr.mxu0 0.0
    %282 = vmatpush1.msra.mxu0 0.0
    %283 = vmatprep.subr.mxu0 0.0
    %284 = vmatpush1.msra.mxu0 0.0
    %285 = vmatprep.subr.mxu0 0.0
    %286 = vmatpush1.msra.mxu0 0.0
    %287 = vmatprep.subr.mxu0 0.0
    %288 = vmatpush1.msra.mxu0 0.0
    %289 = vmatprep.subr.mxu0 0.0
    %290 = vmatpush1.msra.mxu0 0.0
    %291 = vmatprep.subr.mxu0 0.0
    %292 = vmatpush1.msra.mxu0 0.0
    %293 = vmatprep.subr.mxu0 0.0
    %294 = vmatpush1.msra.mxu0 0.0
    %295 = vmatprep.subr.mxu0 0.0
    %296 = vmatpush1.msra.mxu0 0.0
    %297 = vmatprep.subr.mxu0 0.0
    %298 = vmatpush1.msra.mxu0 0.0
    %299 = vmatprep.subr.mxu0 0.0
    %300 = vmatpush1.msra.mxu0 0.0
    %301 = vmatprep.subr.mxu0 0.0
    %302 = vmatpush1.msra.mxu0 0.0
    %303 = vmatprep.subr.mxu0 0.0
    %304 = vmatpush1.msra.mxu0 0.0
    %305 = vmatprep.subr.mxu0 0.0
    %306 = vmatpush1.msra.mxu0 0.0
    %307 = vmatprep.subr.mxu0 0.0
    %308 = vmatpush1.msra.mxu0 0.0
    %309 = vmatprep.subr.mxu0 0.0
    %310 = vmatpush1.msra.mxu0 0.0
    %311 = vmatprep.subr.mxu0 0.0
    %312 = vmatpush1.msra.mxu0 0.0
    %313 = vmatprep.subr.mxu0 0.0
    %314 = vmatpush1.msra.mxu0 0.0
    %315 = vmatprep.subr.mxu0 0.0
    %316 = vmatpush1.msra.mxu0 0.0
    %317 = vmatprep.subr.mxu0 0.0
    %318 = vmatpush1.msra.mxu0 0.0
    %319 = vmatprep.subr.mxu0 0.0
    %320 = vmatpush1.msra.mxu0 0.0
    %321 = vmatprep.subr.mxu0 0.0
    %322 = vmatpush1.msra.mxu0 0.0
    %323 = vmatprep.mubr.f32.mxu0 0.0
    %324 = vmatmul.mubr.f32.gmra.mrb[0].mxu0 %v123
    %v325 = vpop.f32.mrb[0].mxu0
    %v326 = vadd.f32 %v112, %v325
    %v327 = vpop.f32.mrb[0].mxu0
    %v328 = vadd.f32 %v116, %v327
    %329 = vmatprep.mubr.f32.mxu0 0.0
    %330 = vmatmul.mubr.f32.gmra.mrb[0].mxu0 %v126
    %v331 = vpop.f32.mrb[0].mxu0
    %v332 = vadd.f32 %v112, %v331
    %v333 = vpop.f32.mrb[0].mxu0
    %v334 = vadd.f32 %v116, %v333
    %335 = vmatprep.mubr.f32.mxu0 0.0
    %336 = vmatmul.mubr.f32.gmra.mrb[0].mxu0 %v129
    %v337 = vpop.f32.mrb[0].mxu0
    %v338 = vadd.f32 %v112, %v337
    %v339 = vpop.f32.mrb[0].mxu0
    %v340 = vadd.f32 %v116, %v339
    %341 = vmatprep.mubr.f32.mxu0 0.0
    %342 = vmatmul.mubr.f32.gmra.mrb[0].mxu0 %v132
    %v343 = vpop.f32.mrb[0].mxu0
    %v344 = vadd.f32 %v112, %v343
    %v345 = vpop.f32.mrb[0].mxu0
    %v346 = vadd.f32 %v116, %v345
    %347 = vmatprep.mubr.f32.mxu0 0.0
    %348 = vmatmul.mubr.f32.gmra.mrb[0].mxu0 %v135
    %v349 = vpop.f32.mrb[0].mxu0
    %v350 = vadd.f32 %v112, %v349
    %v351 = vpop.f32.mrb[0].mxu0
    %v352 = vadd.f32 %v116, %v351
    %353 = vmatprep.mubr.f32.mxu0 0.0
    %354 = vmatmul.mubr.f32.gmra.mrb[0].mxu0 %v138
    %v355 = vpop.f32.mrb[0].mxu0
    %v356 = vadd.f32 %v112, %v355
    %v357 = vpop.f32.mrb[0].mxu0
    %v358 = vadd.f32 %v116, %v357
    %359 = vmatprep.mubr.f32.mxu0 0.0
    %360 = vmatmul.mubr.f32.gmra.mrb[0].mxu0 %v141
    %v361 = vpop.f32.mrb[0].mxu0
    %v362 = vadd.f32 %v112, %v361
    %v363 = vpop.f32.mrb[0].mxu0
    %v364 = vadd.f32 %v116, %v363
    %365 = vmatprep.mubr.f32.mxu0 0.0
    %366 = vmatmul.mubr.f32.gmra.mrb[0].mxu0 %v144
    %v367 = vpop.f32.mrb[0].mxu0
    %v368 = vadd.f32 %v112, %v367
    %v369 = vpop.f32.mrb[0].mxu0
    %v370 = vadd.f32 %v116, %v369
    %371 = vdwg.mxu0
    %372 = vst [vmem:[#allocation2] sm:$0xff] %v213
    %373 = vst [vmem:[#allocation2 + $0x8] sm:$0xff] %v215
    %374 = vst [vmem:[#allocation2 + $0x10] sm:$0xff] %v326
    %375 = vst [vmem:[#allocation2 + $0x18] sm:$0xff] %v328
    %376 = vst [vmem:[#allocation2 + $0x20] sm:$0xff] %v219
    %377 = vst [vmem:[#allocation2 + $0x28] sm:$0xff] %v221
    %378 = vst [vmem:[#allocation2 + $0x30] sm:$0xff] %v332
    %379 = vst [vmem:[#allocation2 + $0x38] sm:$0xff] %v334
    %380 = vst [vmem:[#allocation2 + $0x40] sm:$0xff] %v225
    %381 = vst [vmem:[#allocation2 + $0x48] sm:$0xff] %v227
    %382 = vst [vmem:[#allocation2 + $0x50] sm:$0xff] %v338
    %383 = vst [vmem:[#allocation2 + $0x58] sm:$0xff] %v340
    %384 = vst [vmem:[#allocation2 + $0x60] sm:$0xff] %v231
    %385 = vst [vmem:[#allocation2 + $0x68] sm:$0xff] %v233
    %386 = vst [vmem:[#allocation2 + $0x70] sm:$0xff] %v344
    %387 = vst [vmem:[#allocation2 + $0x78] sm:$0xff] %v346
    %388 = vst [vmem:[#allocation2 + $0x80] sm:$0xff] %v237
    %389 = vst [vmem:[#allocation2 + $0x88] sm:$0xff] %v239
    %390 = vst [vmem:[#allocation2 + $0x90] sm:$0xff] %v350
    %391 = vst [vmem:[#allocation2 + $0x98] sm:$0xff] %v352
    %392 = vst [vmem:[#allocation2 + $0xa0] sm:$0xff] %v243
    %393 = vst [vmem:[#allocation2 + $0xa8] sm:$0xff] %v245
    %394 = vst [vmem:[#allocation2 + $0xb0] sm:$0xff] %v356
    %395 = vst [vmem:[#allocation2 + $0xb8] sm:$0xff] %v358
    %396 = vst [vmem:[#allocation2 + $0xc0] sm:$0xff] %v249
    %397 = vst [vmem:[#allocation2 + $0xc8] sm:$0xff] %v251
    %398 = vst [vmem:[#allocation2 + $0xd0] sm:$0xff] %v362
    %399 = vst [vmem:[#allocation2 + $0xd8] sm:$0xff] %v364
    %400 = vst [vmem:[#allocation2 + $0xe0] sm:$0xff] %v255
    %401 = vst [vmem:[#allocation2 + $0xe8] sm:$0xff] %v257
    %402 = vst [vmem:[#allocation2 + $0xf0] sm:$0xff] %v368
    %403 = vst [vmem:[#allocation2 + $0xf8] sm:$0xff] %v370
    %v404 = vld [vmem:[%s3] sm:$0xff]
    %v405 = vld [vmem:[%s3 + $0x8] sm:$0xff]
    %v406 = vld [vmem:[%s3 + $0x10] sm:$0xff]
    %v407 = vld [vmem:[%s3 + $0x18] sm:$0xff]
    %v408 = vld [vmem:[%s3 + $0x20] sm:$0xff]
    %v409 = vld [vmem:[%s3 + $0x28] sm:$0xff]
    %v410 = vld [vmem:[%s3 + $0x30] sm:$0xff]
    %v411 = vld [vmem:[%s3 + $0x38] sm:$0xff]
    %v412 = vld [vmem:[%s3 + $0x40] sm:$0xff]
    %v413 = vld [vmem:[%s3 + $0x48] sm:$0xff]
    %v414 = vld [vmem:[%s3 + $0x50] sm:$0xff]
    %v415 = vld [vmem:[%s3 + $0x58] sm:$0xff]
    %v416 = vld [vmem:[%s3 + $0x60] sm:$0xff]
    %v417 = vld [vmem:[%s3 + $0x68] sm:$0xff]
    %v418 = vld [vmem:[%s3 + $0x70] sm:$0xff]
    %v419 = vld [vmem:[%s3 + $0x78] sm:$0xff]
    %v420 = vld [vmem:[%s3 + $0x80] sm:$0xff]
    %v421 = vld [vmem:[%s3 + $0x88] sm:$0xff]
    %v422 = vld [vmem:[%s3 + $0x90] sm:$0xff]
    %v423 = vld [vmem:[%s3 + $0x98] sm:$0xff]
    %v424 = vld [vmem:[%s3 + $0xa0] sm:$0xff]
    %v425 = vld [vmem:[%s3 + $0xa8] sm:$0xff]
    %v426 = vld [vmem:[%s3 + $0xb0] sm:$0xff]
    %v427 = vld [vmem:[%s3 + $0xb8] sm:$0xff]
    %v428 = vld [vmem:[%s3 + $0xc0] sm:$0xff]
    %v429 = vld [vmem:[%s3 + $0xc8] sm:$0xff]
    %v430 = vld [vmem:[%s3 + $0xd0] sm:$0xff]
    %v431 = vld [vmem:[%s3 + $0xd8] sm:$0xff]
    %v432 = vld [vmem:[%s3 + $0xe0] sm:$0xff]
    %v433 = vld [vmem:[%s3 + $0xe8] sm:$0xff]
    %v434 = vld [vmem:[%s3 + $0xf0] sm:$0xff]
    %v435 = vld [vmem:[%s3 + $0xf8] sm:$0xff]
    %v436 = vld [vmem:[%s3 + $0x100] sm:$0xff]
    %v437 = vld [vmem:[%s3 + $0x108] sm:$0xff]
    %v438 = vld [vmem:[%s3 + $0x110] sm:$0xff]
    %v439 = vld [vmem:[%s3 + $0x118] sm:$0xff]
    %v440 = vld [vmem:[%s3 + $0x120] sm:$0xff]
    %v441 = vld [vmem:[%s3 + $0x128] sm:$0xff]
    %v442 = vld [vmem:[%s3 + $0x130] sm:$0xff]
    %v443 = vld [vmem:[%s3 + $0x138] sm:$0xff]
    %v444 = vld [vmem:[%s3 + $0x140] sm:$0xff]
    %v445 = vld [vmem:[%s3 + $0x148] sm:$0xff]
    %v446 = vld [vmem:[%s3 + $0x150] sm:$0xff]
    %v447 = vld [vmem:[%s3 + $0x158] sm:$0xff]
    %v448 = vld [vmem:[%s3 + $0x160] sm:$0xff]
    %v449 = vld [vmem:[%s3 + $0x168] sm:$0xff]
    %v450 = vld [vmem:[%s3 + $0x170] sm:$0xff]
    %v451 = vld [vmem:[%s3 + $0x178] sm:$0xff]
    %v452 = vld [vmem:[%s3 + $0x180] sm:$0xff]
    %v453 = vld [vmem:[%s3 + $0x188] sm:$0xff]
    %v454 = vld [vmem:[%s3 + $0x190] sm:$0xff]
    %v455 = vld [vmem:[%s3 + $0x198] sm:$0xff]
    %v456 = vld [vmem:[%s3 + $0x1a0] sm:$0xff]
    %v457 = vld [vmem:[%s3 + $0x1a8] sm:$0xff]
    %v458 = vld [vmem:[%s3 + $0x1b0] sm:$0xff]
    %v459 = vld [vmem:[%s3 + $0x1b8] sm:$0xff]
    %v460 = vld [vmem:[%s3 + $0x1c0] sm:$0xff]
    %v461 = vld [vmem:[%s3 + $0x1c8] sm:$0xff]
    %v462 = vld [vmem:[%s3 + $0x1d0] sm:$0xff]
    %v463 = vld [vmem:[%s3 + $0x1d8] sm:$0xff]
    %v464 = vld [vmem:[%s3 + $0x1e0] sm:$0xff]
    %v465 = vld [vmem:[%s3 + $0x1e8] sm:$0xff]
    %v466 = vld [vmem:[%s3 + $0x1f0] sm:$0xff]
    %v467 = vld [vmem:[%s3 + $0x1f8] sm:$0xff]
    %v468 = vld [vmem:[%s4] sm:$0xff]
    %v469 = vld [vmem:[%s4 + $0x8] sm:$0xff]
    %v470 = vld [vmem:[%s4 + $0x10] sm:$0xff]
    %v471 = vld [vmem:[%s4 + $0x18] sm:$0xff]
    %v472 = vld [vmem:[%s4 + $0x20] sm:$0xff]
    %v473 = vld [vmem:[%s4 + $0x28] sm:$0xff]
    %v474 = vld [vmem:[%s4 + $0x30] sm:$0xff]
    %v475 = vld [vmem:[%s4 + $0x38] sm:$0xff]
    %v476 = vld [vmem:[%s4 + $0x40] sm:$0xff]
    %v477 = vld [vmem:[%s4 + $0x48] sm:$0xff]
    %v478 = vld [vmem:[%s4 + $0x50] sm:$0xff]
    %v479 = vld [vmem:[%s4 + $0x58] sm:$0xff]
    %v480 = vld [vmem:[%s4 + $0x60] sm:$0xff]
    %v481 = vld [vmem:[%s4 + $0x68] sm:$0xff]
    %v482 = vld [vmem:[%s4 + $0x70] sm:$0xff]
    %v483 = vld [vmem:[%s4 + $0x78] sm:$0xff]
    %v484 = vld [vmem:[%s4 + $0x80] sm:$0xff]
    %v485 = vld [vmem:[%s4 + $0x88] sm:$0xff]
    %v486 = vld [vmem:[%s4 + $0x90] sm:$0xff]
    %v487 = vld [vmem:[%s4 + $0x98] sm:$0xff]
    %v488 = vld [vmem:[#allocation8] sm:$0x1]
    %v489 = vld [vmem:[%s8] sm:$0xff]
    %v490 = vld [vmem:[%s9] sm:$0xff]
    %v491 = vld [vmem:[%s10] sm:$0xff]
    %v492 = vld [vmem:[%s11] sm:$0xff]
    %v493 = vld [vmem:[#allocation2] sm:$0xff]
    %v494 = vld [vmem:[#allocation2 + $0x8] sm:$0xff]
    %v495 = vld [vmem:[#allocation2 + $0x10] sm:$0xff]
    %v496 = vld [vmem:[#allocation2 + $0x18] sm:$0xff]
    %497 = vmatprep.subr.mxu0 %v405
    %498 = vmatpush1.msra.mxu0 %v404
    %499 = vmatprep.subr.mxu0 %v409
    %500 = vmatpush1.msra.mxu0 %v408
    %501 = vmatprep.subr.mxu0 %v413
    %502 = vmatpush1.msra.mxu0 %v412
    %503 = vmatprep.subr.mxu0 %v417
    %504 = vmatpush1.msra.mxu0 %v416
    %505 = vmatprep.subr.mxu0 %v421
    %506 = vmatpush1.msra.mxu0 %v420
    %507 = vmatprep.subr.mxu0 %v425
    %508 = vmatpush1.msra.mxu0 %v424
    %509 = vmatprep.subr.mxu0 %v429
    %510 = vmatpush1.msra.mxu0 %v428
    %511 = vmatprep.subr.mxu0 %v433
    %512 = vmatpush1.msra.mxu0 %v432
    %513 = vmatprep.subr.mxu0 %v437
    %514 = vmatpush1.msra.mxu0 %v436
    %515 = vmatprep.subr.mxu0 %v441
    %516 = vmatpush1.msra.mxu0 %v440
    %517 = vmatprep.subr.mxu0 %v445
    %518 = vmatpush1.msra.mxu0 %v444
    %519 = vmatprep.subr.mxu0 %v449
    %520 = vmatpush1.msra.mxu0 %v448
    %521 = vmatprep.subr.mxu0 %v453
    %522 = vmatpush1.msra.mxu0 %v452
    %523 = vmatprep.subr.mxu0 %v457
    %524 = vmatpush1.msra.mxu0 %v456
    %525 = vmatprep.subr.mxu0 %v461
    %526 = vmatpush1.msra.mxu0 %v460
    %527 = vmatprep.subr.mxu0 %v465
    %528 = vmatpush1.msra.mxu0 %v464
    %529 = vmatprep.subr.mxu0 0.0
    %530 = vmatpush1.msra.mxu0 0.0
    %531 = vmatprep.subr.mxu0 0.0
    %532 = vmatpush1.msra.mxu0 0.0
    %533 = vmatprep.subr.mxu0 0.0
    %534 = vmatpush1.msra.mxu0 0.0
    %535 = vmatprep.subr.mxu0 0.0
    %536 = vmatpush1.msra.mxu0 0.0
    %537 = vmatprep.subr.mxu0 0.0
    %538 = vmatpush1.msra.mxu0 0.0
    %539 = vmatprep.subr.mxu0 0.0
    %540 = vmatpush1.msra.mxu0 0.0
    %541 = vmatprep.subr.mxu0 0.0
    %542 = vmatpush1.msra.mxu0 0.0
    %543 = vmatprep.subr.mxu0 0.0
    %544 = vmatpush1.msra.mxu0 0.0
    %545 = vmatprep.subr.mxu0 0.0
    %546 = vmatpush1.msra.mxu0 0.0
    %547 = vmatprep.subr.mxu0 0.0
    %548 = vmatpush1.msra.mxu0 0.0
    %549 = vmatprep.subr.mxu0 0.0
    %550 = vmatpush1.msra.mxu0 0.0
    %551 = vmatprep.subr.mxu0 0.0
    %552 = vmatpush1.msra.mxu0 0.0
    %553 = vmatprep.subr.mxu0 0.0
    %554 = vmatpush1.msra.mxu0 0.0
    %555 = vmatprep.subr.mxu0 0.0
    %556 = vmatpush1.msra.mxu0 0.0
    %557 = vmatprep.subr.mxu0 0.0
    %558 = vmatpush1.msra.mxu0 0.0
    %559 = vmatprep.subr.mxu0 0.0
    %560 = vmatpush1.msra.mxu0 0.0
    %561 = vmatprep.mubr.f32.mxu0 0.0
    %562 = vmatmul.mubr.f32.gmra.mrb[0].mxu0 %v489
    %v563 = vpop.f32.mrb[0].mxu0
    %v564 = vadd.f32 %v493, %v563
    %v565 = vpop.f32.mrb[0].mxu0
    %v566 = vadd.f32 %v494, %v565
    %567 = vdwg.mxu0
    %568 = vmatprep.subr.mxu0 %v407
    %569 = vmatpush1.msra.mxu0 %v406
    %570 = vmatprep.subr.mxu0 %v411
    %571 = vmatpush1.msra.mxu0 %v410
    %572 = vmatprep.subr.mxu0 %v415
    %573 = vmatpush1.msra.mxu0 %v414
    %574 = vmatprep.subr.mxu0 %v419
    %575 = vmatpush1.msra.mxu0 %v418
    %576 = vmatprep.subr.mxu0 %v423
    %577 = vmatpush1.msra.mxu0 %v422
    %578 = vmatprep.subr.mxu0 %v427
    %579 = vmatpush1.msra.mxu0 %v426
    %580 = vmatprep.subr.mxu0 %v431
    %581 = vmatpush1.msra.mxu0 %v430
    %582 = vmatprep.subr.mxu0 %v435
    %583 = vmatpush1.msra.mxu0 %v434
    %584 = vmatprep.subr.mxu0 %v439
    %585 = vmatpush1.msra.mxu0 %v438
    %586 = vmatprep.subr.mxu0 %v443
    %587 = vmatpush1.msra.mxu0 %v442
    %588 = vmatprep.subr.mxu0 %v447
    %589 = vmatpush1.msra.mxu0 %v446
    %590 = vmatprep.subr.mxu0 %v451
    %591 = vmatpush1.msra.mxu0 %v450
    %592 = vmatprep.subr.mxu0 %v455
    %593 = vmatpush1.msra.mxu0 %v454
    %594 = vmatprep.subr.mxu0 %v459
    %595 = vmatpush1.msra.mxu0 %v458
    %596 = vmatprep.subr.mxu0 %v463
    %597 = vmatpush1.msra.mxu0 %v462
    %598 = vmatprep.subr.mxu0 %v467
    %599 = vmatpush1.msra.mxu0 %v466
    %600 = vmatprep.subr.mxu0 0.0
    %601 = vmatpush1.msra.mxu0 0.0
    %602 = vmatprep.subr.mxu0 0.0
    %603 = vmatpush1.msra.mxu0 0.0
    %604 = vmatprep.subr.mxu0 0.0
    %605 = vmatpush1.msra.mxu0 0.0
    %606 = vmatprep.subr.mxu0 0.0
    %607 = vmatpush1.msra.mxu0 0.0
    %608 = vmatprep.subr.mxu0 0.0
    %609 = vmatpush1.msra.mxu0 0.0
    %610 = vmatprep.subr.mxu0 0.0
    %611 = vmatpush1.msra.mxu0 0.0
    %612 = vmatprep.subr.mxu0 0.0
    %613 = vmatpush1.msra.mxu0 0.0
    %614 = vmatprep.subr.mxu0 0.0
    %615 = vmatpush1.msra.mxu0 0.0
    %616 = vmatprep.subr.mxu0 0.0
    %617 = vmatpush1.msra.mxu0 0.0
    %618 = vmatprep.subr.mxu0 0.0
    %619 = vmatpush1.msra.mxu0 0.0
    %620 = vmatprep.subr.mxu0 0.0
    %621 = vmatpush1.msra.mxu0 0.0
    %622 = vmatprep.subr.mxu0 0.0
    %623 = vmatpush1.msra.mxu0 0.0
    %624 = vmatprep.subr.mxu0 0.0
    %625 = vmatpush1.msra.mxu0 0.0
    %626 = vmatprep.subr.mxu0 0.0
    %627 = vmatpush1.msra.mxu0 0.0
    %628 = vmatprep.subr.mxu0 0.0
    %629 = vmatpush1.msra.mxu0 0.0
    %630 = vmatprep.subr.mxu0 0.0
    %631 = vmatpush1.msra.mxu0 0.0
    %632 = vmatprep.mubr.f32.mxu0 0.0
    %633 = vmatmul.mubr.f32.gmra.mrb[0].mxu0 %v489
    %v634 = vpop.f32.mrb[0].mxu0
    %v635 = vadd.f32 %v495, %v634
    %v636 = vpop.f32.mrb[0].mxu0
    %v637 = vadd.f32 %v496, %v636
    %638 = vdwg.mxu0
    %v639 = vmul.f32 %v564, 0.5
    %v640 = vtanh.pop %v639
    %v641 = vmul.f32 %v640, 0.5
    %v642 = vadd.f32 %v641, 0.5
    %v643 = vmul.f32 %v566, 0.5
    %v644 = vtanh.pop %v643
    %v645 = vmul.f32 %v644, 0.5
    %v646 = vadd.f32 %v645, 0.5
    %v647 = vtanh.pop %v635
    %v648 = vmul.f32 %v637, 0.5
    %v649 = vtanh.pop %v648
    %v650 = vmul.f32 %v649, 0.5
    %v651 = vadd.f32 %v650, 0.5
    %v652 = vmul.f32 %v646, %v490
    %v653 = vmul.f32 %v642, %v647
    %v654 = vadd.f32 %v652, %v653
    %v655 = vtanh.pop %v654
    %v656 = vmul.f32 %v651, %v655
    %v657 = vld [vmem:[%s12] sm:$0xff]
    %v658 = vmul.f32 %v656, %v657
    %v660 = vlaneseq
    %v661 = vshrl.u32 %v660, 7
    %v662 = vsub.s32 0, %v661
    %v663 = vrot.slane %v488, %v662
    %vm665 = vcmask 261120
    %v667 = vsel %vm665, %v491, 0
    %669 = vmatprep.subr.mxu0 0.0
    %670 = vmatpush1.msra.mxu0 %v468
    %671 = vmatprep.subr.mxu0 0.0
    %672 = vmatpush1.msra.mxu0 %v469
    %673 = vmatprep.subr.mxu0 0.0
    %674 = vmatpush1.msra.mxu0 %v470
    %675 = vmatprep.subr.mxu0 0.0
    %676 = vmatpush1.msra.mxu0 %v471
    %677 = vmatprep.subr.mxu0 0.0
    %678 = vmatpush1.msra.mxu0 %v472
    %679 = vmatprep.subr.mxu0 0.0
    %680 = vmatpush1.msra.mxu0 %v473
    %681 = vmatprep.subr.mxu0 0.0
    %682 = vmatpush1.msra.mxu0 %v474
    %683 = vmatprep.subr.mxu0 0.0
    %684 = vmatpush1.msra.mxu0 %v475
    %685 = vmatprep.subr.mxu0 0.0
    %686 = vmatpush1.msra.mxu0 %v476
    %687 = vmatprep.subr.mxu0 0.0
    %688 = vmatpush1.msra.mxu0 %v477
    %689 = vmatprep.subr.mxu0 0.0
    %690 = vmatpush1.msra.mxu0 %v478
    %691 = vmatprep.subr.mxu0 0.0
    %692 = vmatpush1.msra.mxu0 %v479
    %693 = vmatprep.subr.mxu0 0.0
    %694 = vmatpush1.msra.mxu0 %v480
    %695 = vmatprep.subr.mxu0 0.0
    %696 = vmatpush1.msra.mxu0 %v481
    %697 = vmatprep.subr.mxu0 0.0
    %698 = vmatpush1.msra.mxu0 %v482
    %699 = vmatprep.subr.mxu0 0.0
    %700 = vmatpush1.msra.mxu0 %v483
    %701 = vmatprep.subr.mxu0 0.0
    %702 = vmatpush1.msra.mxu0 %v484
    %703 = vmatprep.subr.mxu0 0.0
    %704 = vmatpush1.msra.mxu0 %v485
    %705 = vmatprep.subr.mxu0 0.0
    %706 = vmatpush1.msra.mxu0 %v486
    %707 = vmatprep.subr.mxu0 0.0
    %708 = vmatpush1.msra.mxu0 %v487
    %709 = vmatprep.subr.mxu0 0.0
    %710 = vmatpush1.msra.mxu0 0.0
    %711 = vmatprep.subr.mxu0 0.0
    %712 = vmatpush1.msra.mxu0 0.0
    %713 = vmatprep.subr.mxu0 0.0
    %714 = vmatpush1.msra.mxu0 0.0
    %715 = vmatprep.subr.mxu0 0.0
    %716 = vmatpush1.msra.mxu0 0.0
    %717 = vmatprep.subr.mxu0 0.0
    %718 = vmatpush1.msra.mxu0 0.0
    %719 = vmatprep.subr.mxu0 0.0
    %720 = vmatpush1.msra.mxu0 0.0
    %721 = vmatprep.subr.mxu0 0.0
    %722 = vmatpush1.msra.mxu0 0.0
    %723 = vmatprep.subr.mxu0 0.0
    %724 = vmatpush1.msra.mxu0 0.0
    %725 = vmatprep.subr.mxu0 0.0
    %726 = vmatpush1.msra.mxu0 0.0
    %727 = vmatprep.subr.mxu0 0.0
    %728 = vmatpush1.msra.mxu0 0.0
    %729 = vmatprep.subr.mxu0 0.0
    %730 = vmatpush1.msra.mxu0 0.0
    %731 = vmatprep.subr.mxu0 0.0
    %732 = vmatpush1.msra.mxu0 0.0
    %733 = vmatprep.mubr.f32.mxu0 %v667
    %734 = vmatmul.mubr.f32.gmra.mrb[0].mxu0 %v658
    %v735 = vpop.f32.mrb[0].mxu0
    %v736 = vadd.f32 %v663, %v735
    %v737 = vpop.f32.mrb[0].mxu0
    %738 = vdwg.mxu0
    %v739 = vmul.f32 %v736, 0.5
    %v740 = vtanh.pop %v739
    %v741 = vmul.f32 %v740, 0.5
    %v742 = vadd.f32 %v741, 0.5
    %v743 = vtanh.pop %v736
    %745 = vrot.lane.b32.xlu0 %v492, 32
    %v746 = vpop.permute.xlu0 %745
    %v748 = vmul.f32 %v742, %v746
    %750 = vrot.lane.b32.xlu0 %v743, 64
    %v751 = vpop.permute.xlu0 %750
    %v753 = vmul.f32 %v742, %v751
    %755 = vrot.lane.b32.xlu0 %v753, 32
    %v756 = vpop.permute.xlu0 %755
    %v758 = vadd.f32 %v748, %v756
    %v759 = vtanh.pop %v758
    %761 = vrot.lane.b32.xlu0 %v759, 64
    %v762 = vpop.permute.xlu0 %761
    %v764 = vmul.f32 %v742, %v762
    %v765 = vld [vmem:[#allocation2 + $0x20] sm:$0xff]
    %v766 = vld [vmem:[#allocation2 + $0x28] sm:$0xff]
    %v767 = vld [vmem:[#allocation2 + $0x30] sm:$0xff]
    %v768 = vld [vmem:[#allocation2 + $0x38] sm:$0xff]
    %769 = vmatprep.subr.mxu0 %v405
    %770 = vmatpush1.msra.mxu0 %v404
    %771 = vmatprep.subr.mxu0 %v409
    %772 = vmatpush1.msra.mxu0 %v408
    %773 = vmatprep.subr.mxu0 %v413
    %774 = vmatpush1.msra.mxu0 %v412
    %775 = vmatprep.subr.mxu0 %v417
    %776 = vmatpush1.msra.mxu0 %v416
    %777 = vmatprep.subr.mxu0 %v421
    %778 = vmatpush1.msra.mxu0 %v420
    %779 = vmatprep.subr.mxu0 %v425
    %780 = vmatpush1.msra.mxu0 %v424
    %781 = vmatprep.subr.mxu0 %v429
    %782 = vmatpush1.msra.mxu0 %v428
    %783 = vmatprep.subr.mxu0 %v433
    %784 = vmatpush1.msra.mxu0 %v432
    %785 = vmatprep.subr.mxu0 %v437
    %786 = vmatpush1.msra.mxu0 %v436
    %787 = vmatprep.subr.mxu0 %v441
    %788 = vmatpush1.msra.mxu0 %v440
    %789 = vmatprep.subr.mxu0 %v445
    %790 = vmatpush1.msra.mxu0 %v444
    %791 = vmatprep.subr.mxu0 %v449
    %792 = vmatpush1.msra.mxu0 %v448
    %793 = vmatprep.subr.mxu0 %v453
    %794 = vmatpush1.msra.mxu0 %v452
    %795 = vmatprep.subr.mxu0 %v457
    %796 = vmatpush1.msra.mxu0 %v456
    %797 = vmatprep.subr.mxu0 %v461
    %798 = vmatpush1.msra.mxu0 %v460
    %799 = vmatprep.subr.mxu0 %v465
    %800 = vmatpush1.msra.mxu0 %v464
    %801 = vmatprep.subr.mxu0 0.0
    %802 = vmatpush1.msra.mxu0 0.0
    %803 = vmatprep.subr.mxu0 0.0
    %804 = vmatpush1.msra.mxu0 0.0
    %805 = vmatprep.subr.mxu0 0.0
    %806 = vmatpush1.msra.mxu0 0.0
    %807 = vmatprep.subr.mxu0 0.0
    %808 = vmatpush1.msra.mxu0 0.0
    %809 = vmatprep.subr.mxu0 0.0
    %810 = vmatpush1.msra.mxu0 0.0
    %811 = vmatprep.subr.mxu0 0.0
    %812 = vmatpush1.msra.mxu0 0.0
    %813 = vmatprep.subr.mxu0 0.0
    %814 = vmatpush1.msra.mxu0 0.0
    %815 = vmatprep.subr.mxu0 0.0
    %816 = vmatpush1.msra.mxu0 0.0
    %817 = vmatprep.subr.mxu0 0.0
    %818 = vmatpush1.msra.mxu0 0.0
    %819 = vmatprep.subr.mxu0 0.0
    %820 = vmatpush1.msra.mxu0 0.0
    %821 = vmatprep.subr.mxu0 0.0
    %822 = vmatpush1.msra.mxu0 0.0
    %823 = vmatprep.subr.mxu0 0.0
    %824 = vmatpush1.msra.mxu0 0.0
    %825 = vmatprep.subr.mxu0 0.0
    %826 = vmatpush1.msra.mxu0 0.0
    %827 = vmatprep.subr.mxu0 0.0
    %828 = vmatpush1.msra.mxu0 0.0
    %829 = vmatprep.subr.mxu0 0.0
    %830 = vmatpush1.msra.mxu0 0.0
    %831 = vmatprep.subr.mxu0 0.0
    %832 = vmatpush1.msra.mxu0 0.0
    %833 = vmatprep.mubr.f32.mxu0 0.0
    %834 = vmatmul.mubr.f32.gmra.mrb[0].mxu0 %v656
    %v835 = vpop.f32.mrb[0].mxu0
    %v836 = vadd.f32 %v765, %v835
    %v837 = vpop.f32.mrb[0].mxu0
    %v838 = vadd.f32 %v766, %v837
    %839 = vdwg.mxu0
    %840 = vmatprep.subr.mxu0 %v407
    %841 = vmatpush1.msra.mxu0 %v406
    %842 = vmatprep.subr.mxu0 %v411
    %843 = vmatpush1.msra.mxu0 %v410
    %844 = vmatprep.subr.mxu0 %v415
    %845 = vmatpush1.msra.mxu0 %v414
    %846 = vmatprep.subr.mxu0 %v419
    %847 = vmatpush1.msra.mxu0 %v418
    %848 = vmatprep.subr.mxu0 %v423
    %849 = vmatpush1.msra.mxu0 %v422
    %850 = vmatprep.subr.mxu0 %v427
    %851 = vmatpush1.msra.mxu0 %v426
    %852 = vmatprep.subr.mxu0 %v431
    %853 = vmatpush1.msra.mxu0 %v430
    %854 = vmatprep.subr.mxu0 %v435
    %855 = vmatpush1.msra.mxu0 %v434
    %856 = vmatprep.subr.mxu0 %v439
    %857 = vmatpush1.msra.mxu0 %v438
    %858 = vmatprep.subr.mxu0 %v443
    %859 = vmatpush1.msra.mxu0 %v442
    %860 = vmatprep.subr.mxu0 %v447
    %861 = vmatpush1.msra.mxu0 %v446
    %862 = vmatprep.subr.mxu0 %v451
    %863 = vmatpush1.msra.mxu0 %v450
    %864 = vmatprep.subr.mxu0 %v455
    %865 = vmatpush1.msra.mxu0 %v454
    %866 = vmatprep.subr.mxu0 %v459
    %867 = vmatpush1.msra.mxu0 %v458
    %868 = vmatprep.subr.mxu0 %v463
    %869 = vmatpush1.msra.mxu0 %v462
    %870 = vmatprep.subr.mxu0 %v467
    %871 = vmatpush1.msra.mxu0 %v466
    %872 = vmatprep.subr.mxu0 0.0
    %873 = vmatpush1.msra.mxu0 0.0
    %874 = vmatprep.subr.mxu0 0.0
    %875 = vmatpush1.msra.mxu0 0.0
    %876 = vmatprep.subr.mxu0 0.0
    %877 = vmatpush1.msra.mxu0 0.0
    %878 = vmatprep.subr.mxu0 0.0
    %879 = vmatpush1.msra.mxu0 0.0
    %880 = vmatprep.subr.mxu0 0.0
    %881 = vmatpush1.msra.mxu0 0.0
    %882 = vmatprep.subr.mxu0 0.0
    %883 = vmatpush1.msra.mxu0 0.0
    %884 = vmatprep.subr.mxu0 0.0
    %885 = vmatpush1.msra.mxu0 0.0
    %886 = vmatprep.subr.mxu0 0.0
    %887 = vmatpush1.msra.mxu0 0.0
    %888 = vmatprep.subr.mxu0 0.0
    %889 = vmatpush1.msra.mxu0 0.0
    %890 = vmatprep.subr.mxu0 0.0
    %891 = vmatpush1.msra.mxu0 0.0
    %892 = vmatprep.subr.mxu0 0.0
    %893 = vmatpush1.msra.mxu0 0.0
    %894 = vmatprep.subr.mxu0 0.0
    %895 = vmatpush1.msra.mxu0 0.0
    %896 = vmatprep.subr.mxu0 0.0
    %897 = vmatpush1.msra.mxu0 0.0
    %898 = vmatprep.subr.mxu0 0.0
    %899 = vmatpush1.msra.mxu0 0.0
    %900 = vmatprep.subr.mxu0 0.0
    %901 = vmatpush1.msra.mxu0 0.0
    %902 = vmatprep.subr.mxu0 0.0
    %903 = vmatpush1.msra.mxu0 0.0
    %904 = vmatprep.mubr.f32.mxu0 0.0
    %905 = vmatmul.mubr.f32.gmra.mrb[0].mxu0 %v656
    %v906 = vpop.f32.mrb[0].mxu0
    %v907 = vadd.f32 %v767, %v906
    %v908 = vpop.f32.mrb[0].mxu0
    %v909 = vadd.f32 %v768, %v908
    %910 = vdwg.mxu0
    %v911 = vmul.f32 %v836, 0.5
    %v912 = vtanh.pop %v911
    %v913 = vmul.f32 %v912, 0.5
    %v914 = vadd.f32 %v913, 0.5
    %v915 = vmul.f32 %v838, 0.5
    %v916 = vtanh.pop %v915
    %v917 = vmul.f32 %v916, 0.5
    %v918 = vadd.f32 %v917, 0.5
    %v919 = vtanh.pop %v907
    %v920 = vmul.f32 %v909, 0.5
    %v921 = vtanh.pop %v920
    %v922 = vmul.f32 %v921, 0.5
    %v923 = vadd.f32 %v922, 0.5
    %v924 = vmul.f32 %v918, %v654
    %v925 = vmul.f32 %v914, %v919
    %v926 = vadd.f32 %v924, %v925
    %v927 = vtanh.pop %v926
    %v928 = vmul.f32 %v923, %v927
    %v929 = vld [vmem:[%s12 + $0x8] sm:$0xff]
    %v930 = vmul.f32 %v928, %v929
    %932 = vrot.lane.b32.xlu0 %v764, 32
    %v933 = vpop.permute.xlu0 %932
    %v934 = vsel %vm665, %v933, 0
    %936 = vmatprep.subr.mxu0 0.0
    %937 = vmatpush1.msra.mxu0 %v468
    %938 = vmatprep.subr.mxu0 0.0
    %939 = vmatpush1.msra.mxu0 %v469
    %940 = vmatprep.subr.mxu0 0.0
    %941 = vmatpush1.msra.mxu0 %v470
    %942 = vmatprep.subr.mxu0 0.0
    %943 = vmatpush1.msra.mxu0 %v471
    %944 = vmatprep.subr.mxu0 0.0
    %945 = vmatpush1.msra.mxu0 %v472
    %946 = vmatprep.subr.mxu0 0.0
    %947 = vmatpush1.msra.mxu0 %v473
    %948 = vmatprep.subr.mxu0 0.0
    %949 = vmatpush1.msra.mxu0 %v474
    %950 = vmatprep.subr.mxu0 0.0
    %951 = vmatpush1.msra.mxu0 %v475
    %952 = vmatprep.subr.mxu0 0.0
    %953 = vmatpush1.msra.mxu0 %v476
    %954 = vmatprep.subr.mxu0 0.0
    %955 = vmatpush1.msra.mxu0 %v477
    %956 = vmatprep.subr.mxu0 0.0
    %957 = vmatpush1.msra.mxu0 %v478
    %958 = vmatprep.subr.mxu0 0.0
    %959 = vmatpush1.msra.mxu0 %v479
    %960 = vmatprep.subr.mxu0 0.0
    %961 = vmatpush1.msra.mxu0 %v480
    %962 = vmatprep.subr.mxu0 0.0
    %963 = vmatpush1.msra.mxu0 %v481
    %964 = vmatprep.subr.mxu0 0.0
    %965 = vmatpush1.msra.mxu0 %v482
    %966 = vmatprep.subr.mxu0 0.0
    %967 = vmatpush1.msra.mxu0 %v483
    %968 = vmatprep.subr.mxu0 0.0
    %969 = vmatpush1.msra.mxu0 %v484
    %970 = vmatprep.subr.mxu0 0.0
    %971 = vmatpush1.msra.mxu0 %v485
    %972 = vmatprep.subr.mxu0 0.0
    %973 = vmatpush1.msra.mxu0 %v486
    %974 = vmatprep.subr.mxu0 0.0
    %975 = vmatpush1.msra.mxu0 %v487
    %976 = vmatprep.subr.mxu0 0.0
    %977 = vmatpush1.msra.mxu0 0.0
    %978 = vmatprep.subr.mxu0 0.0
    %979 = vmatpush1.msra.mxu0 0.0
    %980 = vmatprep.subr.mxu0 0.0
    %981 = vmatpush1.msra.mxu0 0.0
    %982 = vmatprep.subr.mxu0 0.0
    %983 = vmatpush1.msra.mxu0 0.0
    %984 = vmatprep.subr.mxu0 0.0
    %985 = vmatpush1.msra.mxu0 0.0
    %986 = vmatprep.subr.mxu0 0.0
    %987 = vmatpush1.msra.mxu0 0.0
    %988 = vmatprep.subr.mxu0 0.0
    %989 = vmatpush1.msra.mxu0 0.0
    %990 = vmatprep.subr.mxu0 0.0
    %991 = vmatpush1.msra.mxu0 0.0
    %992 = vmatprep.subr.mxu0 0.0
    %993 = vmatpush1.msra.mxu0 0.0
    %994 = vmatprep.subr.mxu0 0.0
    %995 = vmatpush1.msra.mxu0 0.0
    %996 = vmatprep.subr.mxu0 0.0
    %997 = vmatpush1.msra.mxu0 0.0
    %998 = vmatprep.subr.mxu0 0.0
    %999 = vmatpush1.msra.mxu0 0.0
    %1000 = vmatprep.mubr.f32.mxu0 %v934
    %1001 = vmatmul.mubr.f32.gmra.mrb[0].mxu0 %v930
    %v1002 = vpop.f32.mrb[0].mxu0
    %v1003 = vadd.f32 %v663, %v1002
    %v1004 = vpop.f32.mrb[0].mxu0
    %1005 = vdwg.mxu0
    %v1006 = vmul.f32 %v1003, 0.5
    %v1007 = vtanh.pop %v1006
    %v1008 = vmul.f32 %v1007, 0.5
    %v1009 = vadd.f32 %v1008, 0.5
    %v1010 = vtanh.pop %v1003
    %v1011 = vmul.f32 %v1009, %v758
    %1013 = vrot.lane.b32.xlu0 %v1010, 64
    %v1014 = vpop.permute.xlu0 %1013
    %v1016 = vmul.f32 %v1009, %v1014
    %1018 = vrot.lane.b32.xlu0 %v1016, 32
    %v1019 = vpop.permute.xlu0 %1018
    %v1021 = vadd.f32 %v1011, %v1019
    %v1022 = vtanh.pop %v1021
    %1024 = vrot.lane.b32.xlu0 %v1022, 64
    %v1025 = vpop.permute.xlu0 %1024
    %v1027 = vmul.f32 %v1009, %v1025
    %v1028 = vld [vmem:[#allocation2 + $0x40] sm:$0xff]
    %v1029 = vld [vmem:[#allocation2 + $0x48] sm:$0xff]
    %v1030 = vld [vmem:[#allocation2 + $0x50] sm:$0xff]
    %v1031 = vld [vmem:[#allocation2 + $0x58] sm:$0xff]
    %1032 = vmatprep.subr.mxu0 %v405
    %1033 = vmatpush1.msra.mxu0 %v404
    %1034 = vmatprep.subr.mxu0 %v409
    %1035 = vmatpush1.msra.mxu0 %v408
    %1036 = vmatprep.subr.mxu0 %v413
    %1037 = vmatpush1.msra.mxu0 %v412
    %1038 = vmatprep.subr.mxu0 %v417
    %1039 = vmatpush1.msra.mxu0 %v416
    %1040 = vmatprep.subr.mxu0 %v421
    %1041 = vmatpush1.msra.mxu0 %v420
    %1042 = vmatprep.subr.mxu0 %v425
    %1043 = vmatpush1.msra.mxu0 %v424
    %1044 = vmatprep.subr.mxu0 %v429
    %1045 = vmatpush1.msra.mxu0 %v428
    %1046 = vmatprep.subr.mxu0 %v433
    %1047 = vmatpush1.msra.mxu0 %v432
    %1048 = vmatprep.subr.mxu0 %v437
    %1049 = vmatpush1.msra.mxu0 %v436
    %1050 = vmatprep.subr.mxu0 %v441
    %1051 = vmatpush1.msra.mxu0 %v440
    %1052 = vmatprep.subr.mxu0 %v445
    %1053 = vmatpush1.msra.mxu0 %v444
    %1054 = vmatprep.subr.mxu0 %v449
    %1055 = vmatpush1.msra.mxu0 %v448
    %1056 = vmatprep.subr.mxu0 %v453
    %1057 = vmatpush1.msra.mxu0 %v452
    %1058 = vmatprep.subr.mxu0 %v457
    %1059 = vmatpush1.msra.mxu0 %v456
    %1060 = vmatprep.subr.mxu0 %v461
    %1061 = vmatpush1.msra.mxu0 %v460
    %1062 = vmatprep.subr.mxu0 %v465
    %1063 = vmatpush1.msra.mxu0 %v464
    %1064 = vmatprep.subr.mxu0 0.0
    %1065 = vmatpush1.msra.mxu0 0.0
    %1066 = vmatprep.subr.mxu0 0.0
    %1067 = vmatpush1.msra.mxu0 0.0
    %1068 = vmatprep.subr.mxu0 0.0
    %1069 = vmatpush1.msra.mxu0 0.0
    %1070 = vmatprep.subr.mxu0 0.0
    %1071 = vmatpush1.msra.mxu0 0.0
    %1072 = vmatprep.subr.mxu0 0.0
    %1073 = vmatpush1.msra.mxu0 0.0
    %1074 = vmatprep.subr.mxu0 0.0
    %1075 = vmatpush1.msra.mxu0 0.0
    %1076 = vmatprep.subr.mxu0 0.0
    %1077 = vmatpush1.msra.mxu0 0.0
    %1078 = vmatprep.subr.mxu0 0.0
    %1079 = vmatpush1.msra.mxu0 0.0
    %1080 = vmatprep.subr.mxu0 0.0
    %1081 = vmatpush1.msra.mxu0 0.0
    %1082 = vmatprep.subr.mxu0 0.0
    %1083 = vmatpush1.msra.mxu0 0.0
    %1084 = vmatprep.subr.mxu0 0.0
    %1085 = vmatpush1.msra.mxu0 0.0
    %1086 = vmatprep.subr.mxu0 0.0
    %1087 = vmatpush1.msra.mxu0 0.0
    %1088 = vmatprep.subr.mxu0 0.0
    %1089 = vmatpush1.msra.mxu0 0.0
    %1090 = vmatprep.subr.mxu0 0.0
    %1091 = vmatpush1.msra.mxu0 0.0
    %1092 = vmatprep.subr.mxu0 0.0
    %1093 = vmatpush1.msra.mxu0 0.0
    %1094 = vmatprep.subr.mxu0 0.0
    %1095 = vmatpush1.msra.mxu0 0.0
    %1096 = vmatprep.mubr.f32.mxu0 0.0
    %1097 = vmatmul.mubr.f32.gmra.mrb[0].mxu0 %v928
    %v1098 = vpop.f32.mrb[0].mxu0
    %v1099 = vadd.f32 %v1028, %v1098
    %v1100 = vpop.f32.mrb[0].mxu0
    %v1101 = vadd.f32 %v1029, %v1100
    %1102 = vdwg.mxu0
    %1103 = vmatprep.subr.mxu0 %v407
    %1104 = vmatpush1.msra.mxu0 %v406
    %1105 = vmatprep.subr.mxu0 %v411
    %1106 = vmatpush1.msra.mxu0 %v410
    %1107 = vmatprep.subr.mxu0 %v415
    %1108 = vmatpush1.msra.mxu0 %v414
    %1109 = vmatprep.subr.mxu0 %v419
    %1110 = vmatpush1.msra.mxu0 %v418
    %1111 = vmatprep.subr.mxu0 %v423
    %1112 = vmatpush1.msra.mxu0 %v422
    %1113 = vmatprep.subr.mxu0 %v427
    %1114 = vmatpush1.msra.mxu0 %v426
    %1115 = vmatprep.subr.mxu0 %v431
    %1116 = vmatpush1.msra.mxu0 %v430
    %1117 = vmatprep.subr.mxu0 %v435
    %1118 = vmatpush1.msra.mxu0 %v434
    %1119 = vmatprep.subr.mxu0 %v439
    %1120 = vmatpush1.msra.mxu0 %v438
    %1121 = vmatprep.subr.mxu0 %v443
    %1122 = vmatpush1.msra.mxu0 %v442
    %1123 = vmatprep.subr.mxu0 %v447
    %1124 = vmatpush1.msra.mxu0 %v446
    %1125 = vmatprep.subr.mxu0 %v451
    %1126 = vmatpush1.msra.mxu0 %v450
    %1127 = vmatprep.subr.mxu0 %v455
    %1128 = vmatpush1.msra.mxu0 %v454
    %1129 = vmatprep.subr.mxu0 %v459
    %1130 = vmatpush1.msra.mxu0 %v458
    %1131 = vmatprep.subr.mxu0 %v463
    %1132 = vmatpush1.msra.mxu0 %v462
    %1133 = vmatprep.subr.mxu0 %v467
    %1134 = vmatpush1.msra.mxu0 %v466
    %1135 = vmatprep.subr.mxu0 0.0
    %1136 = vmatpush1.msra.mxu0 0.0
    %1137 = vmatprep.subr.mxu0 0.0
    %1138 = vmatpush1.msra.mxu0 0.0
    %1139 = vmatprep.subr.mxu0 0.0
    %1140 = vmatpush1.msra.mxu0 0.0
    %1141 = vmatprep.subr.mxu0 0.0
    %1142 = vmatpush1.msra.mxu0 0.0
    %1143 = vmatprep.subr.mxu0 0.0
    %1144 = vmatpush1.msra.mxu0 0.0
    %1145 = vmatprep.subr.mxu0 0.0
    %1146 = vmatpush1.msra.mxu0 0.0
    %1147 = vmatprep.subr.mxu0 0.0
    %1148 = vmatpush1.msra.mxu0 0.0
    %1149 = vmatprep.subr.mxu0 0.0
    %1150 = vmatpush1.msra.mxu0 0.0
    %1151 = vmatprep.subr.mxu0 0.0
    %1152 = vmatpush1.msra.mxu0 0.0
    %1153 = vmatprep.subr.mxu0 0.0
    %1154 = vmatpush1.msra.mxu0 0.0
    %1155 = vmatprep.subr.mxu0 0.0
    %1156 = vmatpush1.msra.mxu0 0.0
    %1157 = vmatprep.subr.mxu0 0.0
    %1158 = vmatpush1.msra.mxu0 0.0
    %1159 = vmatprep.subr.mxu0 0.0
    %1160 = vmatpush1.msra.mxu0 0.0
    %1161 = vmatprep.subr.mxu0 0.0
    %1162 = vmatpush1.msra.mxu0 0.0
    %1163 = vmatprep.subr.mxu0 0.0
    %1164 = vmatpush1.msra.mxu0 0.0
    %1165 = vmatprep.subr.mxu0 0.0
    %1166 = vmatpush1.msra.mxu0 0.0
    %1167 = vmatprep.mubr.f32.mxu0 0.0
    %1168 = vmatmul.mubr.f32.gmra.mrb[0].mxu0 %v928
    %v1169 = vpop.f32.mrb[0].mxu0
    %v1170 = vadd.f32 %v1030, %v1169
    %v1171 = vpop.f32.mrb[0].mxu0
    %v1172 = vadd.f32 %v1031, %v1171
    %1173 = vdwg.mxu0
    %v1174 = vmul.f32 %v1099, 0.5
    %v1175 = vtanh.pop %v1174
    %v1176 = vmul.f32 %v1175, 0.5
    %v1177 = vadd.f32 %v1176, 0.5
    %v1178 = vmul.f32 %v1101, 0.5
    %v1179 = vtanh.pop %v1178
    %v1180 = vmul.f32 %v1179, 0.5
    %v1181 = vadd.f32 %v1180, 0.5
    %v1182 = vtanh.pop %v1170
    %v1183 = vmul.f32 %v1172, 0.5
    %v1184 = vtanh.pop %v1183
    %v1185 = vmul.f32 %v1184, 0.5
    %v1186 = vadd.f32 %v1185, 0.5
    %v1187 = vmul.f32 %v1181, %v926
    %v1188 = vmul.f32 %v1177, %v1182
    %v1189 = vadd.f32 %v1187, %v1188
    %v1190 = vtanh.pop %v1189
    %v1191 = vmul.f32 %v1186, %v1190
    %v1192 = vld [vmem:[%s12 + $0x10] sm:$0xff]
    %v1193 = vmul.f32 %v1191, %v1192
    %1195 = vrot.lane.b32.xlu0 %v1027, 32
    %v1196 = vpop.permute.xlu0 %1195
    %v1197 = vsel %vm665, %v1196, 0
    %1199 = vmatprep.subr.mxu0 0.0
    %1200 = vmatpush1.msra.mxu0 %v468
    %1201 = vmatprep.subr.mxu0 0.0
    %1202 = vmatpush1.msra.mxu0 %v469
    %1203 = vmatprep.subr.mxu0 0.0
    %1204 = vmatpush1.msra.mxu0 %v470
    %1205 = vmatprep.subr.mxu0 0.0
    %1206 = vmatpush1.msra.mxu0 %v471
    %1207 = vmatprep.subr.mxu0 0.0
    %1208 = vmatpush1.msra.mxu0 %v472
    %1209 = vmatprep.subr.mxu0 0.0
    %1210 = vmatpush1.msra.mxu0 %v473
    %1211 = vmatprep.subr.mxu0 0.0
    %1212 = vmatpush1.msra.mxu0 %v474
    %1213 = vmatprep.subr.mxu0 0.0
    %1214 = vmatpush1.msra.mxu0 %v475
    %1215 = vmatprep.subr.mxu0 0.0
    %1216 = vmatpush1.msra.mxu0 %v476
    %1217 = vmatprep.subr.mxu0 0.0
    %1218 = vmatpush1.msra.mxu0 %v477
    %1219 = vmatprep.subr.mxu0 0.0
    %1220 = vmatpush1.msra.mxu0 %v478
    %1221 = vmatprep.subr.mxu0 0.0
    %1222 = vmatpush1.msra.mxu0 %v479
    %1223 = vmatprep.subr.mxu0 0.0
    %1224 = vmatpush1.msra.mxu0 %v480
    %1225 = vmatprep.subr.mxu0 0.0
    %1226 = vmatpush1.msra.mxu0 %v481
    %1227 = vmatprep.subr.mxu0 0.0
    %1228 = vmatpush1.msra.mxu0 %v482
    %1229 = vmatprep.subr.mxu0 0.0
    %1230 = vmatpush1.msra.mxu0 %v483
    %1231 = vmatprep.subr.mxu0 0.0
    %1232 = vmatpush1.msra.mxu0 %v484
    %1233 = vmatprep.subr.mxu0 0.0
    %1234 = vmatpush1.msra.mxu0 %v485
    %1235 = vmatprep.subr.mxu0 0.0
    %1236 = vmatpush1.msra.mxu0 %v486
    %1237 = vmatprep.subr.mxu0 0.0
    %1238 = vmatpush1.msra.mxu0 %v487
    %1239 = vmatprep.subr.mxu0 0.0
    %1240 = vmatpush1.msra.mxu0 0.0
    %1241 = vmatprep.subr.mxu0 0.0
    %1242 = vmatpush1.msra.mxu0 0.0
    %1243 = vmatprep.subr.mxu0 0.0
    %1244 = vmatpush1.msra.mxu0 0.0
    %1245 = vmatprep.subr.mxu0 0.0
    %1246 = vmatpush1.msra.mxu0 0.0
    %1247 = vmatprep.subr.mxu0 0.0
    %1248 = vmatpush1.msra.mxu0 0.0
    %1249 = vmatprep.subr.mxu0 0.0
    %1250 = vmatpush1.msra.mxu0 0.0
    %1251 = vmatprep.subr.mxu0 0.0
    %1252 = vmatpush1.msra.mxu0 0.0
    %1253 = vmatprep.subr.mxu0 0.0
    %1254 = vmatpush1.msra.mxu0 0.0
    %1255 = vmatprep.subr.mxu0 0.0
    %1256 = vmatpush1.msra.mxu0 0.0
    %1257 = vmatprep.subr.mxu0 0.0
    %1258 = vmatpush1.msra.mxu0 0.0
    %1259 = vmatprep.subr.mxu0 0.0
    %1260 = vmatpush1.msra.mxu0 0.0
    %1261 = vmatprep.subr.mxu0 0.0
    %1262 = vmatpush1.msra.mxu0 0.0
    %1263 = vmatprep.mubr.f32.mxu0 %v1197
    %1264 = vmatmul.mubr.f32.gmra.mrb[0].mxu0 %v1193
    %v1265 = vpop.f32.mrb[0].mxu0
    %v1266 = vadd.f32 %v663, %v1265
    %v1267 = vpop.f32.mrb[0].mxu0
    %1268 = vdwg.mxu0
    %v1269 = vmul.f32 %v1266, 0.5
    %v1270 = vtanh.pop %v1269
    %v1271 = vmul.f32 %v1270, 0.5
    %v1272 = vadd.f32 %v1271, 0.5
    %v1273 = vtanh.pop %v1266
    %v1274 = vmul.f32 %v1272, %v1021
    %1276 = vrot.lane.b32.xlu0 %v1273, 64
    %v1277 = vpop.permute.xlu0 %1276
    %v1279 = vmul.f32 %v1272, %v1277
    %1281 = vrot.lane.b32.xlu0 %v1279, 32
    %v1282 = vpop.permute.xlu0 %1281
    %v1284 = vadd.f32 %v1274, %v1282
    %v1285 = vtanh.pop %v1284
    %1287 = vrot.lane.b32.xlu0 %v1285, 64
    %v1288 = vpop.permute.xlu0 %1287
    %v1290 = vmul.f32 %v1272, %v1288
    %v1291 = vld [vmem:[#allocation2 + $0x60] sm:$0xff]
    %v1292 = vld [vmem:[#allocation2 + $0x68] sm:$0xff]
    %v1293 = vld [vmem:[#allocation2 + $0x70] sm:$0xff]
    %v1294 = vld [vmem:[#allocation2 + $0x78] sm:$0xff]
    %1295 = vmatprep.subr.mxu0 %v405
    %1296 = vmatpush1.msra.mxu0 %v404
    %1297 = vmatprep.subr.mxu0 %v409
    %1298 = vmatpush1.msra.mxu0 %v408
    %1299 = vmatprep.subr.mxu0 %v413
    %1300 = vmatpush1.msra.mxu0 %v412
    %1301 = vmatprep.subr.mxu0 %v417
    %1302 = vmatpush1.msra.mxu0 %v416
    %1303 = vmatprep.subr.mxu0 %v421
    %1304 = vmatpush1.msra.mxu0 %v420
    %1305 = vmatprep.subr.mxu0 %v425
    %1306 = vmatpush1.msra.mxu0 %v424
    %1307 = vmatprep.subr.mxu0 %v429
    %1308 = vmatpush1.msra.mxu0 %v428
    %1309 = vmatprep.subr.mxu0 %v433
    %1310 = vmatpush1.msra.mxu0 %v432
    %1311 = vmatprep.subr.mxu0 %v437
    %1312 = vmatpush1.msra.mxu0 %v436
    %1313 = vmatprep.subr.mxu0 %v441
    %1314 = vmatpush1.msra.mxu0 %v440
    %1315 = vmatprep.subr.mxu0 %v445
    %1316 = vmatpush1.msra.mxu0 %v444
    %1317 = vmatprep.subr.mxu0 %v449
    %1318 = vmatpush1.msra.mxu0 %v448
    %1319 = vmatprep.subr.mxu0 %v453
    %1320 = vmatpush1.msra.mxu0 %v452
    %1321 = vmatprep.subr.mxu0 %v457
    %1322 = vmatpush1.msra.mxu0 %v456
    %1323 = vmatprep.subr.mxu0 %v461
    %1324 = vmatpush1.msra.mxu0 %v460
    %1325 = vmatprep.subr.mxu0 %v465
    %1326 = vmatpush1.msra.mxu0 %v464
    %1327 = vmatprep.subr.mxu0 0.0
    %1328 = vmatpush1.msra.mxu0 0.0
    %1329 = vmatprep.subr.mxu0 0.0
    %1330 = vmatpush1.msra.mxu0 0.0
    %1331 = vmatprep.subr.mxu0 0.0
    %1332 = vmatpush1.msra.mxu0 0.0
    %1333 = vmatprep.subr.mxu0 0.0
    %1334 = vmatpush1.msra.mxu0 0.0
    %1335 = vmatprep.subr.mxu0 0.0
    %1336 = vmatpush1.msra.mxu0 0.0
    %1337 = vmatprep.subr.mxu0 0.0
    %1338 = vmatpush1.msra.mxu0 0.0
    %1339 = vmatprep.subr.mxu0 0.0
    %1340 = vmatpush1.msra.mxu0 0.0
    %1341 = vmatprep.subr.mxu0 0.0
    %1342 = vmatpush1.msra.mxu0 0.0
    %1343 = vmatprep.subr.mxu0 0.0
    %1344 = vmatpush1.msra.mxu0 0.0
    %1345 = vmatprep.subr.mxu0 0.0
    %1346 = vmatpush1.msra.mxu0 0.0
    %1347 = vmatprep.subr.mxu0 0.0
    %1348 = vmatpush1.msra.mxu0 0.0
    %1349 = vmatprep.subr.mxu0 0.0
    %1350 = vmatpush1.msra.mxu0 0.0
    %1351 = vmatprep.subr.mxu0 0.0
    %1352 = vmatpush1.msra.mxu0 0.0
    %1353 = vmatprep.subr.mxu0 0.0
    %1354 = vmatpush1.msra.mxu0 0.0
    %1355 = vmatprep.subr.mxu0 0.0
    %1356 = vmatpush1.msra.mxu0 0.0
    %1357 = vmatprep.subr.mxu0 0.0
    %1358 = vmatpush1.msra.mxu0 0.0
    %1359 = vmatprep.mubr.f32.mxu0 0.0
    %1360 = vmatmul.mubr.f32.gmra.mrb[0].mxu0 %v1191
    %v1361 = vpop.f32.mrb[0].mxu0
    %v1362 = vadd.f32 %v1291, %v1361
    %v1363 = vpop.f32.mrb[0].mxu0
    %v1364 = vadd.f32 %v1292, %v1363
    %1365 = vdwg.mxu0
    %1366 = vmatprep.subr.mxu0 %v407
    %1367 = vmatpush1.msra.mxu0 %v406
    %1368 = vmatprep.subr.mxu0 %v411
    %1369 = vmatpush1.msra.mxu0 %v410
    %1370 = vmatprep.subr.mxu0 %v415
    %1371 = vmatpush1.msra.mxu0 %v414
    %1372 = vmatprep.subr.mxu0 %v419
    %1373 = vmatpush1.msra.mxu0 %v418
    %1374 = vmatprep.subr.mxu0 %v423
    %1375 = vmatpush1.msra.mxu0 %v422
    %1376 = vmatprep.subr.mxu0 %v427
    %1377 = vmatpush1.msra.mxu0 %v426
    %1378 = vmatprep.subr.mxu0 %v431
    %1379 = vmatpush1.msra.mxu0 %v430
    %1380 = vmatprep.subr.mxu0 %v435
    %1381 = vmatpush1.msra.mxu0 %v434
    %1382 = vmatprep.subr.mxu0 %v439
    %1383 = vmatpush1.msra.mxu0 %v438
    %1384 = vmatprep.subr.mxu0 %v443
    %1385 = vmatpush1.msra.mxu0 %v442
    %1386 = vmatprep.subr.mxu0 %v447
    %1387 = vmatpush1.msra.mxu0 %v446
    %1388 = vmatprep.subr.mxu0 %v451
    %1389 = vmatpush1.msra.mxu0 %v450
    %1390 = vmatprep.subr.mxu0 %v455
    %1391 = vmatpush1.msra.mxu0 %v454
    %1392 = vmatprep.subr.mxu0 %v459
    %1393 = vmatpush1.msra.mxu0 %v458
    %1394 = vmatprep.subr.mxu0 %v463
    %1395 = vmatpush1.msra.mxu0 %v462
    %1396 = vmatprep.subr.mxu0 %v467
    %1397 = vmatpush1.msra.mxu0 %v466
    %1398 = vmatprep.subr.mxu0 0.0
    %1399 = vmatpush1.msra.mxu0 0.0
    %1400 = vmatprep.subr.mxu0 0.0
    %1401 = vmatpush1.msra.mxu0 0.0
    %1402 = vmatprep.subr.mxu0 0.0
    %1403 = vmatpush1.msra.mxu0 0.0
    %1404 = vmatprep.subr.mxu0 0.0
    %1405 = vmatpush1.msra.mxu0 0.0
    %1406 = vmatprep.subr.mxu0 0.0
    %1407 = vmatpush1.msra.mxu0 0.0
    %1408 = vmatprep.subr.mxu0 0.0
    %1409 = vmatpush1.msra.mxu0 0.0
    %1410 = vmatprep.subr.mxu0 0.0
    %1411 = vmatpush1.msra.mxu0 0.0
    %1412 = vmatprep.subr.mxu0 0.0
    %1413 = vmatpush1.msra.mxu0 0.0
    %1414 = vmatprep.subr.mxu0 0.0
    %1415 = vmatpush1.msra.mxu0 0.0
    %1416 = vmatprep.subr.mxu0 0.0
    %1417 = vmatpush1.msra.mxu0 0.0
    %1418 = vmatprep.subr.mxu0 0.0
    %1419 = vmatpush1.msra.mxu0 0.0
    %1420 = vmatprep.subr.mxu0 0.0
    %1421 = vmatpush1.msra.mxu0 0.0
    %1422 = vmatprep.subr.mxu0 0.0
    %1423 = vmatpush1.msra.mxu0 0.0
    %1424 = vmatprep.subr.mxu0 0.0
    %1425 = vmatpush1.msra.mxu0 0.0
    %1426 = vmatprep.subr.mxu0 0.0
    %1427 = vmatpush1.msra.mxu0 0.0
    %1428 = vmatprep.subr.mxu0 0.0
    %1429 = vmatpush1.msra.mxu0 0.0
    %1430 = vmatprep.mubr.f32.mxu0 0.0
    %1431 = vmatmul.mubr.f32.gmra.mrb[0].mxu0 %v1191
    %v1432 = vpop.f32.mrb[0].mxu0
    %v1433 = vadd.f32 %v1293, %v1432
    %v1434 = vpop.f32.mrb[0].mxu0
    %v1435 = vadd.f32 %v1294, %v1434
    %1436 = vdwg.mxu0
    %v1437 = vmul.f32 %v1362, 0.5
    %v1438 = vtanh.pop %v1437
    %v1439 = vmul.f32 %v1438, 0.5
    %v1440 = vadd.f32 %v1439, 0.5
    %v1441 = vmul.f32 %v1364, 0.5
    %v1442 = vtanh.pop %v1441
    %v1443 = vmul.f32 %v1442, 0.5
    %v1444 = vadd.f32 %v1443, 0.5
    %v1445 = vtanh.pop %v1433
    %v1446 = vmul.f32 %v1435, 0.5
    %v1447 = vtanh.pop %v1446
    %v1448 = vmul.f32 %v1447, 0.5
    %v1449 = vadd.f32 %v1448, 0.5
    %v1450 = vmul.f32 %v1444, %v1189
    %v1451 = vmul.f32 %v1440, %v1445
    %v1452 = vadd.f32 %v1450, %v1451
    %v1453 = vtanh.pop %v1452
    %v1454 = vmul.f32 %v1449, %v1453
    %v1455 = vld [vmem:[%s12 + $0x18] sm:$0xff]
    %v1456 = vmul.f32 %v1454, %v1455
    %1458 = vrot.lane.b32.xlu0 %v1290, 32
    %v1459 = vpop.permute.xlu0 %1458
    %v1460 = vsel %vm665, %v1459, 0
    %1462 = vmatprep.subr.mxu0 0.0
    %1463 = vmatpush1.msra.mxu0 %v468
    %1464 = vmatprep.subr.mxu0 0.0
    %1465 = vmatpush1.msra.mxu0 %v469
    %1466 = vmatprep.subr.mxu0 0.0
    %1467 = vmatpush1.msra.mxu0 %v470
    %1468 = vmatprep.subr.mxu0 0.0
    %1469 = vmatpush1.msra.mxu0 %v471
    %1470 = vmatprep.subr.mxu0 0.0
    %1471 = vmatpush1.msra.mxu0 %v472
    %1472 = vmatprep.subr.mxu0 0.0
    %1473 = vmatpush1.msra.mxu0 %v473
    %1474 = vmatprep.subr.mxu0 0.0
    %1475 = vmatpush1.msra.mxu0 %v474
    %1476 = vmatprep.subr.mxu0 0.0
    %1477 = vmatpush1.msra.mxu0 %v475
    %1478 = vmatprep.subr.mxu0 0.0
    %1479 = vmatpush1.msra.mxu0 %v476
    %1480 = vmatprep.subr.mxu0 0.0
    %1481 = vmatpush1.msra.mxu0 %v477
    %1482 = vmatprep.subr.mxu0 0.0
    %1483 = vmatpush1.msra.mxu0 %v478
    %1484 = vmatprep.subr.mxu0 0.0
    %1485 = vmatpush1.msra.mxu0 %v479
    %1486 = vmatprep.subr.mxu0 0.0
    %1487 = vmatpush1.msra.mxu0 %v480
    %1488 = vmatprep.subr.mxu0 0.0
    %1489 = vmatpush1.msra.mxu0 %v481
    %1490 = vmatprep.subr.mxu0 0.0
    %1491 = vmatpush1.msra.mxu0 %v482
    %1492 = vmatprep.subr.mxu0 0.0
    %1493 = vmatpush1.msra.mxu0 %v483
    %1494 = vmatprep.subr.mxu0 0.0
    %1495 = vmatpush1.msra.mxu0 %v484
    %1496 = vmatprep.subr.mxu0 0.0
    %1497 = vmatpush1.msra.mxu0 %v485
    %1498 = vmatprep.subr.mxu0 0.0
    %1499 = vmatpush1.msra.mxu0 %v486
    %1500 = vmatprep.subr.mxu0 0.0
    %1501 = vmatpush1.msra.mxu0 %v487
    %1502 = vmatprep.subr.mxu0 0.0
    %1503 = vmatpush1.msra.mxu0 0.0
    %1504 = vmatprep.subr.mxu0 0.0
    %1505 = vmatpush1.msra.mxu0 0.0
    %1506 = vmatprep.subr.mxu0 0.0
    %1507 = vmatpush1.msra.mxu0 0.0
    %1508 = vmatprep.subr.mxu0 0.0
    %1509 = vmatpush1.msra.mxu0 0.0
    %1510 = vmatprep.subr.mxu0 0.0
    %1511 = vmatpush1.msra.mxu0 0.0
    %1512 = vmatprep.subr.mxu0 0.0
    %1513 = vmatpush1.msra.mxu0 0.0
    %1514 = vmatprep.subr.mxu0 0.0
    %1515 = vmatpush1.msra.mxu0 0.0
    %1516 = vmatprep.subr.mxu0 0.0
    %1517 = vmatpush1.msra.mxu0 0.0
    %1518 = vmatprep.subr.mxu0 0.0
    %1519 = vmatpush1.msra.mxu0 0.0
    %1520 = vmatprep.subr.mxu0 0.0
    %1521 = vmatpush1.msra.mxu0 0.0
    %1522 = vmatprep.subr.mxu0 0.0
    %1523 = vmatpush1.msra.mxu0 0.0
    %1524 = vmatprep.subr.mxu0 0.0
    %1525 = vmatpush1.msra.mxu0 0.0
    %1526 = vmatprep.mubr.f32.mxu0 %v1460
    %1527 = vmatmul.mubr.f32.gmra.mrb[0].mxu0 %v1456
    %v1528 = vpop.f32.mrb[0].mxu0
    %v1529 = vadd.f32 %v663, %v1528
    %v1530 = vpop.f32.mrb[0].mxu0
    %1531 = vdwg.mxu0
    %v1532 = vmul.f32 %v1529, 0.5
    %v1533 = vtanh.pop %v1532
    %v1534 = vmul.f32 %v1533, 0.5
    %v1535 = vadd.f32 %v1534, 0.5
    %v1536 = vtanh.pop %v1529
    %v1537 = vmul.f32 %v1535, %v1284
    %1539 = vrot.lane.b32.xlu0 %v1536, 64
    %v1540 = vpop.permute.xlu0 %1539
    %v1542 = vmul.f32 %v1535, %v1540
    %1544 = vrot.lane.b32.xlu0 %v1542, 32
    %v1545 = vpop.permute.xlu0 %1544
    %v1547 = vadd.f32 %v1537, %v1545
    %v1548 = vtanh.pop %v1547
    %1550 = vrot.lane.b32.xlu0 %v1548, 64
    %v1551 = vpop.permute.xlu0 %1550
    %v1553 = vmul.f32 %v1535, %v1551
    %v1554 = vld [vmem:[#allocation2 + $0x80] sm:$0xff]
    %v1555 = vld [vmem:[#allocation2 + $0x88] sm:$0xff]
    %v1556 = vld [vmem:[#allocation2 + $0x90] sm:$0xff]
    %v1557 = vld [vmem:[#allocation2 + $0x98] sm:$0xff]
    %1558 = vmatprep.subr.mxu0 %v405
    %1559 = vmatpush1.msra.mxu0 %v404
    %1560 = vmatprep.subr.mxu0 %v409
    %1561 = vmatpush1.msra.mxu0 %v408
    %1562 = vmatprep.subr.mxu0 %v413
    %1563 = vmatpush1.msra.mxu0 %v412
    %1564 = vmatprep.subr.mxu0 %v417
    %1565 = vmatpush1.msra.mxu0 %v416
    %1566 = vmatprep.subr.mxu0 %v421
    %1567 = vmatpush1.msra.mxu0 %v420
    %1568 = vmatprep.subr.mxu0 %v425
    %1569 = vmatpush1.msra.mxu0 %v424
    %1570 = vmatprep.subr.mxu0 %v429
    %1571 = vmatpush1.msra.mxu0 %v428
    %1572 = vmatprep.subr.mxu0 %v433
    %1573 = vmatpush1.msra.mxu0 %v432
    %1574 = vmatprep.subr.mxu0 %v437
    %1575 = vmatpush1.msra.mxu0 %v436
    %1576 = vmatprep.subr.mxu0 %v441
    %1577 = vmatpush1.msra.mxu0 %v440
    %1578 = vmatprep.subr.mxu0 %v445
    %1579 = vmatpush1.msra.mxu0 %v444
    %1580 = vmatprep.subr.mxu0 %v449
    %1581 = vmatpush1.msra.mxu0 %v448
    %1582 = vmatprep.subr.mxu0 %v453
    %1583 = vmatpush1.msra.mxu0 %v452
    %1584 = vmatprep.subr.mxu0 %v457
    %1585 = vmatpush1.msra.mxu0 %v456
    %1586 = vmatprep.subr.mxu0 %v461
    %1587 = vmatpush1.msra.mxu0 %v460
    %1588 = vmatprep.subr.mxu0 %v465
    %1589 = vmatpush1.msra.mxu0 %v464
    %1590 = vmatprep.subr.mxu0 0.0
    %1591 = vmatpush1.msra.mxu0 0.0
    %1592 = vmatprep.subr.mxu0 0.0
    %1593 = vmatpush1.msra.mxu0 0.0
    %1594 = vmatprep.subr.mxu0 0.0
    %1595 = vmatpush1.msra.mxu0 0.0
    %1596 = vmatprep.subr.mxu0 0.0
    %1597 = vmatpush1.msra.mxu0 0.0
    %1598 = vmatprep.subr.mxu0 0.0
    %1599 = vmatpush1.msra.mxu0 0.0
    %1600 = vmatprep.subr.mxu0 0.0
    %1601 = vmatpush1.msra.mxu0 0.0
    %1602 = vmatprep.subr.mxu0 0.0
    %1603 = vmatpush1.msra.mxu0 0.0
    %1604 = vmatprep.subr.mxu0 0.0
    %1605 = vmatpush1.msra.mxu0 0.0
    %1606 = vmatprep.subr.mxu0 0.0
    %1607 = vmatpush1.msra.mxu0 0.0
    %1608 = vmatprep.subr.mxu0 0.0
    %1609 = vmatpush1.msra.mxu0 0.0
    %1610 = vmatprep.subr.mxu0 0.0
    %1611 = vmatpush1.msra.mxu0 0.0
    %1612 = vmatprep.subr.mxu0 0.0
    %1613 = vmatpush1.msra.mxu0 0.0
    %1614 = vmatprep.subr.mxu0 0.0
    %1615 = vmatpush1.msra.mxu0 0.0
    %1616 = vmatprep.subr.mxu0 0.0
    %1617 = vmatpush1.msra.mxu0 0.0
    %1618 = vmatprep.subr.mxu0 0.0
    %1619 = vmatpush1.msra.mxu0 0.0
    %1620 = vmatprep.subr.mxu0 0.0
    %1621 = vmatpush1.msra.mxu0 0.0
    %1622 = vmatprep.mubr.f32.mxu0 0.0
    %1623 = vmatmul.mubr.f32.gmra.mrb[0].mxu0 %v1454
    %v1624 = vpop.f32.mrb[0].mxu0
    %v1625 = vadd.f32 %v1554, %v1624
    %v1626 = vpop.f32.mrb[0].mxu0
    %v1627 = vadd.f32 %v1555, %v1626
    %1628 = vdwg.mxu0
    %1629 = vmatprep.subr.mxu0 %v407
    %1630 = vmatpush1.msra.mxu0 %v406
    %1631 = vmatprep.subr.mxu0 %v411
    %1632 = vmatpush1.msra.mxu0 %v410
    %1633 = vmatprep.subr.mxu0 %v415
    %1634 = vmatpush1.msra.mxu0 %v414
    %1635 = vmatprep.subr.mxu0 %v419
    %1636 = vmatpush1.msra.mxu0 %v418
    %1637 = vmatprep.subr.mxu0 %v423
    %1638 = vmatpush1.msra.mxu0 %v422
    %1639 = vmatprep.subr.mxu0 %v427
    %1640 = vmatpush1.msra.mxu0 %v426
    %1641 = vmatprep.subr.mxu0 %v431
    %1642 = vmatpush1.msra.mxu0 %v430
    %1643 = vmatprep.subr.mxu0 %v435
    %1644 = vmatpush1.msra.mxu0 %v434
    %1645 = vmatprep.subr.mxu0 %v439
    %1646 = vmatpush1.msra.mxu0 %v438
    %1647 = vmatprep.subr.mxu0 %v443
    %1648 = vmatpush1.msra.mxu0 %v442
    %1649 = vmatprep.subr.mxu0 %v447
    %1650 = vmatpush1.msra.mxu0 %v446
    %1651 = vmatprep.subr.mxu0 %v451
    %1652 = vmatpush1.msra.mxu0 %v450
    %1653 = vmatprep.subr.mxu0 %v455
    %1654 = vmatpush1.msra.mxu0 %v454
    %1655 = vmatprep.subr.mxu0 %v459
    %1656 = vmatpush1.msra.mxu0 %v458
    %1657 = vmatprep.subr.mxu0 %v463
    %1658 = vmatpush1.msra.mxu0 %v462
    %1659 = vmatprep.subr.mxu0 %v467
    %1660 = vmatpush1.msra.mxu0 %v466
    %1661 = vmatprep.subr.mxu0 0.0
    %1662 = vmatpush1.msra.mxu0 0.0
    %1663 = vmatprep.subr.mxu0 0.0
    %1664 = vmatpush1.msra.mxu0 0.0
    %1665 = vmatprep.subr.mxu0 0.0
    %1666 = vmatpush1.msra.mxu0 0.0
    %1667 = vmatprep.subr.mxu0 0.0
    %1668 = vmatpush1.msra.mxu0 0.0
    %1669 = vmatprep.subr.mxu0 0.0
    %1670 = vmatpush1.msra.mxu0 0.0
    %1671 = vmatprep.subr.mxu0 0.0
    %1672 = vmatpush1.msra.mxu0 0.0
    %1673 = vmatprep.subr.mxu0 0.0
    %1674 = vmatpush1.msra.mxu0 0.0
    %1675 = vmatprep.subr.mxu0 0.0
    %1676 = vmatpush1.msra.mxu0 0.0
    %1677 = vmatprep.subr.mxu0 0.0
    %1678 = vmatpush1.msra.mxu0 0.0
    %1679 = vmatprep.subr.mxu0 0.0
    %1680 = vmatpush1.msra.mxu0 0.0
    %1681 = vmatprep.subr.mxu0 0.0
    %1682 = vmatpush1.msra.mxu0 0.0
    %1683 = vmatprep.subr.mxu0 0.0
    %1684 = vmatpush1.msra.mxu0 0.0
    %1685 = vmatprep.subr.mxu0 0.0
    %1686 = vmatpush1.msra.mxu0 0.0
    %1687 = vmatprep.subr.mxu0 0.0
    %1688 = vmatpush1.msra.mxu0 0.0
    %1689 = vmatprep.subr.mxu0 0.0
    %1690 = vmatpush1.msra.mxu0 0.0
    %1691 = vmatprep.subr.mxu0 0.0
    %1692 = vmatpush1.msra.mxu0 0.0
    %1693 = vmatprep.mubr.f32.mxu0 0.0
    %1694 = vmatmul.mubr.f32.gmra.mrb[0].mxu0 %v1454
    %v1695 = vpop.f32.mrb[0].mxu0
    %v1696 = vadd.f32 %v1556, %v1695
    %v1697 = vpop.f32.mrb[0].mxu0
    %v1698 = vadd.f32 %v1557, %v1697
    %1699 = vdwg.mxu0
    %v1700 = vmul.f32 %v1625, 0.5
    %v1701 = vtanh.pop %v1700
    %v1702 = vmul.f32 %v1701, 0.5
    %v1703 = vadd.f32 %v1702, 0.5
    %v1704 = vmul.f32 %v1627, 0.5
    %v1705 = vtanh.pop %v1704
    %v1706 = vmul.f32 %v1705, 0.5
    %v1707 = vadd.f32 %v1706, 0.5
    %v1708 = vtanh.pop %v1696
    %v1709 = vmul.f32 %v1698, 0.5
    %v1710 = vtanh.pop %v1709
    %v1711 = vmul.f32 %v1710, 0.5
    %v1712 = vadd.f32 %v1711, 0.5
    %v1713 = vmul.f32 %v1707, %v1452
    %v1714 = vmul.f32 %v1703, %v1708
    %v1715 = vadd.f32 %v1713, %v1714
    %v1716 = vtanh.pop %v1715
    %v1717 = vmul.f32 %v1712, %v1716
    %v1718 = vld [vmem:[%s12 + $0x20] sm:$0xff]
    %v1719 = vmul.f32 %v1717, %v1718
    %1721 = vrot.lane.b32.xlu0 %v1553, 32
    %v1722 = vpop.permute.xlu0 %1721
    %v1723 = vsel %vm665, %v1722, 0
    %1725 = vmatprep.subr.mxu0 0.0
    %1726 = vmatpush1.msra.mxu0 %v468
    %1727 = vmatprep.subr.mxu0 0.0
    %1728 = vmatpush1.msra.mxu0 %v469
    %1729 = vmatprep.subr.mxu0 0.0
    %1730 = vmatpush1.msra.mxu0 %v470
    %1731 = vmatprep.subr.mxu0 0.0
    %1732 = vmatpush1.msra.mxu0 %v471
    %1733 = vmatprep.subr.mxu0 0.0
    %1734 = vmatpush1.msra.mxu0 %v472
    %1735 = vmatprep.subr.mxu0 0.0
    %1736 = vmatpush1.msra.mxu0 %v473
    %1737 = vmatprep.subr.mxu0 0.0
    %1738 = vmatpush1.msra.mxu0 %v474
    %1739 = vmatprep.subr.mxu0 0.0
    %1740 = vmatpush1.msra.mxu0 %v475
    %1741 = vmatprep.subr.mxu0 0.0
    %1742 = vmatpush1.msra.mxu0 %v476
    %1743 = vmatprep.subr.mxu0 0.0
    %1744 = vmatpush1.msra.mxu0 %v477
    %1745 = vmatprep.subr.mxu0 0.0
    %1746 = vmatpush1.msra.mxu0 %v478
    %1747 = vmatprep.subr.mxu0 0.0
    %1748 = vmatpush1.msra.mxu0 %v479
    %1749 = vmatprep.subr.mxu0 0.0
    %1750 = vmatpush1.msra.mxu0 %v480
    %1751 = vmatprep.subr.mxu0 0.0
    %1752 = vmatpush1.msra.mxu0 %v481
    %1753 = vmatprep.subr.mxu0 0.0
    %1754 = vmatpush1.msra.mxu0 %v482
    %1755 = vmatprep.subr.mxu0 0.0
    %1756 = vmatpush1.msra.mxu0 %v483
    %1757 = vmatprep.subr.mxu0 0.0
    %1758 = vmatpush1.msra.mxu0 %v484
    %1759 = vmatprep.subr.mxu0 0.0
    %1760 = vmatpush1.msra.mxu0 %v485
    %1761 = vmatprep.subr.mxu0 0.0
    %1762 = vmatpush1.msra.mxu0 %v486
    %1763 = vmatprep.subr.mxu0 0.0
    %1764 = vmatpush1.msra.mxu0 %v487
    %1765 = vmatprep.subr.mxu0 0.0
    %1766 = vmatpush1.msra.mxu0 0.0
    %1767 = vmatprep.subr.mxu0 0.0
    %1768 = vmatpush1.msra.mxu0 0.0
    %1769 = vmatprep.subr.mxu0 0.0
    %1770 = vmatpush1.msra.mxu0 0.0
    %1771 = vmatprep.subr.mxu0 0.0
    %1772 = vmatpush1.msra.mxu0 0.0
    %1773 = vmatprep.subr.mxu0 0.0
    %1774 = vmatpush1.msra.mxu0 0.0
    %1775 = vmatprep.subr.mxu0 0.0
    %1776 = vmatpush1.msra.mxu0 0.0
    %1777 = vmatprep.subr.mxu0 0.0
    %1778 = vmatpush1.msra.mxu0 0.0
    %1779 = vmatprep.subr.mxu0 0.0
    %1780 = vmatpush1.msra.mxu0 0.0
    %1781 = vmatprep.subr.mxu0 0.0
    %1782 = vmatpush1.msra.mxu0 0.0
    %1783 = vmatprep.subr.mxu0 0.0
    %1784 = vmatpush1.msra.mxu0 0.0
    %1785 = vmatprep.subr.mxu0 0.0
    %1786 = vmatpush1.msra.mxu0 0.0
    %1787 = vmatprep.subr.mxu0 0.0
    %1788 = vmatpush1.msra.mxu0 0.0
    %1789 = vmatprep.mubr.f32.mxu0 %v1723
    %1790 = vmatmul.mubr.f32.gmra.mrb[0].mxu0 %v1719
    %v1791 = vpop.f32.mrb[0].mxu0
    %v1792 = vadd.f32 %v663, %v1791
    %v1793 = vpop.f32.mrb[0].mxu0
    %1794 = vdwg.mxu0
    %v1795 = vmul.f32 %v1792, 0.5
    %v1796 = vtanh.pop %v1795
    %v1797 = vmul.f32 %v1796, 0.5
    %v1798 = vadd.f32 %v1797, 0.5
    %v1799 = vtanh.pop %v1792
    %v1800 = vmul.f32 %v1798, %v1547
    %1802 = vrot.lane.b32.xlu0 %v1799, 64
    %v1803 = vpop.permute.xlu0 %1802
    %v1805 = vmul.f32 %v1798, %v1803
    %1807 = vrot.lane.b32.xlu0 %v1805, 32
    %v1808 = vpop.permute.xlu0 %1807
    %v1810 = vadd.f32 %v1800, %v1808
    %v1811 = vtanh.pop %v1810
    %1813 = vrot.lane.b32.xlu0 %v1811, 64
    %v1814 = vpop.permute.xlu0 %1813
    %v1816 = vmul.f32 %v1798, %v1814
    %v1817 = vld [vmem:[#allocation2 + $0xa0] sm:$0xff]
    %v1818 = vld [vmem:[#allocation2 + $0xa8] sm:$0xff]
    %v1819 = vld [vmem:[#allocation2 + $0xb0] sm:$0xff]
    %v1820 = vld [vmem:[#allocation2 + $0xb8] sm:$0xff]
    %1821 = vmatprep.subr.mxu0 %v405
    %1822 = vmatpush1.msra.mxu0 %v404
    %1823 = vmatprep.subr.mxu0 %v409
    %1824 = vmatpush1.msra.mxu0 %v408
    %1825 = vmatprep.subr.mxu0 %v413
    %1826 = vmatpush1.msra.mxu0 %v412
    %1827 = vmatprep.subr.mxu0 %v417
    %1828 = vmatpush1.msra.mxu0 %v416
    %1829 = vmatprep.subr.mxu0 %v421
    %1830 = vmatpush1.msra.mxu0 %v420
    %1831 = vmatprep.subr.mxu0 %v425
    %1832 = vmatpush1.msra.mxu0 %v424
    %1833 = vmatprep.subr.mxu0 %v429
    %1834 = vmatpush1.msra.mxu0 %v428
    %1835 = vmatprep.subr.mxu0 %v433
    %1836 = vmatpush1.msra.mxu0 %v432
    %1837 = vmatprep.subr.mxu0 %v437
    %1838 = vmatpush1.msra.mxu0 %v436
    %1839 = vmatprep.subr.mxu0 %v441
    %1840 = vmatpush1.msra.mxu0 %v440
    %1841 = vmatprep.subr.mxu0 %v445
    %1842 = vmatpush1.msra.mxu0 %v444
    %1843 = vmatprep.subr.mxu0 %v449
    %1844 = vmatpush1.msra.mxu0 %v448
    %1845 = vmatprep.subr.mxu0 %v453
    %1846 = vmatpush1.msra.mxu0 %v452
    %1847 = vmatprep.subr.mxu0 %v457
    %1848 = vmatpush1.msra.mxu0 %v456
    %1849 = vmatprep.subr.mxu0 %v461
    %1850 = vmatpush1.msra.mxu0 %v460
    %1851 = vmatprep.subr.mxu0 %v465
    %1852 = vmatpush1.msra.mxu0 %v464
    %1853 = vmatprep.subr.mxu0 0.0
    %1854 = vmatpush1.msra.mxu0 0.0
    %1855 = vmatprep.subr.mxu0 0.0
    %1856 = vmatpush1.msra.mxu0 0.0
    %1857 = vmatprep.subr.mxu0 0.0
    %1858 = vmatpush1.msra.mxu0 0.0
    %1859 = vmatprep.subr.mxu0 0.0
    %1860 = vmatpush1.msra.mxu0 0.0
    %1861 = vmatprep.subr.mxu0 0.0
    %1862 = vmatpush1.msra.mxu0 0.0
    %1863 = vmatprep.subr.mxu0 0.0
    %1864 = vmatpush1.msra.mxu0 0.0
    %1865 = vmatprep.subr.mxu0 0.0
    %1866 = vmatpush1.msra.mxu0 0.0
    %1867 = vmatprep.subr.mxu0 0.0
    %1868 = vmatpush1.msra.mxu0 0.0
    %1869 = vmatprep.subr.mxu0 0.0
    %1870 = vmatpush1.msra.mxu0 0.0
    %1871 = vmatprep.subr.mxu0 0.0
    %1872 = vmatpush1.msra.mxu0 0.0
    %1873 = vmatprep.subr.mxu0 0.0
    %1874 = vmatpush1.msra.mxu0 0.0
    %1875 = vmatprep.subr.mxu0 0.0
    %1876 = vmatpush1.msra.mxu0 0.0
    %1877 = vmatprep.subr.mxu0 0.0
    %1878 = vmatpush1.msra.mxu0 0.0
    %1879 = vmatprep.subr.mxu0 0.0
    %1880 = vmatpush1.msra.mxu0 0.0
    %1881 = vmatprep.subr.mxu0 0.0
    %1882 = vmatpush1.msra.mxu0 0.0
    %1883 = vmatprep.subr.mxu0 0.0
    %1884 = vmatpush1.msra.mxu0 0.0
    %1885 = vmatprep.mubr.f32.mxu0 0.0
    %1886 = vmatmul.mubr.f32.gmra.mrb[0].mxu0 %v1717
    %v1887 = vpop.f32.mrb[0].mxu0
    %v1888 = vadd.f32 %v1817, %v1887
    %v1889 = vpop.f32.mrb[0].mxu0
    %v1890 = vadd.f32 %v1818, %v1889
    %1891 = vdwg.mxu0
    %1892 = vmatprep.subr.mxu0 %v407
    %1893 = vmatpush1.msra.mxu0 %v406
    %1894 = vmatprep.subr.mxu0 %v411
    %1895 = vmatpush1.msra.mxu0 %v410
    %1896 = vmatprep.subr.mxu0 %v415
    %1897 = vmatpush1.msra.mxu0 %v414
    %1898 = vmatprep.subr.mxu0 %v419
    %1899 = vmatpush1.msra.mxu0 %v418
    %1900 = vmatprep.subr.mxu0 %v423
    %1901 = vmatpush1.msra.mxu0 %v422
    %1902 = vmatprep.subr.mxu0 %v427
    %1903 = vmatpush1.msra.mxu0 %v426
    %1904 = vmatprep.subr.mxu0 %v431
    %1905 = vmatpush1.msra.mxu0 %v430
    %1906 = vmatprep.subr.mxu0 %v435
    %1907 = vmatpush1.msra.mxu0 %v434
    %1908 = vmatprep.subr.mxu0 %v439
    %1909 = vmatpush1.msra.mxu0 %v438
    %1910 = vmatprep.subr.mxu0 %v443
    %1911 = vmatpush1.msra.mxu0 %v442
    %1912 = vmatprep.subr.mxu0 %v447
    %1913 = vmatpush1.msra.mxu0 %v446
    %1914 = vmatprep.subr.mxu0 %v451
    %1915 = vmatpush1.msra.mxu0 %v450
    %1916 = vmatprep.subr.mxu0 %v455
    %1917 = vmatpush1.msra.mxu0 %v454
    %1918 = vmatprep.subr.mxu0 %v459
    %1919 = vmatpush1.msra.mxu0 %v458
    %1920 = vmatprep.subr.mxu0 %v463
    %1921 = vmatpush1.msra.mxu0 %v462
    %1922 = vmatprep.subr.mxu0 %v467
    %1923 = vmatpush1.msra.mxu0 %v466
    %1924 = vmatprep.subr.mxu0 0.0
    %1925 = vmatpush1.msra.mxu0 0.0
    %1926 = vmatprep.subr.mxu0 0.0
    %1927 = vmatpush1.msra.mxu0 0.0
    %1928 = vmatprep.subr.mxu0 0.0
    %1929 = vmatpush1.msra.mxu0 0.0
    %1930 = vmatprep.subr.mxu0 0.0
    %1931 = vmatpush1.msra.mxu0 0.0
    %1932 = vmatprep.subr.mxu0 0.0
    %1933 = vmatpush1.msra.mxu0 0.0
    %1934 = vmatprep.subr.mxu0 0.0
    %1935 = vmatpush1.msra.mxu0 0.0
    %1936 = vmatprep.subr.mxu0 0.0
    %1937 = vmatpush1.msra.mxu0 0.0
    %1938 = vmatprep.subr.mxu0 0.0
    %1939 = vmatpush1.msra.mxu0 0.0
    %1940 = vmatprep.subr.mxu0 0.0
    %1941 = vmatpush1.msra.mxu0 0.0
    %1942 = vmatprep.subr.mxu0 0.0
    %1943 = vmatpush1.msra.mxu0 0.0
    %1944 = vmatprep.subr.mxu0 0.0
    %1945 = vmatpush1.msra.mxu0 0.0
    %1946 = vmatprep.subr.mxu0 0.0
    %1947 = vmatpush1.msra.mxu0 0.0
    %1948 = vmatprep.subr.mxu0 0.0
    %1949 = vmatpush1.msra.mxu0 0.0
    %1950 = vmatprep.subr.mxu0 0.0
    %1951 = vmatpush1.msra.mxu0 0.0
    %1952 = vmatprep.subr.mxu0 0.0
    %1953 = vmatpush1.msra.mxu0 0.0
    %1954 = vmatprep.subr.mxu0 0.0
    %1955 = vmatpush1.msra.mxu0 0.0
    %1956 = vmatprep.mubr.f32.mxu0 0.0
    %1957 = vmatmul.mubr.f32.gmra.mrb[0].mxu0 %v1717
    %v1958 = vpop.f32.mrb[0].mxu0
    %v1959 = vadd.f32 %v1819, %v1958
    %v1960 = vpop.f32.mrb[0].mxu0
    %v1961 = vadd.f32 %v1820, %v1960
    %1962 = vdwg.mxu0
    %v1963 = vmul.f32 %v1888, 0.5
    %v1964 = vtanh.pop %v1963
    %v1965 = vmul.f32 %v1964, 0.5
    %v1966 = vadd.f32 %v1965, 0.5
    %v1967 = vmul.f32 %v1890, 0.5
    %v1968 = vtanh.pop %v1967
    %v1969 = vmul.f32 %v1968, 0.5
    %v1970 = vadd.f32 %v1969, 0.5
    %v1971 = vtanh.pop %v1959
    %v1972 = vmul.f32 %v1961, 0.5
    %v1973 = vtanh.pop %v1972
    %v1974 = vmul.f32 %v1973, 0.5
    %v1975 = vadd.f32 %v1974, 0.5
    %v1976 = vmul.f32 %v1970, %v1715
    %v1977 = vmul.f32 %v1966, %v1971
    %v1978 = vadd.f32 %v1976, %v1977
    %v1979 = vtanh.pop %v1978
    %v1980 = vmul.f32 %v1975, %v1979
    %v1981 = vld [vmem:[%s12 + $0x28] sm:$0xff]
    %v1982 = vmul.f32 %v1980, %v1981
    %1984 = vrot.lane.b32.xlu0 %v1816, 32
    %v1985 = vpop.permute.xlu0 %1984
    %v1986 = vsel %vm665, %v1985, 0
    %1988 = vmatprep.subr.mxu0 0.0
    %1989 = vmatpush1.msra.mxu0 %v468
    %1990 = vmatprep.subr.mxu0 0.0
    %1991 = vmatpush1.msra.mxu0 %v469
    %1992 = vmatprep.subr.mxu0 0.0
    %1993 = vmatpush1.msra.mxu0 %v470
    %1994 = vmatprep.subr.mxu0 0.0
    %1995 = vmatpush1.msra.mxu0 %v471
    %1996 = vmatprep.subr.mxu0 0.0
    %1997 = vmatpush1.msra.mxu0 %v472
    %1998 = vmatprep.subr.mxu0 0.0
    %1999 = vmatpush1.msra.mxu0 %v473
    %2000 = vmatprep.subr.mxu0 0.0
    %2001 = vmatpush1.msra.mxu0 %v474
    %2002 = vmatprep.subr.mxu0 0.0
    %2003 = vmatpush1.msra.mxu0 %v475
    %2004 = vmatprep.subr.mxu0 0.0
    %2005 = vmatpush1.msra.mxu0 %v476
    %2006 = vmatprep.subr.mxu0 0.0
    %2007 = vmatpush1.msra.mxu0 %v477
    %2008 = vmatprep.subr.mxu0 0.0
    %2009 = vmatpush1.msra.mxu0 %v478
    %2010 = vmatprep.subr.mxu0 0.0
    %2011 = vmatpush1.msra.mxu0 %v479
    %2012 = vmatprep.subr.mxu0 0.0
    %2013 = vmatpush1.msra.mxu0 %v480
    %2014 = vmatprep.subr.mxu0 0.0
    %2015 = vmatpush1.msra.mxu0 %v481
    %2016 = vmatprep.subr.mxu0 0.0
    %2017 = vmatpush1.msra.mxu0 %v482
    %2018 = vmatprep.subr.mxu0 0.0
    %2019 = vmatpush1.msra.mxu0 %v483
    %2020 = vmatprep.subr.mxu0 0.0
    %2021 = vmatpush1.msra.mxu0 %v484
    %2022 = vmatprep.subr.mxu0 0.0
    %2023 = vmatpush1.msra.mxu0 %v485
    %2024 = vmatprep.subr.mxu0 0.0
    %2025 = vmatpush1.msra.mxu0 %v486
    %2026 = vmatprep.subr.mxu0 0.0
    %2027 = vmatpush1.msra.mxu0 %v487
    %2028 = vmatprep.subr.mxu0 0.0
    %2029 = vmatpush1.msra.mxu0 0.0
    %2030 = vmatprep.subr.mxu0 0.0
    %2031 = vmatpush1.msra.mxu0 0.0
    %2032 = vmatprep.subr.mxu0 0.0
    %2033 = vmatpush1.msra.mxu0 0.0
    %2034 = vmatprep.subr.mxu0 0.0
    %2035 = vmatpush1.msra.mxu0 0.0
    %2036 = vmatprep.subr.mxu0 0.0
    %2037 = vmatpush1.msra.mxu0 0.0
    %2038 = vmatprep.subr.mxu0 0.0
    %2039 = vmatpush1.msra.mxu0 0.0
    %2040 = vmatprep.subr.mxu0 0.0
    %2041 = vmatpush1.msra.mxu0 0.0
    %2042 = vmatprep.subr.mxu0 0.0
    %2043 = vmatpush1.msra.mxu0 0.0
    %2044 = vmatprep.subr.mxu0 0.0
    %2045 = vmatpush1.msra.mxu0 0.0
    %2046 = vmatprep.subr.mxu0 0.0
    %2047 = vmatpush1.msra.mxu0 0.0
    %2048 = vmatprep.subr.mxu0 0.0
    %2049 = vmatpush1.msra.mxu0 0.0
    %2050 = vmatprep.subr.mxu0 0.0
    %2051 = vmatpush1.msra.mxu0 0.0
    %2052 = vmatprep.mubr.f32.mxu0 %v1986
    %2053 = vmatmul.mubr.f32.gmra.mrb[0].mxu0 %v1982
    %v2054 = vpop.f32.mrb[0].mxu0
    %v2055 = vadd.f32 %v663, %v2054
    %v2056 = vpop.f32.mrb[0].mxu0
    %2057 = vdwg.mxu0
    %v2058 = vmul.f32 %v2055, 0.5
    %v2059 = vtanh.pop %v2058
    %v2060 = vmul.f32 %v2059, 0.5
    %v2061 = vadd.f32 %v2060, 0.5
    %v2062 = vtanh.pop %v2055
    %v2063 = vmul.f32 %v2061, %v1810
    %2065 = vrot.lane.b32.xlu0 %v2062, 64
    %v2066 = vpop.permute.xlu0 %2065
    %v2068 = vmul.f32 %v2061, %v2066
    %2070 = vrot.lane.b32.xlu0 %v2068, 32
    %v2071 = vpop.permute.xlu0 %2070
    %v2073 = vadd.f32 %v2063, %v2071
    %v2074 = vtanh.pop %v2073
    %2076 = vrot.lane.b32.xlu0 %v2074, 64
    %v2077 = vpop.permute.xlu0 %2076
    %v2079 = vmul.f32 %v2061, %v2077
    %v2080 = vld [vmem:[#allocation2 + $0xc0] sm:$0xff]
    %v2081 = vld [vmem:[#allocation2 + $0xc8] sm:$0xff]
    %v2082 = vld [vmem:[#allocation2 + $0xd0] sm:$0xff]
    %v2083 = vld [vmem:[#allocation2 + $0xd8] sm:$0xff]
    %2084 = vmatprep.subr.mxu0 %v405
    %2085 = vmatpush1.msra.mxu0 %v404
    %2086 = vmatprep.subr.mxu0 %v409
    %2087 = vmatpush1.msra.mxu0 %v408
    %2088 = vmatprep.subr.mxu0 %v413
    %2089 = vmatpush1.msra.mxu0 %v412
    %2090 = vmatprep.subr.mxu0 %v417
    %2091 = vmatpush1.msra.mxu0 %v416
    %2092 = vmatprep.subr.mxu0 %v421
    %2093 = vmatpush1.msra.mxu0 %v420
    %2094 = vmatprep.subr.mxu0 %v425
    %2095 = vmatpush1.msra.mxu0 %v424
    %2096 = vmatprep.subr.mxu0 %v429
    %2097 = vmatpush1.msra.mxu0 %v428
    %2098 = vmatprep.subr.mxu0 %v433
    %2099 = vmatpush1.msra.mxu0 %v432
    %2100 = vmatprep.subr.mxu0 %v437
    %2101 = vmatpush1.msra.mxu0 %v436
    %2102 = vmatprep.subr.mxu0 %v441
    %2103 = vmatpush1.msra.mxu0 %v440
    %2104 = vmatprep.subr.mxu0 %v445
    %2105 = vmatpush1.msra.mxu0 %v444
    %2106 = vmatprep.subr.mxu0 %v449
    %2107 = vmatpush1.msra.mxu0 %v448
    %2108 = vmatprep.subr.mxu0 %v453
    %2109 = vmatpush1.msra.mxu0 %v452
    %2110 = vmatprep.subr.mxu0 %v457
    %2111 = vmatpush1.msra.mxu0 %v456
    %2112 = vmatprep.subr.mxu0 %v461
    %2113 = vmatpush1.msra.mxu0 %v460
    %2114 = vmatprep.subr.mxu0 %v465
    %2115 = vmatpush1.msra.mxu0 %v464
    %2116 = vmatprep.subr.mxu0 0.0
    %2117 = vmatpush1.msra.mxu0 0.0
    %2118 = vmatprep.subr.mxu0 0.0
    %2119 = vmatpush1.msra.mxu0 0.0
    %2120 = vmatprep.subr.mxu0 0.0
    %2121 = vmatpush1.msra.mxu0 0.0
    %2122 = vmatprep.subr.mxu0 0.0
    %2123 = vmatpush1.msra.mxu0 0.0
    %2124 = vmatprep.subr.mxu0 0.0
    %2125 = vmatpush1.msra.mxu0 0.0
    %2126 = vmatprep.subr.mxu0 0.0
    %2127 = vmatpush1.msra.mxu0 0.0
    %2128 = vmatprep.subr.mxu0 0.0
    %2129 = vmatpush1.msra.mxu0 0.0
    %2130 = vmatprep.subr.mxu0 0.0
    %2131 = vmatpush1.msra.mxu0 0.0
    %2132 = vmatprep.subr.mxu0 0.0
    %2133 = vmatpush1.msra.mxu0 0.0
    %2134 = vmatprep.subr.mxu0 0.0
    %2135 = vmatpush1.msra.mxu0 0.0
    %2136 = vmatprep.subr.mxu0 0.0
    %2137 = vmatpush1.msra.mxu0 0.0
    %2138 = vmatprep.subr.mxu0 0.0
    %2139 = vmatpush1.msra.mxu0 0.0
    %2140 = vmatprep.subr.mxu0 0.0
    %2141 = vmatpush1.msra.mxu0 0.0
    %2142 = vmatprep.subr.mxu0 0.0
    %2143 = vmatpush1.msra.mxu0 0.0
    %2144 = vmatprep.subr.mxu0 0.0
    %2145 = vmatpush1.msra.mxu0 0.0
    %2146 = vmatprep.subr.mxu0 0.0
    %2147 = vmatpush1.msra.mxu0 0.0
    %2148 = vmatprep.mubr.f32.mxu0 0.0
    %2149 = vmatmul.mubr.f32.gmra.mrb[0].mxu0 %v1980
    %v2150 = vpop.f32.mrb[0].mxu0
    %v2151 = vadd.f32 %v2080, %v2150
    %v2152 = vpop.f32.mrb[0].mxu0
    %v2153 = vadd.f32 %v2081, %v2152
    %2154 = vdwg.mxu0
    %2155 = vmatprep.subr.mxu0 %v407
    %2156 = vmatpush1.msra.mxu0 %v406
    %2157 = vmatprep.subr.mxu0 %v411
    %2158 = vmatpush1.msra.mxu0 %v410
    %2159 = vmatprep.subr.mxu0 %v415
    %2160 = vmatpush1.msra.mxu0 %v414
    %2161 = vmatprep.subr.mxu0 %v419
    %2162 = vmatpush1.msra.mxu0 %v418
    %2163 = vmatprep.subr.mxu0 %v423
    %2164 = vmatpush1.msra.mxu0 %v422
    %2165 = vmatprep.subr.mxu0 %v427
    %2166 = vmatpush1.msra.mxu0 %v426
    %2167 = vmatprep.subr.mxu0 %v431
    %2168 = vmatpush1.msra.mxu0 %v430
    %2169 = vmatprep.subr.mxu0 %v435
    %2170 = vmatpush1.msra.mxu0 %v434
    %2171 = vmatprep.subr.mxu0 %v439
    %2172 = vmatpush1.msra.mxu0 %v438
    %2173 = vmatprep.subr.mxu0 %v443
    %2174 = vmatpush1.msra.mxu0 %v442
    %2175 = vmatprep.subr.mxu0 %v447
    %2176 = vmatpush1.msra.mxu0 %v446
    %2177 = vmatprep.subr.mxu0 %v451
    %2178 = vmatpush1.msra.mxu0 %v450
    %2179 = vmatprep.subr.mxu0 %v455
    %2180 = vmatpush1.msra.mxu0 %v454
    %2181 = vmatprep.subr.mxu0 %v459
    %2182 = vmatpush1.msra.mxu0 %v458
    %2183 = vmatprep.subr.mxu0 %v463
    %2184 = vmatpush1.msra.mxu0 %v462
    %2185 = vmatprep.subr.mxu0 %v467
    %2186 = vmatpush1.msra.mxu0 %v466
    %2187 = vmatprep.subr.mxu0 0.0
    %2188 = vmatpush1.msra.mxu0 0.0
    %2189 = vmatprep.subr.mxu0 0.0
    %2190 = vmatpush1.msra.mxu0 0.0
    %2191 = vmatprep.subr.mxu0 0.0
    %2192 = vmatpush1.msra.mxu0 0.0
    %2193 = vmatprep.subr.mxu0 0.0
    %2194 = vmatpush1.msra.mxu0 0.0
    %2195 = vmatprep.subr.mxu0 0.0
    %2196 = vmatpush1.msra.mxu0 0.0
    %2197 = vmatprep.subr.mxu0 0.0
    %2198 = vmatpush1.msra.mxu0 0.0
    %2199 = vmatprep.subr.mxu0 0.0
    %2200 = vmatpush1.msra.mxu0 0.0
    %2201 = vmatprep.subr.mxu0 0.0
    %2202 = vmatpush1.msra.mxu0 0.0
    %2203 = vmatprep.subr.mxu0 0.0
    %2204 = vmatpush1.msra.mxu0 0.0
    %2205 = vmatprep.subr.mxu0 0.0
    %2206 = vmatpush1.msra.mxu0 0.0
    %2207 = vmatprep.subr.mxu0 0.0
    %2208 = vmatpush1.msra.mxu0 0.0
    %2209 = vmatprep.subr.mxu0 0.0
    %2210 = vmatpush1.msra.mxu0 0.0
    %2211 = vmatprep.subr.mxu0 0.0
    %2212 = vmatpush1.msra.mxu0 0.0
    %2213 = vmatprep.subr.mxu0 0.0
    %2214 = vmatpush1.msra.mxu0 0.0
    %2215 = vmatprep.subr.mxu0 0.0
    %2216 = vmatpush1.msra.mxu0 0.0
    %2217 = vmatprep.subr.mxu0 0.0
    %2218 = vmatpush1.msra.mxu0 0.0
    %2219 = vmatprep.mubr.f32.mxu0 0.0
    %2220 = vmatmul.mubr.f32.gmra.mrb[0].mxu0 %v1980
    %v2221 = vpop.f32.mrb[0].mxu0
    %v2222 = vadd.f32 %v2082, %v2221
    %v2223 = vpop.f32.mrb[0].mxu0
    %v2224 = vadd.f32 %v2083, %v2223
    %2225 = vdwg.mxu0
    %v2226 = vmul.f32 %v2151, 0.5
    %v2227 = vtanh.pop %v2226
    %v2228 = vmul.f32 %v2227, 0.5
    %v2229 = vadd.f32 %v2228, 0.5
    %v2230 = vmul.f32 %v2153, 0.5
    %v2231 = vtanh.pop %v2230
    %v2232 = vmul.f32 %v2231, 0.5
    %v2233 = vadd.f32 %v2232, 0.5
    %v2234 = vtanh.pop %v2222
    %v2235 = vmul.f32 %v2224, 0.5
    %v2236 = vtanh.pop %v2235
    %v2237 = vmul.f32 %v2236, 0.5
    %v2238 = vadd.f32 %v2237, 0.5
    %v2239 = vmul.f32 %v2233, %v1978
    %v2240 = vmul.f32 %v2229, %v2234
    %v2241 = vadd.f32 %v2239, %v2240
    %v2242 = vtanh.pop %v2241
    %v2243 = vmul.f32 %v2238, %v2242
    %v2244 = vld [vmem:[%s12 + $0x30] sm:$0xff]
    %v2245 = vmul.f32 %v2243, %v2244
    %2247 = vrot.lane.b32.xlu0 %v2079, 32
    %v2248 = vpop.permute.xlu0 %2247
    %v2249 = vsel %vm665, %v2248, 0
    %2251 = vmatprep.subr.mxu0 0.0
    %2252 = vmatpush1.msra.mxu0 %v468
    %2253 = vmatprep.subr.mxu0 0.0
    %2254 = vmatpush1.msra.mxu0 %v469
    %2255 = vmatprep.subr.mxu0 0.0
    %2256 = vmatpush1.msra.mxu0 %v470
    %2257 = vmatprep.subr.mxu0 0.0
    %2258 = vmatpush1.msra.mxu0 %v471
    %2259 = vmatprep.subr.mxu0 0.0
    %2260 = vmatpush1.msra.mxu0 %v472
    %2261 = vmatprep.subr.mxu0 0.0
    %2262 = vmatpush1.msra.mxu0 %v473
    %2263 = vmatprep.subr.mxu0 0.0
    %2264 = vmatpush1.msra.mxu0 %v474
    %2265 = vmatprep.subr.mxu0 0.0
    %2266 = vmatpush1.msra.mxu0 %v475
    %2267 = vmatprep.subr.mxu0 0.0
    %2268 = vmatpush1.msra.mxu0 %v476
    %2269 = vmatprep.subr.mxu0 0.0
    %2270 = vmatpush1.msra.mxu0 %v477
    %2271 = vmatprep.subr.mxu0 0.0
    %2272 = vmatpush1.msra.mxu0 %v478
    %2273 = vmatprep.subr.mxu0 0.0
    %2274 = vmatpush1.msra.mxu0 %v479
    %2275 = vmatprep.subr.mxu0 0.0
    %2276 = vmatpush1.msra.mxu0 %v480
    %2277 = vmatprep.subr.mxu0 0.0
    %2278 = vmatpush1.msra.mxu0 %v481
    %2279 = vmatprep.subr.mxu0 0.0
    %2280 = vmatpush1.msra.mxu0 %v482
    %2281 = vmatprep.subr.mxu0 0.0
    %2282 = vmatpush1.msra.mxu0 %v483
    %2283 = vmatprep.subr.mxu0 0.0
    %2284 = vmatpush1.msra.mxu0 %v484
    %2285 = vmatprep.subr.mxu0 0.0
    %2286 = vmatpush1.msra.mxu0 %v485
    %2287 = vmatprep.subr.mxu0 0.0
    %2288 = vmatpush1.msra.mxu0 %v486
    %2289 = vmatprep.subr.mxu0 0.0
    %2290 = vmatpush1.msra.mxu0 %v487
    %2291 = vmatprep.subr.mxu0 0.0
    %2292 = vmatpush1.msra.mxu0 0.0
    %2293 = vmatprep.subr.mxu0 0.0
    %2294 = vmatpush1.msra.mxu0 0.0
    %2295 = vmatprep.subr.mxu0 0.0
    %2296 = vmatpush1.msra.mxu0 0.0
    %2297 = vmatprep.subr.mxu0 0.0
    %2298 = vmatpush1.msra.mxu0 0.0
    %2299 = vmatprep.subr.mxu0 0.0
    %2300 = vmatpush1.msra.mxu0 0.0
    %2301 = vmatprep.subr.mxu0 0.0
    %2302 = vmatpush1.msra.mxu0 0.0
    %2303 = vmatprep.subr.mxu0 0.0
    %2304 = vmatpush1.msra.mxu0 0.0
    %2305 = vmatprep.subr.mxu0 0.0
    %2306 = vmatpush1.msra.mxu0 0.0
    %2307 = vmatprep.subr.mxu0 0.0
    %2308 = vmatpush1.msra.mxu0 0.0
    %2309 = vmatprep.subr.mxu0 0.0
    %2310 = vmatpush1.msra.mxu0 0.0
    %2311 = vmatprep.subr.mxu0 0.0
    %2312 = vmatpush1.msra.mxu0 0.0
    %2313 = vmatprep.subr.mxu0 0.0
    %2314 = vmatpush1.msra.mxu0 0.0
    %2315 = vmatprep.mubr.f32.mxu0 %v2249
    %2316 = vmatmul.mubr.f32.gmra.mrb[0].mxu0 %v2245
    %v2317 = vpop.f32.mrb[0].mxu0
    %v2318 = vadd.f32 %v663, %v2317
    %v2319 = vpop.f32.mrb[0].mxu0
    %2320 = vdwg.mxu0
    %v2321 = vmul.f32 %v2318, 0.5
    %v2322 = vtanh.pop %v2321
    %v2323 = vmul.f32 %v2322, 0.5
    %v2324 = vadd.f32 %v2323, 0.5
    %v2325 = vtanh.pop %v2318
    %v2326 = vmul.f32 %v2324, %v2073
    %2328 = vrot.lane.b32.xlu0 %v2325, 64
    %v2329 = vpop.permute.xlu0 %2328
    %v2331 = vmul.f32 %v2324, %v2329
    %2333 = vrot.lane.b32.xlu0 %v2331, 32
    %v2334 = vpop.permute.xlu0 %2333
    %v2336 = vadd.f32 %v2326, %v2334
    %v2337 = vtanh.pop %v2336
    %2339 = vrot.lane.b32.xlu0 %v2337, 64
    %v2340 = vpop.permute.xlu0 %2339
    %v2342 = vmul.f32 %v2324, %v2340
    %v2343 = vld [vmem:[#allocation2 + $0xe0] sm:$0xff]
    %v2344 = vld [vmem:[#allocation2 + $0xe8] sm:$0xff]
    %v2345 = vld [vmem:[#allocation2 + $0xf0] sm:$0xff]
    %v2346 = vld [vmem:[#allocation2 + $0xf8] sm:$0xff]
    %2347 = vmatprep.subr.mxu0 %v405
    %2348 = vmatpush1.msra.mxu0 %v404
    %2349 = vmatprep.subr.mxu0 %v409
    %2350 = vmatpush1.msra.mxu0 %v408
    %2351 = vmatprep.subr.mxu0 %v413
    %2352 = vmatpush1.msra.mxu0 %v412
    %2353 = vmatprep.subr.mxu0 %v417
    %2354 = vmatpush1.msra.mxu0 %v416
    %2355 = vmatprep.subr.mxu0 %v421
    %2356 = vmatpush1.msra.mxu0 %v420
    %2357 = vmatprep.subr.mxu0 %v425
    %2358 = vmatpush1.msra.mxu0 %v424
    %2359 = vmatprep.subr.mxu0 %v429
    %2360 = vmatpush1.msra.mxu0 %v428
    %2361 = vmatprep.subr.mxu0 %v433
    %2362 = vmatpush1.msra.mxu0 %v432
    %2363 = vmatprep.subr.mxu0 %v437
    %2364 = vmatpush1.msra.mxu0 %v436
    %2365 = vmatprep.subr.mxu0 %v441
    %2366 = vmatpush1.msra.mxu0 %v440
    %2367 = vmatprep.subr.mxu0 %v445
    %2368 = vmatpush1.msra.mxu0 %v444
    %2369 = vmatprep.subr.mxu0 %v449
    %2370 = vmatpush1.msra.mxu0 %v448
    %2371 = vmatprep.subr.mxu0 %v453
    %2372 = vmatpush1.msra.mxu0 %v452
    %2373 = vmatprep.subr.mxu0 %v457
    %2374 = vmatpush1.msra.mxu0 %v456
    %2375 = vmatprep.subr.mxu0 %v461
    %2376 = vmatpush1.msra.mxu0 %v460
    %2377 = vmatprep.subr.mxu0 %v465
    %2378 = vmatpush1.msra.mxu0 %v464
    %2379 = vmatprep.subr.mxu0 0.0
    %2380 = vmatpush1.msra.mxu0 0.0
    %2381 = vmatprep.subr.mxu0 0.0
    %2382 = vmatpush1.msra.mxu0 0.0
    %2383 = vmatprep.subr.mxu0 0.0
    %2384 = vmatpush1.msra.mxu0 0.0
    %2385 = vmatprep.subr.mxu0 0.0
    %2386 = vmatpush1.msra.mxu0 0.0
    %2387 = vmatprep.subr.mxu0 0.0
    %2388 = vmatpush1.msra.mxu0 0.0
    %2389 = vmatprep.subr.mxu0 0.0
    %2390 = vmatpush1.msra.mxu0 0.0
    %2391 = vmatprep.subr.mxu0 0.0
    %2392 = vmatpush1.msra.mxu0 0.0
    %2393 = vmatprep.subr.mxu0 0.0
    %2394 = vmatpush1.msra.mxu0 0.0
    %2395 = vmatprep.subr.mxu0 0.0
    %2396 = vmatpush1.msra.mxu0 0.0
    %2397 = vmatprep.subr.mxu0 0.0
    %2398 = vmatpush1.msra.mxu0 0.0
    %2399 = vmatprep.subr.mxu0 0.0
    %2400 = vmatpush1.msra.mxu0 0.0
    %2401 = vmatprep.subr.mxu0 0.0
    %2402 = vmatpush1.msra.mxu0 0.0
    %2403 = vmatprep.subr.mxu0 0.0
    %2404 = vmatpush1.msra.mxu0 0.0
    %2405 = vmatprep.subr.mxu0 0.0
    %2406 = vmatpush1.msra.mxu0 0.0
    %2407 = vmatprep.subr.mxu0 0.0
    %2408 = vmatpush1.msra.mxu0 0.0
    %2409 = vmatprep.subr.mxu0 0.0
    %2410 = vmatpush1.msra.mxu0 0.0
    %2411 = vmatprep.mubr.f32.mxu0 0.0
    %2412 = vmatmul.mubr.f32.gmra.mrb[0].mxu0 %v2243
    %v2413 = vpop.f32.mrb[0].mxu0
    %v2414 = vadd.f32 %v2343, %v2413
    %v2415 = vpop.f32.mrb[0].mxu0
    %v2416 = vadd.f32 %v2344, %v2415
    %2417 = vdwg.mxu0
    %2418 = vmatprep.subr.mxu0 %v407
    %2419 = vmatpush1.msra.mxu0 %v406
    %2420 = vmatprep.subr.mxu0 %v411
    %2421 = vmatpush1.msra.mxu0 %v410
    %2422 = vmatprep.subr.mxu0 %v415
    %2423 = vmatpush1.msra.mxu0 %v414
    %2424 = vmatprep.subr.mxu0 %v419
    %2425 = vmatpush1.msra.mxu0 %v418
    %2426 = vmatprep.subr.mxu0 %v423
    %2427 = vmatpush1.msra.mxu0 %v422
    %2428 = vmatprep.subr.mxu0 %v427
    %2429 = vmatpush1.msra.mxu0 %v426
    %2430 = vmatprep.subr.mxu0 %v431
    %2431 = vmatpush1.msra.mxu0 %v430
    %2432 = vmatprep.subr.mxu0 %v435
    %2433 = vmatpush1.msra.mxu0 %v434
    %2434 = vmatprep.subr.mxu0 %v439
    %2435 = vmatpush1.msra.mxu0 %v438
    %2436 = vmatprep.subr.mxu0 %v443
    %2437 = vmatpush1.msra.mxu0 %v442
    %2438 = vmatprep.subr.mxu0 %v447
    %2439 = vmatpush1.msra.mxu0 %v446
    %2440 = vmatprep.subr.mxu0 %v451
    %2441 = vmatpush1.msra.mxu0 %v450
    %2442 = vmatprep.subr.mxu0 %v455
    %2443 = vmatpush1.msra.mxu0 %v454
    %2444 = vmatprep.subr.mxu0 %v459
    %2445 = vmatpush1.msra.mxu0 %v458
    %2446 = vmatprep.subr.mxu0 %v463
    %2447 = vmatpush1.msra.mxu0 %v462
    %2448 = vmatprep.subr.mxu0 %v467
    %2449 = vmatpush1.msra.mxu0 %v466
    %2450 = vmatprep.subr.mxu0 0.0
    %2451 = vmatpush1.msra.mxu0 0.0
    %2452 = vmatprep.subr.mxu0 0.0
    %2453 = vmatpush1.msra.mxu0 0.0
    %2454 = vmatprep.subr.mxu0 0.0
    %2455 = vmatpush1.msra.mxu0 0.0
    %2456 = vmatprep.subr.mxu0 0.0
    %2457 = vmatpush1.msra.mxu0 0.0
    %2458 = vmatprep.subr.mxu0 0.0
    %2459 = vmatpush1.msra.mxu0 0.0
    %2460 = vmatprep.subr.mxu0 0.0
    %2461 = vmatpush1.msra.mxu0 0.0
    %2462 = vmatprep.subr.mxu0 0.0
    %2463 = vmatpush1.msra.mxu0 0.0
    %2464 = vmatprep.subr.mxu0 0.0
    %2465 = vmatpush1.msra.mxu0 0.0
    %2466 = vmatprep.subr.mxu0 0.0
    %2467 = vmatpush1.msra.mxu0 0.0
    %2468 = vmatprep.subr.mxu0 0.0
    %2469 = vmatpush1.msra.mxu0 0.0
    %2470 = vmatprep.subr.mxu0 0.0
    %2471 = vmatpush1.msra.mxu0 0.0
    %2472 = vmatprep.subr.mxu0 0.0
    %2473 = vmatpush1.msra.mxu0 0.0
    %2474 = vmatprep.subr.mxu0 0.0
    %2475 = vmatpush1.msra.mxu0 0.0
    %2476 = vmatprep.subr.mxu0 0.0
    %2477 = vmatpush1.msra.mxu0 0.0
    %2478 = vmatprep.subr.mxu0 0.0
    %2479 = vmatpush1.msra.mxu0 0.0
    %2480 = vmatprep.subr.mxu0 0.0
    %2481 = vmatpush1.msra.mxu0 0.0
    %2482 = vmatprep.mubr.f32.mxu0 0.0
    %2483 = vmatmul.mubr.f32.gmra.mrb[0].mxu0 %v2243
    %v2484 = vpop.f32.mrb[0].mxu0
    %v2485 = vadd.f32 %v2345, %v2484
    %v2486 = vpop.f32.mrb[0].mxu0
    %v2487 = vadd.f32 %v2346, %v2486
    %2488 = vdwg.mxu0
    %v2489 = vmul.f32 %v2414, 0.5
    %v2490 = vtanh.pop %v2489
    %v2491 = vmul.f32 %v2490, 0.5
    %v2492 = vadd.f32 %v2491, 0.5
    %v2493 = vmul.f32 %v2416, 0.5
    %v2494 = vtanh.pop %v2493
    %v2495 = vmul.f32 %v2494, 0.5
    %v2496 = vadd.f32 %v2495, 0.5
    %v2497 = vtanh.pop %v2485
    %v2498 = vmul.f32 %v2487, 0.5
    %v2499 = vtanh.pop %v2498
    %v2500 = vmul.f32 %v2499, 0.5
    %v2501 = vadd.f32 %v2500, 0.5
    %v2502 = vmul.f32 %v2496, %v2241
    %v2503 = vmul.f32 %v2492, %v2497
    %v2504 = vadd.f32 %v2502, %v2503
    %v2505 = vtanh.pop %v2504
    %v2506 = vmul.f32 %v2501, %v2505
    %v2507 = vld [vmem:[%s12 + $0x38] sm:$0xff]
    %v2508 = vmul.f32 %v2506, %v2507
    %2510 = vrot.lane.b32.xlu0 %v2342, 32
    %v2511 = vpop.permute.xlu0 %2510
    %v2512 = vsel %vm665, %v2511, 0
    %2514 = vmatprep.subr.mxu0 0.0
    %2515 = vmatpush1.msra.mxu0 %v468
    %2516 = vmatprep.subr.mxu0 0.0
    %2517 = vmatpush1.msra.mxu0 %v469
    %2518 = vmatprep.subr.mxu0 0.0
    %2519 = vmatpush1.msra.mxu0 %v470
    %2520 = vmatprep.subr.mxu0 0.0
    %2521 = vmatpush1.msra.mxu0 %v471
    %2522 = vmatprep.subr.mxu0 0.0
    %2523 = vmatpush1.msra.mxu0 %v472
    %2524 = vmatprep.subr.mxu0 0.0
    %2525 = vmatpush1.msra.mxu0 %v473
    %2526 = vmatprep.subr.mxu0 0.0
    %2527 = vmatpush1.msra.mxu0 %v474
    %2528 = vmatprep.subr.mxu0 0.0
    %2529 = vmatpush1.msra.mxu0 %v475
    %2530 = vmatprep.subr.mxu0 0.0
    %2531 = vmatpush1.msra.mxu0 %v476
    %2532 = vmatprep.subr.mxu0 0.0
    %2533 = vmatpush1.msra.mxu0 %v477
    %2534 = vmatprep.subr.mxu0 0.0
    %2535 = vmatpush1.msra.mxu0 %v478
    %2536 = vmatprep.subr.mxu0 0.0
    %2537 = vmatpush1.msra.mxu0 %v479
    %2538 = vmatprep.subr.mxu0 0.0
    %2539 = vmatpush1.msra.mxu0 %v480
    %2540 = vmatprep.subr.mxu0 0.0
    %2541 = vmatpush1.msra.mxu0 %v481
    %2542 = vmatprep.subr.mxu0 0.0
    %2543 = vmatpush1.msra.mxu0 %v482
    %2544 = vmatprep.subr.mxu0 0.0
    %2545 = vmatpush1.msra.mxu0 %v483
    %2546 = vmatprep.subr.mxu0 0.0
    %2547 = vmatpush1.msra.mxu0 %v484
    %2548 = vmatprep.subr.mxu0 0.0
    %2549 = vmatpush1.msra.mxu0 %v485
    %2550 = vmatprep.subr.mxu0 0.0
    %2551 = vmatpush1.msra.mxu0 %v486
    %2552 = vmatprep.subr.mxu0 0.0
    %2553 = vmatpush1.msra.mxu0 %v487
    %2554 = vmatprep.subr.mxu0 0.0
    %2555 = vmatpush1.msra.mxu0 0.0
    %2556 = vmatprep.subr.mxu0 0.0
    %2557 = vmatpush1.msra.mxu0 0.0
    %2558 = vmatprep.subr.mxu0 0.0
    %2559 = vmatpush1.msra.mxu0 0.0
    %2560 = vmatprep.subr.mxu0 0.0
    %2561 = vmatpush1.msra.mxu0 0.0
    %2562 = vmatprep.subr.mxu0 0.0
    %2563 = vmatpush1.msra.mxu0 0.0
    %2564 = vmatprep.subr.mxu0 0.0
    %2565 = vmatpush1.msra.mxu0 0.0
    %2566 = vmatprep.subr.mxu0 0.0
    %2567 = vmatpush1.msra.mxu0 0.0
    %2568 = vmatprep.subr.mxu0 0.0
    %2569 = vmatpush1.msra.mxu0 0.0
    %2570 = vmatprep.subr.mxu0 0.0
    %2571 = vmatpush1.msra.mxu0 0.0
    %2572 = vmatprep.subr.mxu0 0.0
    %2573 = vmatpush1.msra.mxu0 0.0
    %2574 = vmatprep.subr.mxu0 0.0
    %2575 = vmatpush1.msra.mxu0 0.0
    %2576 = vmatprep.subr.mxu0 0.0
    %2577 = vmatpush1.msra.mxu0 0.0
    %2578 = vmatprep.mubr.f32.mxu0 %v2512
    %2579 = vmatmul.mubr.f32.gmra.mrb[0].mxu0 %v2508
    %v2580 = vpop.f32.mrb[0].mxu0
    %v2581 = vadd.f32 %v663, %v2580
    %v2582 = vpop.f32.mrb[0].mxu0
    %2583 = vdwg.mxu0
    %v2584 = vmul.f32 %v2581, 0.5
    %v2585 = vtanh.pop %v2584
    %v2586 = vmul.f32 %v2585, 0.5
    %v2587 = vadd.f32 %v2586, 0.5
    %v2588 = vtanh.pop %v2581
    %v2589 = vmul.f32 %v2587, %v2336
    %2591 = vrot.lane.b32.xlu0 %v2588, 64
    %v2592 = vpop.permute.xlu0 %2591
    %v2594 = vmul.f32 %v2587, %v2592
    %2596 = vrot.lane.b32.xlu0 %v2594, 32
    %v2597 = vpop.permute.xlu0 %2596
    %v2599 = vadd.f32 %v2589, %v2597
    %v2600 = vtanh.pop %v2599
    %2602 = vrot.lane.b32.xlu0 %v2600, 64
    %v2603 = vpop.permute.xlu0 %2602
    %v2605 = vmul.f32 %v2587, %v2603
    %v2606 = vld [vmem:[%s6] sm:$0xff]
    %v2607 = vld [vmem:[%s6 + $0x8] sm:$0xff]
    %v2608 = vld [vmem:[%s6 + $0x10] sm:$0xff]
    %v2609 = vld [vmem:[%s6 + $0x18] sm:$0xff]
    %v2610 = vld [vmem:[#allocation3] sm:$0x1]
    %v2612 = vlaneseq
    %v2613 = vshrl.u32 %v2612, 7
    %v2614 = vsub.s32 0, %v2613
    %v2615 = vrot.slane %v2610, %v2614
    %2618 = vrot.lane.b32.xlu0 %v2605, 32
    %v2619 = vpop.permute.xlu0 %2618
    %v2620 = vsel %vm665, %v2619, 0
    %2622 = vmatprep.subr.mxu0 0.0
    %2623 = vmatpush1.msra.mxu0 %v2606
    %2624 = vmatprep.subr.mxu0 0.0
    %2625 = vmatpush1.msra.mxu0 %v2607
    %2626 = vmatprep.subr.mxu0 0.0
    %2627 = vmatpush1.msra.mxu0 %v2608
    %2628 = vmatprep.subr.mxu0 0.0
    %2629 = vmatpush1.msra.mxu0 %v2609
    %2630 = vmatprep.subr.mxu0 0.0
    %2631 = vmatpush1.msra.mxu0 0.0
    %2632 = vmatprep.subr.mxu0 0.0
    %2633 = vmatpush1.msra.mxu0 0.0
    %2634 = vmatprep.subr.mxu0 0.0
    %2635 = vmatpush1.msra.mxu0 0.0
    %2636 = vmatprep.subr.mxu0 0.0
    %2637 = vmatpush1.msra.mxu0 0.0
    %2638 = vmatprep.subr.mxu0 0.0
    %2639 = vmatpush1.msra.mxu0 0.0
    %2640 = vmatprep.subr.mxu0 0.0
    %2641 = vmatpush1.msra.mxu0 0.0
    %2642 = vmatprep.subr.mxu0 0.0
    %2643 = vmatpush1.msra.mxu0 0.0
    %2644 = vmatprep.subr.mxu0 0.0
    %2645 = vmatpush1.msra.mxu0 0.0
    %2646 = vmatprep.subr.mxu0 0.0
    %2647 = vmatpush1.msra.mxu0 0.0
    %2648 = vmatprep.subr.mxu0 0.0
    %2649 = vmatpush1.msra.mxu0 0.0
    %2650 = vmatprep.subr.mxu0 0.0
    %2651 = vmatpush1.msra.mxu0 0.0
    %2652 = vmatprep.subr.mxu0 0.0
    %2653 = vmatpush1.msra.mxu0 0.0
    %2654 = vmatprep.subr.mxu0 0.0
    %2655 = vmatpush1.msra.mxu0 0.0
    %2656 = vmatprep.subr.mxu0 0.0
    %2657 = vmatpush1.msra.mxu0 0.0
    %2658 = vmatprep.subr.mxu0 0.0
    %2659 = vmatpush1.msra.mxu0 0.0
    %2660 = vmatprep.subr.mxu0 0.0
    %2661 = vmatpush1.msra.mxu0 0.0
    %2662 = vmatprep.subr.mxu0 0.0
    %2663 = vmatpush1.msra.mxu0 0.0
    %2664 = vmatprep.subr.mxu0 0.0
    %2665 = vmatpush1.msra.mxu0 0.0
    %2666 = vmatprep.subr.mxu0 0.0
    %2667 = vmatpush1.msra.mxu0 0.0
    %2668 = vmatprep.subr.mxu0 0.0
    %2669 = vmatpush1.msra.mxu0 0.0
    %2670 = vmatprep.subr.mxu0 0.0
    %2671 = vmatpush1.msra.mxu0 0.0
    %2672 = vmatprep.subr.mxu0 0.0
    %2673 = vmatpush1.msra.mxu0 0.0
    %2674 = vmatprep.subr.mxu0 0.0
    %2675 = vmatpush1.msra.mxu0 0.0
    %2676 = vmatprep.subr.mxu0 0.0
    %2677 = vmatpush1.msra.mxu0 0.0
    %2678 = vmatprep.subr.mxu0 0.0
    %2679 = vmatpush1.msra.mxu0 0.0
    %2680 = vmatprep.subr.mxu0 0.0
    %2681 = vmatpush1.msra.mxu0 0.0
    %2682 = vmatprep.subr.mxu0 0.0
    %2683 = vmatpush1.msra.mxu0 0.0
    %2684 = vmatprep.subr.mxu0 0.0
    %2685 = vmatpush1.msra.mxu0 0.0
    %2686 = vmatprep.mubr.f32.mxu0 0.0
    %2687 = vmatmul.mubr.f32.gmra.mrb[0].mxu0 %v2620
    %v2688 = vpop.f32.mrb[0].mxu0
    %v2689 = vadd.f32 %v2615, %v2688
    %v2690 = vpop.f32.mrb[0].mxu0
    %2691 = vdwg.mxu0
    %vm2692 = vcmask 7168
    %2693 = vst.msk [vmem:[%s13] sm:$0xff] %vm2692, %v2689
    // Predicated region
    $region66: #{predictor_forward.1} parent=1 // pred_check
      _
    $region67: #{predictor_forward.1} parent=1 // pred_check_branch
      %2695 = sbr.rel (0) target = $region69
    $region68: #{predictor_forward.1} parent=1 // pred_region
      _
    $region69: #{predictor_forward.1} parent=1 // pred_fallthru
      _
    // Predicated region
    $region70: #{predictor_forward.1} parent=1 // pred_check
      _
    $region71: #{predictor_forward.1} parent=1 // pred_check_branch
      %2697 = sbr.rel (0) target = $region73
    $region72: #{predictor_forward.1} parent=1 // pred_region
      _
    $region73: #{predictor_forward.1} parent=1 // pred_fallthru
      _
    %2698 = vsyncpa [#allocation5], 1
    %2699 = vsyncpa [#allocation7], 1

</llo_original>
